<compile_context>
chip_gen: v7x
topology: tpu7x:2x2x1
jax: 0.10.0
libtpu: 0.0.40
codegen_flags: <defaults>
</compile_context>

<pallas_src>
import functools

import jax
import jax.numpy as jnp
from jax.experimental import pallas as pl
from jax.experimental.pallas import tpu as pltpu

_COUT_TILE = 128                     # output-channel tile (lane-dense stores / MXU columns)


def _round_up(x, m):
    return (x + m - 1) // m * m


def _plan_bands(H, W):
    """Pick R = output rows per spatial band.  The flat band (R*(W+2) rows) must be a
    multiple of 16 (packed-dtype sublane tiling), large enough to cover the 3x3 halo plus
    DMA-rounding slack, and H must split into whole bands."""
    halo_pad = _round_up(W + 3, 16)
    min_band = max(halo_pad, W + 3 + 16)
    chosen = None
    for r in range(1, H + 1):
        if H % r:
            continue
        a_band = r * (W + 2)
        if a_band % 16 or a_band < min_band:
            continue
        chosen = r
        if a_band >= 128:            # smallest band with an MXU-friendly row count
            break
    if chosen is None:
        # TODO(synk): pad H/W to reach a legal band size for exotic spatial shapes.
        raise ValueError(f"no legal spatial band for H={H}, W={W}")
    return chosen


# ---------------------------------------------------------------------------
# A-layout helpers: flat (N, (nb+2)*A_band, C) buffer, pixel (h, w) at row
# A_band + h*(W+2) + (w+1); leading/trailing bands and the W-pad columns are zero,
# so the buffer doubles as the zero-padded input of the next 3x3 conv.
# ---------------------------------------------------------------------------
def _to_alayout(x_nhwc, a_band):
    N, H, W, C = x_nhwc.shape
    xf = jnp.pad(x_nhwc, ((0, 0), (0, 0), (1, 1), (0, 0)))           # (N, H, W+2, C)
    xf = xf.reshape(N, H * (W + 2), C)
    xf = jnp.pad(xf, ((0, 0), (a_band, a_band), (0, 0)))             # zero top/bottom bands
    return xf.astype(jnp.bfloat16)


def _from_alayout(y_flat, H, W, a_band, n_ch):
    N = y_flat.shape[0]
    body = y_flat[:, a_band:a_band + H * (W + 2), :]
    return body.reshape(N, H, W + 2, -1)[:, :, 1:W + 1, :n_ch]


# ---------------------------------------------------------------------------
# Pallas kernel: one (image, spatial band, Cout-tile) grid step
# ---------------------------------------------------------------------------
def _conv3x3_kernel(x_hbm, w_ref, s_ref, o_ref, xbuf, sem, *,
                    tap_offsets, a_band, w_img, nb, halo_pad, cout_real,
                    apply_relu, apply_sigmoid):
    """x_hbm : (N*F, Cin) bf16 in HBM (A-layout, manual DMA)
    w_ref : (9, Cin, TCO) bf16 folded weights (tap-major, BN scale absorbed)
    s_ref : (1, TCO)      f32  folded shift
    o_ref : (1, A_band, TCO)   output band (A-layout)
    xbuf  : (L_pad, Cin)  bf16 VMEM band buffer (+halo), fetched once per (n, band)
    """
    n = pl.program_id(0)
    sb = pl.program_id(1)
    j = pl.program_id(2)

    is_pad = jnp.logical_or(sb == 0, sb == nb + 1)

    @pl.when(is_pad)
    def _zero_pad_band():                       # top / bottom zero-pad bands
        o_ref[0] = jnp.zeros(o_ref.shape[1:], o_ref.dtype)

    @pl.when(jnp.logical_not(is_pad))
    def _compute_band():
        # Fetch the band (+halo) once per (image, band); reuse across Cout tiles.
        @pl.when(j == 0)
        def _fetch():
            src0 = (n * (nb + 2) + sb) * a_band - halo_pad     # 16-row-aligned offset
            cp = pltpu.make_async_copy(
                x_hbm.at[pl.ds(src0, xbuf.shape[0]), :], xbuf, sem.at[0])
            cp.start()
            cp.wait()

        acc = None                               # value accumulation (no VMEM RMW)
        for t, off in enumerate(tap_offsets):    # 9 taps, statically unrolled
            tap = xbuf[pl.ds(off, a_band), :]    # bf16, no per-tap cast
            part = jnp.dot(tap, w_ref[t], preferred_element_type=jnp.float32)
            acc = part if acc is None else acc + part

        y = acc + s_ref[...]
        if apply_relu:
            y = jnp.maximum(y, 0.0)
        # Zero the W-pad columns so this buffer is directly a valid padded input for
        # the next layer (flat A-layout chaining, no wrapper repacking).
        col = jax.lax.broadcasted_iota(jnp.int32, (a_band, 1), 0) % (w_img + 2)
        keep = jnp.logical_and(col > 0, col < w_img + 1)
        y = jnp.where(keep, y, 0.0)

        o_ref[0] = y.astype(o_ref.dtype)
        if apply_sigmoid:                        # pack sigmoid into lanes [Cout, 2*Cout)
            feat = y[:, :cout_real]
            sig = 0.5 * (jnp.tanh(0.5 * feat) + 1.0)   # exact sigmoid identity
            o_ref[0, :, cout_real:2 * cout_real] = sig.astype(o_ref.dtype)


# ---------------------------------------------------------------------------
# Wrapper: 3x3 / stride-1 / pad-1 conv on an A-layout activation
# ---------------------------------------------------------------------------
def _conv3x3_alayout(x_flat, w9, shift, *, H, W, a_band, apply_relu,
                     apply_sigmoid=False, out_dtype=jnp.bfloat16):
    """x_flat: (N, F, Cin) bf16 A-layout (F = (nb+2)*a_band); w9: (9, Cin, Cout) f32
    (tap-major, BN scale folded); shift: (Cout,) f32.
    Returns (N, F, Cout_p) in the same A-layout (directly consumable by the next conv)."""
    N, F, cin_s = x_flat.shape
    nb = (H * (W + 2)) // a_band
    assert H % (a_band // (W + 2)) == 0 and F == (nb + 2) * a_band

    cout = w9.shape[2]
    if w9.shape[1] < cin_s:                        # stored channels may be lane-padded
        w9 = jnp.pad(w9, ((0, 0), (0, cin_s - w9.shape[1]), (0, 0)))
    cout_p = _round_up(cout, 128)
    if cout_p != cout:
        w9 = jnp.pad(w9, ((0, 0), (0, 0), (0, cout_p - cout)))
        shift = jnp.pad(shift, (0, cout_p - cout))
    tco = min(_COUT_TILE, cout_p)
    assert not apply_sigmoid or 2 * cout <= tco

    halo_pad = _round_up(W + 3, 16)                # aligned DMA source offsets (bf16)
    l_pad = _round_up(halo_pad + a_band + (W + 3), 16)
    tap_offsets = tuple(halo_pad - (W + 3) + kh * (W + 2) + kw
                        for kh in range(3) for kw in range(3))

    w_bf16 = w9.astype(jnp.bfloat16)
    shift2d = shift.reshape(1, cout_p).astype(jnp.float32)
    x2d = x_flat.reshape(N * F, cin_s)             # free (leading-dim collapse)

    grid = (N, nb + 2, cout_p // tco)

    # VMEM budget derived from the actual (double-buffered) working set.
    est = (2 * (9 * cin_s * tco * 2 + tco * 4
                + a_band * tco * jnp.dtype(out_dtype).itemsize)
           + l_pad * cin_s * x_flat.dtype.itemsize)
    vmem_limit = int(max(16 << 20, est + (8 << 20)))

    kern = functools.partial(
        _conv3x3_kernel, tap_offsets=tap_offsets, a_band=a_band, w_img=W, nb=nb,
        halo_pad=halo_pad, cout_real=cout, apply_relu=apply_relu,
        apply_sigmoid=apply_sigmoid)

    return pl.pallas_call(
        kern,
        out_shape=jax.ShapeDtypeStruct((N, F, cout_p), out_dtype),
        grid_spec=pltpu.PrefetchScalarGridSpec(
            num_scalar_prefetch=0,
            grid=grid,
            in_specs=[
                pl.BlockSpec(memory_space=pl.ANY),                          # x (manual DMA)
                pl.BlockSpec((9, cin_s, tco), lambda n, sb, j: (0, 0, j)),  # folded weights
                pl.BlockSpec((1, tco), lambda n, sb, j: (0, j)),            # folded shift
            ],
            out_specs=pl.BlockSpec((1, a_band, tco), lambda n, sb, j: (n, sb, j)),
            scratch_shapes=[
                pltpu.VMEM((l_pad, cin_s), x_flat.dtype),     # band (+halo) buffer
                pltpu.SemaphoreType.DMA((1,)),
            ],
        ),
        compiler_params=pltpu.CompilerParams(
            # Cout-tile axis must stay "arbitrary": the band buffer is fetched at j == 0
            # and reused for j > 0 on the same core.  With cout_p == 128 (all layers of
            # this net) the weight block index is constant, so weights are DMA'd once.
            dimension_semantics=("parallel", "parallel", "arbitrary"),
            vmem_limit_bytes=vmem_limit,
        ),
    )(x2d, w_bf16, shift2d)


# ---------------------------------------------------------------------------
# ConvBlock (the PyTorch module): parameter folding + public entry points
# ---------------------------------------------------------------------------
def _fold_conv_block_params(params, has_bn=True, has_bias=True):
    """conv + bias + BN(eval)  ==  x (*) (w * scale) + (bias*scale + beta - mean*scale)."""
    w = params["w"]                                   # (Cout, Cin, 3, 3), PyTorch layout
    Cout, Cin = w.shape[0], w.shape[1]
    w9 = jnp.transpose(w, (2, 3, 1, 0)).reshape(9, Cin, Cout)      # tap-major (3*kh+kw)
    bias = params["b"] if has_bias else jnp.zeros((Cout,), jnp.float32)
    if has_bn:
        eps = 1e-5                                    # nn.BatchNorm2d default
        scale = params["gamma"] / jnp.sqrt(params["var"] + eps)
        shift = params["beta"] - params["mean"] * scale
    else:
        scale = jnp.ones((Cout,), jnp.float32)
        shift = jnp.zeros((Cout,), jnp.float32)
    return w9 * scale[None, None, :], bias * scale + shift


def conv_block(x_nhwc, params, has_relu=True, has_bn=True, has_bias=True):
    """ConvBlock: 3x3 conv (stride 1, pad 1) [+bias] [+BN eval] [+ReLU]."""
    N, H, W, _ = x_nhwc.shape
    w9, shift = _fold_conv_block_params(params, has_bn=has_bn, has_bias=has_bias)
    r = _plan_bands(H, W)
    a_band = r * (W + 2)
    xf = _to_alayout(x_nhwc, a_band)
    y = _conv3x3_alayout(xf, w9, shift, H=H, W=W, a_band=a_band,
                         apply_relu=has_relu, out_dtype=jnp.float32)
    return _from_alayout(y, H, W, a_band, w9.shape[2])


def _fold_branch_blockdiag(xs_nhwc, params_list):
    """Fold several ConvBlocks (same N,H,W, different Cin) into block-diagonal weights so
    they run as ONE kernel call emitting the channel-concatenated feature map.
    NOTE: fine while sum(Cin) is small (18 here); wide branches should instead get
    per-branch Cin windows to avoid the (sum Cin)x(sum Cout) MXU / weight-DMA tax."""
    folded = [_fold_conv_block_params(p) for p in params_list]
    cins = [x.shape[-1] for x in xs_nhwc]
    couts = [w9.shape[2] for w9, _ in folded]
    w_bd = jnp.zeros((9, sum(cins), sum(couts)), jnp.float32)
    ci = co = 0
    for (w9, _), cin, cout in zip(folded, cins, couts):
        w_bd = w_bd.at[:, ci:ci + cin, co:co + cout].set(w9)
        ci += cin
        co += cout
    s_bd = jnp.concatenate([s for _, s in folded])
    return w_bd, s_bd


# ---------------------------------------------------------------------------
# Parameter init (mirrors nn.Conv2d / nn.BatchNorm2d shapes) and SODNet demo
# ---------------------------------------------------------------------------
def init_conv_block(key, cin, cout, bias=True, bn=True):
    k1, k2, k3, k4, k5, k6 = jax.random.split(key, 6)
    bound = 1.0 / jnp.sqrt(jnp.float32(cin * 9))
    p = {"w": jax.random.uniform(k1, (cout, cin, 3, 3), jnp.float32, -bound, bound)}
    if bias:
        p["b"] = jax.random.uniform(k2, (cout,), jnp.float32, -bound, bound)
    if bn:
        p["gamma"] = 1.0 + 0.1 * jax.random.normal(k3, (cout,), jnp.float32)
        p["beta"] = 0.1 * jax.random.normal(k4, (cout,), jnp.float32)
        p["mean"] = 0.1 * jax.random.normal(k5, (cout,), jnp.float32)
        p["var"] = 1.0 + 0.1 * jax.random.uniform(k6, (cout,), jnp.float32)
    return p


class SODNet:
    def __init__(self, key, conv1_feature_num, sod_gcn1_feature_num,
                 sod_gcn2_feature_num, conv2_feature_num=0, mout=128, sout=1):
        self.has_conv2 = conv2_feature_num > 0
        keys = jax.random.split(key, 6)
        self.p_conv1 = init_conv_block(keys[0], conv1_feature_num, mout)
        if self.has_conv2:
            self.p_conv2 = init_conv_block(keys[1], conv2_feature_num, mout)
        self.p_gcn1 = init_conv_block(keys[2], sod_gcn1_feature_num, mout)
        self.p_gcn2 = init_conv_block(keys[3], sod_gcn2_feature_num, mout)
        self.p_final1 = init_conv_block(keys[4], mout * (4 if self.has_conv2 else 3), mout)
        self.p_final2 = init_conv_block(keys[5], mout, sout, bias=False, bn=False)

    def __call__(self, conv1_feature, conv2_feature, sod_gcn1_feature, sod_gcn2_feature):
        to_nhwc = lambda t: jnp.transpose(t, (0, 2, 3, 1))     # NCHW -> NHWC

        xs, ps = [to_nhwc(conv1_feature)], [self.p_conv1]
        if self.has_conv2:
            xs.append(to_nhwc(conv2_feature))
            ps.append(self.p_conv2)
        xs += [to_nhwc(sod_gcn1_feature), to_nhwc(sod_gcn2_feature)]
        ps += [self.p_gcn1, self.p_gcn2]

        N, H, W, _ = xs[0].shape
        r = _plan_bands(H, W)
        a_band = r * (W + 2)

        # One repack of the raw network input into the flat A-layout; every layer
        # below writes its output directly in A-layout (no inter-layer repacking).
        x_cat = jnp.concatenate(xs, axis=-1)
        x_flat = _to_alayout(x_cat, a_band)

        w_bd, s_bd = _fold_branch_blockdiag(xs, ps)            # branch convs fused: 1 call
        h = _conv3x3_alayout(x_flat, w_bd, s_bd, H=H, W=W, a_band=a_band,
                             apply_relu=True, out_dtype=jnp.bfloat16)

        w1, s1 = _fold_conv_block_params(self.p_final1)
        h = _conv3x3_alayout(h, w1, s1, H=H, W=W, a_band=a_band,
                             apply_relu=True, out_dtype=jnp.bfloat16)

        # final conv: ks=3, no bias / BN / ReLU; its sigmoid is fused and packed into
        # lanes [sout, 2*sout) of the same (single) output tensor.
        w2, s2 = _fold_conv_block_params(self.p_final2, has_bn=False, has_bias=False)
        sout = w2.shape[2]
        y = _conv3x3_alayout(h, w2, s2, H=H, W=W, a_band=a_band, apply_relu=False,
                             apply_sigmoid=True, out_dtype=jnp.float32)
        both = _from_alayout(y, H, W, a_band, 2 * sout)
        out_feat, out_sig = both[..., :sout], both[..., sout:2 * sout]

        return (jnp.transpose(out_feat, (0, 3, 1, 2)),         # back to NCHW
                jnp.transpose(out_sig, (0, 3, 1, 2)))


# ---------------------------------------------------------------------------
# Pure-JAX reference (for in-script correctness check)
# ---------------------------------------------------------------------------
def reference_conv_block(x_nhwc, params, has_relu=True, has_bn=True, has_bias=True):
    w = jnp.transpose(params["w"], (2, 3, 1, 0))               # HWIO
    y = jax.lax.conv_general_dilated(
        x_nhwc, w, window_strides=(1, 1), padding=((1, 1), (1, 1)),
        dimension_numbers=("NHWC", "HWIO", "NHWC"),
        precision=jax.lax.Precision.HIGHEST)
    if has_bias:
        y = y + params["b"]
    if has_bn:
        scale = params["gamma"] / jnp.sqrt(params["var"] + 1e-5)
        y = (y - params["mean"]) * scale + params["beta"]
    if has_relu:
        y = jnp.maximum(y, 0.0)
    return y


# ---------------------------------------------------------------------------
# main
# ---------------------------------------------------------------------------
if __name__ == "__main__":
    key = jax.random.PRNGKey(0)
    k_params, k1, k2, k3, k4 = jax.random.split(key, 5)

    conv1_feature_num, conv2_feature_num = 4, 0          # conv2 branch disabled
    sod_gcn1_feature_num, sod_gcn2_feature_num = 6, 8
    N, H, W = 2, 16, 16
    mout, sout = 128, 1                                  # module defaults

    conv1_feature = jax.random.normal(k1, (N, conv1_feature_num, H, W), jnp.float32)
    conv2_feature = jax.random.normal(k2, (N, 4, H, W), jnp.float32)   # unused
    sod_gcn1_feature = jax.random.normal(k3, (N, sod_gcn1_feature_num, H, W), jnp.float32)
    sod_gcn2_feature = jax.random.normal(k4, (N, sod_gcn2_feature_num, H, W), jnp.float32)

    net = SODNet(k_params, conv1_feature_num, sod_gcn1_feature_num,
                 sod_gcn2_feature_num, conv2_feature_num=conv2_feature_num,
                 mout=mout, sout=sout)

    out_feat, out_sig = net(conv1_feature, conv2_feature,
                            sod_gcn1_feature, sod_gcn2_feature)
    jax.block_until_ready((out_feat, out_sig))

    # correctness: single ConvBlock vs. lax.conv reference
    x1 = jnp.transpose(conv1_feature, (0, 2, 3, 1))
    err1 = float(jnp.max(jnp.abs(conv_block(x1, net.p_conv1)
                                 - reference_conv_block(x1, net.p_conv1))))

    # correctness: full forward vs. pure-JAX reference
    ref_cat = jnp.concatenate(
        [reference_conv_block(x1, net.p_conv1),
         reference_conv_block(jnp.transpose(sod_gcn1_feature, (0, 2, 3, 1)), net.p_gcn1),
         reference_conv_block(jnp.transpose(sod_gcn2_feature, (0, 2, 3, 1)), net.p_gcn2)],
        axis=-1)
    ref_out = reference_conv_block(
        reference_conv_block(ref_cat, net.p_final1), net.p_final2,
        has_relu=False, has_bn=False, has_bias=False)
    err2 = float(jnp.max(jnp.abs(out_feat - jnp.transpose(ref_out, (0, 3, 1, 2)))))

    assert out_feat.shape == (N, sout, H, W) and out_sig.shape == (N, sout, H, W)
    assert bool(jnp.all(jnp.isfinite(out_feat)))
    assert bool(jnp.all((out_sig >= 0.0) & (out_sig <= 1.0)))
    assert err1 < 1e-1, f"ConvBlock mismatch vs reference: {err1}"
    assert err2 < 1e-1, f"SODNet mismatch vs reference: {err2}"
    print("KERNEL_OK")
</pallas_src>

<mosaic_0001>
module attributes {stable_mosaic.version = 11 : i64} {
  func.func @_conv3x3_kernel(%arg0: i32, %arg1: i32, %arg2: i32, %arg3: memref<1152x18xbf16, #tpu.memory_space<any>>, %arg4: memref<9x18x128xbf16, #tpu.memory_space<vmem>>, %arg5: memref<1x128xf32, #tpu.memory_space<vmem>>, %arg6: memref<1x144x128xbf16, #tpu.memory_space<vmem>>, %arg7: memref<208x18xbf16, #tpu.memory_space<vmem>>, %arg8: memref<1x!tpu.dma_semaphore, #tpu.memory_space<semaphore_mem>>) attributes {dimension_semantics = [#tpu.dimension_semantics<parallel>, #tpu.dimension_semantics<parallel>, #tpu.dimension_semantics<arbitrary>], iteration_bounds = array<i64: 2, 4, 3>, scalar_prefetch = 0 : i64, scratch_operands = 2 : i64, tpu.core_type = #tpu.core_type<tc>, window_params = [{}, {transform_indices = @transform_1, window_bounds = array<i64: 9, 18, 128>}, {transform_indices = @transform_2, window_bounds = array<i64: 1, 128>}, {transform_indices = @transform_3, window_bounds = array<i64: 1, 144, 128>}]} {
    %c0_i32 = arith.constant 0 : i32
    %0 = arith.cmpi eq, %arg1, %c0_i32 : i32
    %c3_i32 = arith.constant 3 : i32
    %1 = arith.cmpi eq, %arg1, %c3_i32 : i32
    %2 = arith.ori %0, %1 : i1
    %3 = arith.extui %2 : i1 to i32
    %c0_i32_0 = arith.constant 0 : i32
    %4 = arith.cmpi ne, %3, %c0_i32_0 : i32
    scf.if %4 {
      %cst = arith.constant 0.000000e+00 : bf16
      %8 = vector.broadcast %cst : bf16 to vector<144x128xbf16>
      %c0 = arith.constant 0 : index
      %c0_2 = arith.constant 0 : index
      %c0_3 = arith.constant 0 : index
      %9 = vector.load %arg6[%c0, %c0_2, %c0_3] : memref<1x144x128xbf16, #tpu.memory_space<vmem>>, vector<1x144x128xbf16>
      %10 = vector.shape_cast %9 : vector<1x144x128xbf16> to vector<144x128xbf16>
      %11 = vector.shape_cast %8 : vector<144x128xbf16> to vector<1x144x128xbf16>
      tpu.vector_store %arg6[%c0, %c0_2, %c0_3], %11 {strides = array<i32>} : memref<1x144x128xbf16, #tpu.memory_space<vmem>>, vector<1x144x128xbf16>,
    } else {
    }
    %true = arith.constant true
    %5 = arith.xori %2, %true : i1
    %6 = arith.extui %5 : i1 to i32
    %c0_i32_1 = arith.constant 0 : i32
    %7 = arith.cmpi ne, %6, %c0_i32_1 : i32
    scf.if %7 {
      %c0_i32_2 = arith.constant 0 : i32
      %8 = arith.cmpi eq, %arg2, %c0_i32_2 : i32
      %9 = arith.extui %8 : i1 to i32
      %c0_i32_3 = arith.constant 0 : i32
      %10 = arith.cmpi ne, %9, %c0_i32_3 : i32
      scf.if %10 {
        %c4_i32 = arith.constant 4 : i32
        %90 = arith.muli %arg0, %c4_i32 : i32
        %91 = arith.addi %90, %arg1 : i32
        %c144_i32 = arith.constant 144 : i32
        %92 = arith.muli %91, %c144_i32 : i32
        %c32_i32 = arith.constant 32 : i32
        %93 = arith.subi %92, %c32_i32 : i32
        %c0_i32_51 = arith.constant 0 : i32
        %c0_i32_52 = arith.constant 0 : i32
        %94 = tpu.memref_slice %arg3[%93, %c0_i32_52] : memref<1152x18xbf16, #tpu.memory_space<any>> -> memref<208x18xbf16, #tpu.memory_space<any>>
        %95 = tpu.memref_slice %arg8[%c0_i32_51] : memref<1x!tpu.dma_semaphore, #tpu.memory_space<semaphore_mem>> -> memref<1x!tpu.dma_semaphore, #tpu.memory_space<semaphore_mem>>
        %96 = tpu.memref_squeeze %95 : memref<1x!tpu.dma_semaphore, #tpu.memory_space<semaphore_mem>> -> memref<!tpu.dma_semaphore, #tpu.memory_space<semaphore_mem>>
        tpu.enqueue_dma source(%94 : memref<208x18xbf16, #tpu.memory_space<any>>) target(%arg7 : memref<208x18xbf16, #tpu.memory_space<vmem>>) target_semaphore(%96 : memref<!tpu.dma_semaphore, #tpu.memory_space<semaphore_mem>>)
        %c0_i32_53 = arith.constant 0 : i32
        %c0_i32_54 = arith.constant 0 : i32
        %97 = tpu.memref_slice %arg3[%93, %c0_i32_54] : memref<1152x18xbf16, #tpu.memory_space<any>> -> memref<208x18xbf16, #tpu.memory_space<any>>
        %98 = tpu.memref_slice %arg8[%c0_i32_53] : memref<1x!tpu.dma_semaphore, #tpu.memory_space<semaphore_mem>> -> memref<1x!tpu.dma_semaphore, #tpu.memory_space<semaphore_mem>>
        %99 = tpu.memref_squeeze %98 : memref<1x!tpu.dma_semaphore, #tpu.memory_space<semaphore_mem>> -> memref<!tpu.dma_semaphore, #tpu.memory_space<semaphore_mem>>
        tpu.wait_dma2 semaphore(%99 : memref<!tpu.dma_semaphore, #tpu.memory_space<semaphore_mem>>) src(%97 : memref<208x18xbf16, #tpu.memory_space<any>>) dst(%arg7 : memref<208x18xbf16, #tpu.memory_space<vmem>>)
      } else {
      }
      %c13 = arith.constant 13 : index
      %c0 = arith.constant 0 : index
      %11 = vector.load %arg7[%c13, %c0] : memref<208x18xbf16, #tpu.memory_space<vmem>>, vector<144x18xbf16>
      %c0_4 = arith.constant 0 : index
      %c0_5 = arith.constant 0 : index
      %c0_6 = arith.constant 0 : index
      %12 = vector.load %arg4[%c0_4, %c0_5, %c0_6] : memref<9x18x128xbf16, #tpu.memory_space<vmem>>, vector<1x18x128xbf16>
      %13 = vector.shape_cast %12 : vector<1x18x128xbf16> to vector<18x128xbf16>
      %cst = arith.constant dense<0.000000e+00> : vector<144x128xf32>
      %14 = tpu.matmul %11, %13, %cst {dimension_numbers = #tpu.dot_dimension_numbers<[1], [0], [0], [1], [0, 0, 1, 1], [], []>} : vector<144x18xbf16>, vector<18x128xbf16>, vector<144x128xf32> -> vector<144x128xf32>
      %c14 = arith.constant 14 : index
      %c0_7 = arith.constant 0 : index
      %15 = vector.load %arg7[%c14, %c0_7] : memref<208x18xbf16, #tpu.memory_space<vmem>>, vector<144x18xbf16>
      %c1 = arith.constant 1 : index
      %c0_8 = arith.constant 0 : index
      %c0_9 = arith.constant 0 : index
      %16 = vector.load %arg4[%c1, %c0_8, %c0_9] : memref<9x18x128xbf16, #tpu.memory_space<vmem>>, vector<1x18x128xbf16>
      %17 = vector.shape_cast %16 : vector<1x18x128xbf16> to vector<18x128xbf16>
      %cst_10 = arith.constant dense<0.000000e+00> : vector<144x128xf32>
      %18 = tpu.matmul %15, %17, %cst_10 {dimension_numbers = #tpu.dot_dimension_numbers<[1], [0], [0], [1], [0, 0, 1, 1], [], []>} : vector<144x18xbf16>, vector<18x128xbf16>, vector<144x128xf32> -> vector<144x128xf32>
      %19 = arith.addf %14, %18 : vector<144x128xf32>
      %c15 = arith.constant 15 : index
      %c0_11 = arith.constant 0 : index
      %20 = vector.load %arg7[%c15, %c0_11] : memref<208x18xbf16, #tpu.memory_space<vmem>>, vector<144x18xbf16>
      %c2 = arith.constant 2 : index
      %c0_12 = arith.constant 0 : index
      %c0_13 = arith.constant 0 : index
      %21 = vector.load %arg4[%c2, %c0_12, %c0_13] : memref<9x18x128xbf16, #tpu.memory_space<vmem>>, vector<1x18x128xbf16>
      %22 = vector.shape_cast %21 : vector<1x18x128xbf16> to vector<18x128xbf16>
      %cst_14 = arith.constant dense<0.000000e+00> : vector<144x128xf32>
      %23 = tpu.matmul %20, %22, %cst_14 {dimension_numbers = #tpu.dot_dimension_numbers<[1], [0], [0], [1], [0, 0, 1, 1], [], []>} : vector<144x18xbf16>, vector<18x128xbf16>, vector<144x128xf32> -> vector<144x128xf32>
      %24 = arith.addf %19, %23 : vector<144x128xf32>
      %c31 = arith.constant 31 : index
      %c0_15 = arith.constant 0 : index
      %25 = vector.load %arg7[%c31, %c0_15] : memref<208x18xbf16, #tpu.memory_space<vmem>>, vector<144x18xbf16>
      %c3 = arith.constant 3 : index
      %c0_16 = arith.constant 0 : index
      %c0_17 = arith.constant 0 : index
      %26 = vector.load %arg4[%c3, %c0_16, %c0_17] : memref<9x18x128xbf16, #tpu.memory_space<vmem>>, vector<1x18x128xbf16>
      %27 = vector.shape_cast %26 : vector<1x18x128xbf16> to vector<18x128xbf16>
      %cst_18 = arith.constant dense<0.000000e+00> : vector<144x128xf32>
      %28 = tpu.matmul %25, %27, %cst_18 {dimension_numbers = #tpu.dot_dimension_numbers<[1], [0], [0], [1], [0, 0, 1, 1], [], []>} : vector<144x18xbf16>, vector<18x128xbf16>, vector<144x128xf32> -> vector<144x128xf32>
      %29 = arith.addf %24, %28 : vector<144x128xf32>
      %c32 = arith.constant 32 : index
      %c0_19 = arith.constant 0 : index
      %30 = vector.load %arg7[%c32, %c0_19] : memref<208x18xbf16, #tpu.memory_space<vmem>>, vector<144x18xbf16>
      %c4 = arith.constant 4 : index
      %c0_20 = arith.constant 0 : index
      %c0_21 = arith.constant 0 : index
      %31 = vector.load %arg4[%c4, %c0_20, %c0_21] : memref<9x18x128xbf16, #tpu.memory_space<vmem>>, vector<1x18x128xbf16>
      %32 = vector.shape_cast %31 : vector<1x18x128xbf16> to vector<18x128xbf16>
      %cst_22 = arith.constant dense<0.000000e+00> : vector<144x128xf32>
      %33 = tpu.matmul %30, %32, %cst_22 {dimension_numbers = #tpu.dot_dimension_numbers<[1], [0], [0], [1], [0, 0, 1, 1], [], []>} : vector<144x18xbf16>, vector<18x128xbf16>, vector<144x128xf32> -> vector<144x128xf32>
      %34 = arith.addf %29, %33 : vector<144x128xf32>
      %c33 = arith.constant 33 : index
      %c0_23 = arith.constant 0 : index
      %35 = vector.load %arg7[%c33, %c0_23] : memref<208x18xbf16, #tpu.memory_space<vmem>>, vector<144x18xbf16>
      %c5 = arith.constant 5 : index
      %c0_24 = arith.constant 0 : index
      %c0_25 = arith.constant 0 : index
      %36 = vector.load %arg4[%c5, %c0_24, %c0_25] : memref<9x18x128xbf16, #tpu.memory_space<vmem>>, vector<1x18x128xbf16>
      %37 = vector.shape_cast %36 : vector<1x18x128xbf16> to vector<18x128xbf16>
      %cst_26 = arith.constant dense<0.000000e+00> : vector<144x128xf32>
      %38 = tpu.matmul %35, %37, %cst_26 {dimension_numbers = #tpu.dot_dimension_numbers<[1], [0], [0], [1], [0, 0, 1, 1], [], []>} : vector<144x18xbf16>, vector<18x128xbf16>, vector<144x128xf32> -> vector<144x128xf32>
      %39 = arith.addf %34, %38 : vector<144x128xf32>
      %c49 = arith.constant 49 : index
      %c0_27 = arith.constant 0 : index
      %40 = vector.load %arg7[%c49, %c0_27] : memref<208x18xbf16, #tpu.memory_space<vmem>>, vector<144x18xbf16>
      %c6 = arith.constant 6 : index
      %c0_28 = arith.constant 0 : index
      %c0_29 = arith.constant 0 : index
      %41 = vector.load %arg4[%c6, %c0_28, %c0_29] : memref<9x18x128xbf16, #tpu.memory_space<vmem>>, vector<1x18x128xbf16>
      %42 = vector.shape_cast %41 : vector<1x18x128xbf16> to vector<18x128xbf16>
      %cst_30 = arith.constant dense<0.000000e+00> : vector<144x128xf32>
      %43 = tpu.matmul %40, %42, %cst_30 {dimension_numbers = #tpu.dot_dimension_numbers<[1], [0], [0], [1], [0, 0, 1, 1], [], []>} : vector<144x18xbf16>, vector<18x128xbf16>, vector<144x128xf32> -> vector<144x128xf32>
      %44 = arith.addf %39, %43 : vector<144x128xf32>
      %c50 = arith.constant 50 : index
      %c0_31 = arith.constant 0 : index
      %45 = vector.load %arg7[%c50, %c0_31] : memref<208x18xbf16, #tpu.memory_space<vmem>>, vector<144x18xbf16>
      %c7 = arith.constant 7 : index
      %c0_32 = arith.constant 0 : index
      %c0_33 = arith.constant 0 : index
      %46 = vector.load %arg4[%c7, %c0_32, %c0_33] : memref<9x18x128xbf16, #tpu.memory_space<vmem>>, vector<1x18x128xbf16>
      %47 = vector.shape_cast %46 : vector<1x18x128xbf16> to vector<18x128xbf16>
      %cst_34 = arith.constant dense<0.000000e+00> : vector<144x128xf32>
      %48 = tpu.matmul %45, %47, %cst_34 {dimension_numbers = #tpu.dot_dimension_numbers<[1], [0], [0], [1], [0, 0, 1, 1], [], []>} : vector<144x18xbf16>, vector<18x128xbf16>, vector<144x128xf32> -> vector<144x128xf32>
      %49 = arith.addf %44, %48 : vector<144x128xf32>
      %c51 = arith.constant 51 : index
      %c0_35 = arith.constant 0 : index
      %50 = vector.load %arg7[%c51, %c0_35] : memref<208x18xbf16, #tpu.memory_space<vmem>>, vector<144x18xbf16>
      %c8 = arith.constant 8 : index
      %c0_36 = arith.constant 0 : index
      %c0_37 = arith.constant 0 : index
      %51 = vector.load %arg4[%c8, %c0_36, %c0_37] : memref<9x18x128xbf16, #tpu.memory_space<vmem>>, vector<1x18x128xbf16>
      %52 = vector.shape_cast %51 : vector<1x18x128xbf16> to vector<18x128xbf16>
      %cst_38 = arith.constant dense<0.000000e+00> : vector<144x128xf32>
      %53 = tpu.matmul %50, %52, %cst_38 {dimension_numbers = #tpu.dot_dimension_numbers<[1], [0], [0], [1], [0, 0, 1, 1], [], []>} : vector<144x18xbf16>, vector<18x128xbf16>, vector<144x128xf32> -> vector<144x128xf32>
      %54 = arith.addf %49, %53 : vector<144x128xf32>
      %c0_39 = arith.constant 0 : index
      %c0_40 = arith.constant 0 : index
      %55 = vector.load %arg5[%c0_39, %c0_40] : memref<1x128xf32, #tpu.memory_space<vmem>>, vector<1x128xf32>
      %56 = vector.broadcast %55 : vector<1x128xf32> to vector<144x128xf32>
      %57 = arith.addf %54, %56 : vector<144x128xf32>
      %cst_41 = arith.constant 0.000000e+00 : f32
      %58 = vector.broadcast %cst_41 : f32 to vector<144x128xf32>
      %59 = arith.maximumf %57, %58 : vector<144x128xf32>
      %60 = tpu.iota {dimensions = array<i32: 0>} : vector<144x1xi32>
      %c18_i32 = arith.constant 18 : i32
      %c0_i32_42 = arith.constant 0 : i32
      %61 = arith.cmpi eq, %c18_i32, %c0_i32_42 : i32
      %c1_i32 = arith.constant 1 : i32
      %62 = arith.select %61, %c1_i32, %c18_i32 : i32
      %63 = vector.broadcast %62 : i32 to vector<144x1xi32>
      %64 = arith.remsi %60, %63 : vector<144x1xi32>
      %c0_i32_43 = arith.constant 0 : i32
      %65 = vector.broadcast %c0_i32_43 : i32 to vector<144x1xi32>
      %66 = arith.cmpi ne, %64, %65 : vector<144x1xi32>
      %c0_i32_44 = arith.constant 0 : i32
      %67 = vector.broadcast %c0_i32_44 : i32 to vector<144x1xi32>
      %68 = arith.cmpi slt, %64, %67 : vector<144x1xi32>
      %c0_i32_45 = arith.constant 0 : i32
      %69 = arith.cmpi slt, %62, %c0_i32_45 : i32
      %70 = vector.broadcast %69 : i1 to vector<144x1xi1>
      %71 = vector.broadcast %70 : vector<144x1xi1> to vector<144x1xi1>
      %72 = arith.xori %68, %71 : vector<144x1xi1>
      %73 = arith.andi %72, %66 : vector<144x1xi1>
      %74 = vector.broadcast %62 : i32 to vector<144x1xi32>
      %75 = arith.addi %64, %74 : vector<144x1xi32>
      %76 = arith.select %73, %75, %64 : vector<144x1xi1>, vector<144x1xi32>
      %c0_i32_46 = arith.constant 0 : i32
      %77 = vector.broadcast %c0_i32_46 : i32 to vector<144x1xi32>
      %78 = arith.cmpi sgt, %76, %77 : vector<144x1xi32>
      %c17_i32 = arith.constant 17 : i32
      %79 = vector.broadcast %c17_i32 : i32 to vector<144x1xi32>
      %80 = arith.cmpi slt, %76, %79 : vector<144x1xi32>
      %81 = arith.andi %78, %80 : vector<144x1xi1>
      %cst_47 = arith.constant 0.000000e+00 : f32
      %82 = vector.shape_cast %81 : vector<144x1xi1> to vector<144x1xi1>
      %83 = vector.broadcast %82 : vector<144x1xi1> to vector<144x128xi1>
      %84 = vector.broadcast %cst_47 : f32 to vector<144x128xf32>
      %85 = arith.select %83, %59, %84 : vector<144x128xi1>, vector<144x128xf32>
      %86 = arith.truncf %85 : vector<144x128xf32> to vector<144x128xbf16>
      %c0_48 = arith.constant 0 : index
      %c0_49 = arith.constant 0 : index
      %c0_50 = arith.constant 0 : index
      %87 = vector.load %arg6[%c0_48, %c0_49, %c0_50] : memref<1x144x128xbf16, #tpu.memory_space<vmem>>, vector<1x144x128xbf16>
      %88 = vector.shape_cast %87 : vector<1x144x128xbf16> to vector<144x128xbf16>
      %89 = vector.shape_cast %86 : vector<144x128xbf16> to vector<1x144x128xbf16>
      tpu.vector_store %arg6[%c0_48, %c0_49, %c0_50], %89 {strides = array<i32>} : memref<1x144x128xbf16, #tpu.memory_space<vmem>>, vector<1x144x128xbf16>,
    } else {
    }
    return
  }
  func.func @transform_1(%arg0: i32, %arg1: i32, %arg2: i32) -> (i32, i32, i32) {
    %c0_i32 = arith.constant 0 : i32
    %c0_i32_0 = arith.constant 0 : i32
    %c0_i32_1 = arith.constant 0 : i32
    return %c0_i32, %c0_i32_0, %arg2 : i32, i32, i32
  }
  func.func @transform_2(%arg0: i32, %arg1: i32, %arg2: i32) -> (i32, i32) {
    %c0_i32 = arith.constant 0 : i32
    %c0_i32_0 = arith.constant 0 : i32
    return %c0_i32, %arg2 : i32, i32
  }
  func.func @transform_3(%arg0: i32, %arg1: i32, %arg2: i32) -> (i32, i32, i32) {
    %c0_i32 = arith.constant 0 : i32
    return %arg0, %arg1, %arg2 : i32, i32, i32
  }
}

</mosaic_0001>

<llo_original>
// kernel: tpu_custom_call.1
$region0: #{tpu_custom_call.1}
  #allocation0 [shape = 'u32[]', space=smem, size = 0x4, offset = 0x4, fixed_abs, tag = 'smem constant byte address 0x4 - core index']
  #allocation1 [shape = 'u32[144,128]{1,0:T(1,128)}', space=vmem, size = 0x12000, scoped, tag = 'internal scratch']
  #allocation2 [shape = 'bf16[208,18]{1,0:T(16,128)(2,1)}', space=vmem, size = 0xd000, scoped, tag = 'scratch operand']
  #allocation3 [shape = 's32[1]{0}', space=sflag, size = 0x4, scoped, tag = 'scratch operand']
  #allocation7 [shape = 's32[]', space=sflag, size = 0x4, offset = 0, fixed_abs, tag = 'sflag constant byte address 0x0 - dummy sync flag']
  %s0 = inlined_call_operand.vmem [shape: bf16[1152,18], index: 0, kind: input, shape index: {}]
  %s1 = inlined_call_operand.vmem [shape: bf16[9,18,384], index: 1, kind: input, shape index: {}]
  %s2 = inlined_call_operand.vmem [shape: f32[1,384], index: 2, kind: input, shape index: {}]
  %s3 = inlined_call_operand.hbm [shape: bf16[2,576,384], index: 3, kind: output, shape index: {}]
  %s4 = sld [smem:[#allocation0]]
  $region128: #{tpu_custom_call.1} parent=0
    _
  %s6 = ssub.s32 1, %s4
  %s7 = scalar_select 0, %s6, %s4
  $region1: #{tpu_custom_call.1} parent=0
    #allocation4 [shape = 'u8[110592]{0}', space=vmem, size = 0x1b000, scoped, tag = 'input window, operand 1']
    #allocation5 [shape = 'u8[73728]{0}', space=vmem, size = 0x12000, scoped, tag = 'output window, operand 0']
    #allocation6 [shape = 's32[2]{0}', space=sflag, size = 0x8, scoped, tag = 'scoped memory for tpu_custom_call.1']
    %8 = vsyncpa [#allocation6], 0
    %s9 = scalar_lea.sflag [#allocation6], 1
    %10 = vsyncpa %s9, 0
    loop: start=0, step=1, limit=26
    $region2: #{tpu_custom_call.1} parent=1 // loop_pre_header
      _
    $region3: #{tpu_custom_call.1} parent=1 // loop_header
      %s12 = sphi 0, %s16
      %p13 = scmp.ge.s32.totalorder %s12, 26
      %s19 = sphi 0, %s38
      %s20 = sphi 0, %s34
      %s21 = sphi 0, %s30
      %s22 = sphi 0, %s19
      %s23 = sphi 0, %s20
      %s24 = sphi 0, %s21
      %s25 = sphi 0, %s22
      %s26 = sphi 0, %s23
      %s27 = sphi 0, %s24
      %s41 = sphi 0, %s43
      %s44 = sphi 0, %s41
      %s45 = sphi 0, %s44
      %s61 = sphi 0, %s45
      %s67 = sphi 0, %s69
      %s70 = sphi 0, %s67
      %s71 = sphi 0, %s70
      %s87 = sphi 0, %s71
      %s97 = sphi 0, %s99
      %s100 = sphi 0, %s97
      %s101 = sphi 0, %s100
      %s117 = sphi 0, %s101
    $region4: #{tpu_custom_call.1} parent=1 // loop_header_branch
      %15 = sbr.rel (%p13) target = $region8
    $region5: #{tpu_custom_call.1} parent=1 // loop_body
      %s17 = ssub.s32 %s12, 1
      %s18 = ssub.s32 %s12, 2
      %s28 = sadd.s32 1, %s21
      %p29 = scmp.ge.s32.totalorder %s28, 3
      %s30 = scalar_select %p29, 0, %s28
      %s31 = sadd.s32 1, %s20
      %s32 = scalar_select %p29, %s31, %s20
      %p33 = scmp.ge.s32.totalorder %s32, 4
      %s34 = scalar_select %p33, 0, %s32
      %s35 = sadd.s32 1, %s19
      %s36 = scalar_select %p33, %s35, %s19
      %p37 = scmp.ge.s32.totalorder %s36, 2
      %s38 = scalar_select %p37, 0, %s36
      %s39 = ssub.s32 %s21, %s30
      %p40 = scmp.eq.s32.totalorder %s39, 0
      %s42 = sadd.s32 %s41, 1
      %s43 = scalar_select %p40, %s41, %s42
      %p46 = pneg %p40
      %p47 = scmp.eq.s32.totalorder %s12, 23
      %p48 = por %p46, %p47
      %p49 = scmp.ne.s32.totalorder %s41, %s44
      %p50 = scmp.eq.s32.totalorder %s12, 0
      %p51 = por %p49, %p50
      %p52 = scmp.ne.s32.totalorder %s41, %s44
      %p53 = scmp.eq.s32.totalorder %s17, 23
      %p54 = por %p52, %p53
      %p55 = scmp.ne.s32.totalorder %s44, %s45
      %p56 = scmp.eq.s32.totalorder %s17, 0
      %p57 = por %p55, %p56
      %p58 = scmp.ne.s32.totalorder %s44, %s45
      %p59 = scmp.eq.s32.totalorder %s18, 23
      %p60 = por %p58, %p59
      %p62 = scmp.ne.s32.totalorder %s45, %s61
      %p63 = scmp.eq.s32.totalorder %s18, 0
      %p64 = por %p62, %p63
      %s65 = ssub.s32 %s21, %s30
      %p66 = scmp.eq.s32.totalorder %s65, 0
      %s68 = sadd.s32 %s67, 1
      %s69 = scalar_select %p66, %s67, %s68
      %p72 = pneg %p66
      %p73 = scmp.eq.s32.totalorder %s12, 23
      %p74 = por %p72, %p73
      %p75 = scmp.ne.s32.totalorder %s67, %s70
      %p76 = scmp.eq.s32.totalorder %s12, 0
      %p77 = por %p75, %p76
      %p78 = scmp.ne.s32.totalorder %s67, %s70
      %p79 = scmp.eq.s32.totalorder %s17, 23
      %p80 = por %p78, %p79
      %p81 = scmp.ne.s32.totalorder %s70, %s71
      %p82 = scmp.eq.s32.totalorder %s17, 0
      %p83 = por %p81, %p82
      %p84 = scmp.ne.s32.totalorder %s70, %s71
      %p85 = scmp.eq.s32.totalorder %s18, 23
      %p86 = por %p84, %p85
      %p88 = scmp.ne.s32.totalorder %s71, %s87
      %p89 = scmp.eq.s32.totalorder %s18, 0
      %p90 = por %p88, %p89
      %s91 = ssub.s32 %s19, %s38
      %s92 = ssub.s32 %s20, %s34
      %s93 = sor.u32 %s91, %s92
      %s94 = ssub.s32 %s21, %s30
      %s95 = sor.u32 %s93, %s94
      %p96 = scmp.eq.s32.totalorder %s95, 0
      %s98 = sadd.s32 %s97, 1
      %s99 = scalar_select %p96, %s97, %s98
      %p102 = pneg %p96
      %p103 = scmp.eq.s32.totalorder %s12, 23
      %p104 = por %p102, %p103
      %p105 = scmp.ne.s32.totalorder %s97, %s100
      %p106 = scmp.eq.s32.totalorder %s12, 0
      %p107 = por %p105, %p106
      %p108 = scmp.ne.s32.totalorder %s97, %s100
      %p109 = scmp.eq.s32.totalorder %s17, 23
      %p110 = por %p108, %p109
      %p111 = scmp.ne.s32.totalorder %s100, %s101
      %p112 = scmp.eq.s32.totalorder %s17, 0
      %p113 = por %p111, %p112
      %p114 = scmp.ne.s32.totalorder %s100, %s101
      %p115 = scmp.eq.s32.totalorder %s18, 23
      %p116 = por %p114, %p115
      %p118 = scmp.ne.s32.totalorder %s101, %s117
      %p119 = scmp.eq.s32.totalorder %s18, 0
      %p120 = por %p118, %p119
      %p121 = scmp.le.s32.totalorder 1, %s12
      %p122 = scmp.lt.s32.totalorder %s12, 25
      %p123 = pnand %p121, %p122
      %p124 = pneg %p123
      // Predicated region
      $region9: #{tpu_custom_call.1} parent=5 // pred_check
        _
      $region10: #{tpu_custom_call.1} parent=5 // pred_check_branch
        %126 = sbr.rel (%p123) target = $region12
      $region11: #{tpu_custom_call.1} parent=5 // pred_region
        %s127 = ssub.s32 %s12, 1
      $region12: #{tpu_custom_call.1} parent=5 // pred_fallthru
        _
      %p128 = scmp.lt.s32.totalorder %s12, 24
      // Predicated region
      $region13: #{tpu_custom_call.1} parent=5 // pred_check
        %p129 = pneg %p128
      $region14: #{tpu_custom_call.1} parent=5 // pred_check_branch
        %131 = sbr.rel (%p129) target = $region16
      $region15: #{tpu_custom_call.1} parent=5 // pred_region
        // Predicated region
        $region17: #{tpu_custom_call.1} parent=15 // pred_check
          %p132 = pneg %p51
        $region18: #{tpu_custom_call.1} parent=15 // pred_check_branch
          %134 = sbr.rel (%p132) target = $region20
        $region19: #{tpu_custom_call.1} parent=15 // pred_region
          %s135 = sand.u32 %s41, 1
          %s136 = sand.u32 %s41, 1
          %s137 = smul.addr %s136, 108
          %s138 = scalar_lea.vmem [#allocation4], %s137
          %s139 = smul.addr %s21, 4
          %s140 = scalar_lea.vmem %s1, %s139
          // Predicated region
          $region21: #{tpu_custom_call.1} parent=19 // pred_check
            _
          $region22: #{tpu_custom_call.1} parent=19 // pred_check_branch
            %142 = sbr.rel (0) target = $region24
          $region23: #{tpu_custom_call.1} parent=19 // pred_region
            // Predicated region
            $region25: #{tpu_custom_call.1} parent=23 // pred_check
              _
            $region26: #{tpu_custom_call.1} parent=23 // pred_check_branch
              %144 = sbr.rel target = $region28
            $region27: #{tpu_custom_call.1} parent=23 // pred_region
              // Predicated region
              $region40: #{tpu_custom_call.1} parent=27 // pred_check
                _
              $region41: #{tpu_custom_call.1} parent=27 // pred_check_branch
                %211 = sbr.rel (0) target = $region43
              $region42: #{tpu_custom_call.1} parent=27 // pred_region
                loop: start=0, step=1, limit=1
                $region44: #{tpu_custom_call.1} parent=42 // loop_pre_header
                  _
                $region45: #{tpu_custom_call.1} parent=42 // loop_header
                  %s213 = sphi 0, %s217
                  %p214 = scmp.ge.s32.totalorder %s213, 1
                  %s218 = sphi %s140, %s140
                  %s219 = sphi %s138, %s138
                $region46: #{tpu_custom_call.1} parent=42 // loop_header_branch
                  %216 = sbr.rel (%p214) target = $region50
                $region47: #{tpu_custom_call.1} parent=42 // loop_body
                  _
                $region48: #{tpu_custom_call.1} parent=42 // loop_footer
                  %s217 = sadd.s32 1, %s213
                $region49: #{tpu_custom_call.1} parent=42 // loop_footer_branch
                  %212 = sbr.rel target = $region45
                $region50: #{tpu_custom_call.1} parent=42 // loop_exit
                  _
                loop: start=0, step=1, limit=1
                $region51: #{tpu_custom_call.1} parent=42 // loop_pre_header
                  _
                $region52: #{tpu_custom_call.1} parent=42 // loop_header
                  %s222 = sphi 0, %s226
                  %p223 = scmp.ge.s32.totalorder %s222, 1
                  %s227 = sphi %s140, %s140
                  %s228 = sphi %s138, %s138
                $region53: #{tpu_custom_call.1} parent=42 // loop_header_branch
                  %225 = sbr.rel (%p223) target = $region57
                $region54: #{tpu_custom_call.1} parent=42 // loop_body
                  %v229 = vld [vmem:[%s227] sm:$0xf]
                  %230 = vst [vmem:[%s228] sm:$0xf] %v229
                  %v231 = vld [vmem:[%s227 + $0xc] sm:$0xf]
                  %232 = vst [vmem:[%s228 + $0x4] sm:$0xf] %v231
                  %v233 = vld [vmem:[%s227 + $0x18] sm:$0xf]
                  %234 = vst [vmem:[%s228 + $0x8] sm:$0xf] %v233
                  %v235 = vld [vmem:[%s227 + $0x24] sm:$0xf]
                  %236 = vst [vmem:[%s228 + $0xc] sm:$0xf] %v235
                  %v237 = vld [vmem:[%s227 + $0x30] sm:$0xf]
                  %238 = vst [vmem:[%s228 + $0x10] sm:$0xf] %v237
                  %v239 = vld [vmem:[%s227 + $0x3c] sm:$0xf]
                  %240 = vst [vmem:[%s228 + $0x14] sm:$0xf] %v239
                  %v241 = vld [vmem:[%s227 + $0x48] sm:$0xf]
                  %242 = vst [vmem:[%s228 + $0x18] sm:$0xf] %v241
                  %v243 = vld [vmem:[%s227 + $0x54] sm:$0xf]
                  %244 = vst [vmem:[%s228 + $0x1c] sm:$0xf] %v243
                  %v245 = vld [vmem:[%s227 + $0x60] sm:$0xf]
                  %246 = vst [vmem:[%s228 + $0x20] sm:$0xf] %v245
                  %v247 = vld [vmem:[%s227 + $0x6c] sm:$0xf]
                  %248 = vst [vmem:[%s228 + $0x24] sm:$0xf] %v247
                  %v249 = vld [vmem:[%s227 + $0x78] sm:$0xf]
                  %250 = vst [vmem:[%s228 + $0x28] sm:$0xf] %v249
                  %v251 = vld [vmem:[%s227 + $0x84] sm:$0xf]
                  %252 = vst [vmem:[%s228 + $0x2c] sm:$0xf] %v251
                  %v253 = vld [vmem:[%s227 + $0x90] sm:$0xf]
                  %254 = vst [vmem:[%s228 + $0x30] sm:$0xf] %v253
                  %v255 = vld [vmem:[%s227 + $0x9c] sm:$0xf]
                  %256 = vst [vmem:[%s228 + $0x34] sm:$0xf] %v255
                  %v257 = vld [vmem:[%s227 + $0xa8] sm:$0xf]
                  %258 = vst [vmem:[%s228 + $0x38] sm:$0xf] %v257
                  %v259 = vld [vmem:[%s227 + $0xb4] sm:$0xf]
                  %260 = vst [vmem:[%s228 + $0x3c] sm:$0xf] %v259
                  %v261 = vld [vmem:[%s227 + $0xc0] sm:$0xf]
                  %262 = vst [vmem:[%s228 + $0x40] sm:$0xf] %v261
                  %v263 = vld [vmem:[%s227 + $0xcc] sm:$0xf]
                  %264 = vst [vmem:[%s228 + $0x44] sm:$0xf] %v263
                  %v265 = vld [vmem:[%s227 + $0xd8] sm:$0xf]
                  %266 = vst [vmem:[%s228 + $0x48] sm:$0xf] %v265
                  %v267 = vld [vmem:[%s227 + $0xe4] sm:$0xf]
                  %268 = vst [vmem:[%s228 + $0x4c] sm:$0xf] %v267
                  %v269 = vld [vmem:[%s227 + $0xf0] sm:$0xf]
                  %270 = vst [vmem:[%s228 + $0x50] sm:$0xf] %v269
                  %v271 = vld [vmem:[%s227 + $0xfc] sm:$0xf]
                  %272 = vst [vmem:[%s228 + $0x54] sm:$0xf] %v271
                  %v273 = vld [vmem:[%s227 + $0x108] sm:$0xf]
                  %274 = vst [vmem:[%s228 + $0x58] sm:$0xf] %v273
                  %v275 = vld [vmem:[%s227 + $0x114] sm:$0xf]
                  %276 = vst [vmem:[%s228 + $0x5c] sm:$0xf] %v275
                  %v277 = vld [vmem:[%s227 + $0x120] sm:$0xf]
                  %278 = vst [vmem:[%s228 + $0x60] sm:$0xf] %v277
                  %v279 = vld [vmem:[%s227 + $0x12c] sm:$0xf]
                  %280 = vst [vmem:[%s228 + $0x64] sm:$0xf] %v279
                  %v281 = vld [vmem:[%s227 + $0x138] sm:$0xf]
                  %282 = vst [vmem:[%s228 + $0x68] sm:$0xf] %v281
                $region55: #{tpu_custom_call.1} parent=42 // loop_footer
                  %s226 = sadd.s32 1, %s222
                $region56: #{tpu_custom_call.1} parent=42 // loop_footer_branch
                  %221 = sbr.rel target = $region52
                $region57: #{tpu_custom_call.1} parent=42 // loop_exit
                  _
              $region43: #{tpu_custom_call.1} parent=27 // pred_fallthru
                _
            $region28: #{tpu_custom_call.1} parent=23 // pred_fallthru
              _
            // Predicated region
            $region29: #{tpu_custom_call.1} parent=23 // pred_check
              _
            $region30: #{tpu_custom_call.1} parent=23 // pred_check_branch
              %146 = sbr.rel (0) target = $region32
            $region31: #{tpu_custom_call.1} parent=23 // pred_region
              loop: start=0, step=1, limit=1
              $region33: #{tpu_custom_call.1} parent=31 // loop_pre_header
                _
              $region34: #{tpu_custom_call.1} parent=31 // loop_header
                %s149 = sphi 0, %s153
                %p150 = scmp.ge.s32.totalorder %s149, 1
                %s154 = sphi %s140, %s140
                %s155 = sphi %s138, %s138
              $region35: #{tpu_custom_call.1} parent=31 // loop_header_branch
                %152 = sbr.rel (%p150) target = $region39
              $region36: #{tpu_custom_call.1} parent=31 // loop_body
                %v156 = vld [vmem:[%s154] sm:$0xf]
                %157 = vst [vmem:[%s155] sm:$0xf] %v156
                %v158 = vld [vmem:[%s154 + $0xc] sm:$0xf]
                %159 = vst [vmem:[%s155 + $0x4] sm:$0xf] %v158
                %v160 = vld [vmem:[%s154 + $0x18] sm:$0xf]
                %161 = vst [vmem:[%s155 + $0x8] sm:$0xf] %v160
                %v162 = vld [vmem:[%s154 + $0x24] sm:$0xf]
                %163 = vst [vmem:[%s155 + $0xc] sm:$0xf] %v162
                %v164 = vld [vmem:[%s154 + $0x30] sm:$0xf]
                %165 = vst [vmem:[%s155 + $0x10] sm:$0xf] %v164
                %v166 = vld [vmem:[%s154 + $0x3c] sm:$0xf]
                %167 = vst [vmem:[%s155 + $0x14] sm:$0xf] %v166
                %v168 = vld [vmem:[%s154 + $0x48] sm:$0xf]
                %169 = vst [vmem:[%s155 + $0x18] sm:$0xf] %v168
                %v170 = vld [vmem:[%s154 + $0x54] sm:$0xf]
                %171 = vst [vmem:[%s155 + $0x1c] sm:$0xf] %v170
                %v172 = vld [vmem:[%s154 + $0x60] sm:$0xf]
                %173 = vst [vmem:[%s155 + $0x20] sm:$0xf] %v172
                %v174 = vld [vmem:[%s154 + $0x6c] sm:$0xf]
                %175 = vst [vmem:[%s155 + $0x24] sm:$0xf] %v174
                %v176 = vld [vmem:[%s154 + $0x78] sm:$0xf]
                %177 = vst [vmem:[%s155 + $0x28] sm:$0xf] %v176
                %v178 = vld [vmem:[%s154 + $0x84] sm:$0xf]
                %179 = vst [vmem:[%s155 + $0x2c] sm:$0xf] %v178
                %v180 = vld [vmem:[%s154 + $0x90] sm:$0xf]
                %181 = vst [vmem:[%s155 + $0x30] sm:$0xf] %v180
                %v182 = vld [vmem:[%s154 + $0x9c] sm:$0xf]
                %183 = vst [vmem:[%s155 + $0x34] sm:$0xf] %v182
                %v184 = vld [vmem:[%s154 + $0xa8] sm:$0xf]
                %185 = vst [vmem:[%s155 + $0x38] sm:$0xf] %v184
                %v186 = vld [vmem:[%s154 + $0xb4] sm:$0xf]
                %187 = vst [vmem:[%s155 + $0x3c] sm:$0xf] %v186
                %v188 = vld [vmem:[%s154 + $0xc0] sm:$0xf]
                %189 = vst [vmem:[%s155 + $0x40] sm:$0xf] %v188
                %v190 = vld [vmem:[%s154 + $0xcc] sm:$0xf]
                %191 = vst [vmem:[%s155 + $0x44] sm:$0xf] %v190
                %v192 = vld [vmem:[%s154 + $0xd8] sm:$0xf]
                %193 = vst [vmem:[%s155 + $0x48] sm:$0xf] %v192
                %v194 = vld [vmem:[%s154 + $0xe4] sm:$0xf]
                %195 = vst [vmem:[%s155 + $0x4c] sm:$0xf] %v194
                %v196 = vld [vmem:[%s154 + $0xf0] sm:$0xf]
                %197 = vst [vmem:[%s155 + $0x50] sm:$0xf] %v196
                %v198 = vld [vmem:[%s154 + $0xfc] sm:$0xf]
                %199 = vst [vmem:[%s155 + $0x54] sm:$0xf] %v198
                %v200 = vld [vmem:[%s154 + $0x108] sm:$0xf]
                %201 = vst [vmem:[%s155 + $0x58] sm:$0xf] %v200
                %v202 = vld [vmem:[%s154 + $0x114] sm:$0xf]
                %203 = vst [vmem:[%s155 + $0x5c] sm:$0xf] %v202
                %v204 = vld [vmem:[%s154 + $0x120] sm:$0xf]
                %205 = vst [vmem:[%s155 + $0x60] sm:$0xf] %v204
                %v206 = vld [vmem:[%s154 + $0x12c] sm:$0xf]
                %207 = vst [vmem:[%s155 + $0x64] sm:$0xf] %v206
                %v208 = vld [vmem:[%s154 + $0x138] sm:$0xf]
                %209 = vst [vmem:[%s155 + $0x68] sm:$0xf] %v208
              $region37: #{tpu_custom_call.1} parent=31 // loop_footer
                %s153 = sadd.s32 1, %s149
              $region38: #{tpu_custom_call.1} parent=31 // loop_footer_branch
                %148 = sbr.rel target = $region34
              $region39: #{tpu_custom_call.1} parent=31 // loop_exit
                _
            $region32: #{tpu_custom_call.1} parent=23 // pred_fallthru
              _
          $region24: #{tpu_custom_call.1} parent=19 // pred_fallthru
            _
          %283 = vnop
        $region20: #{tpu_custom_call.1} parent=15 // pred_fallthru
          _
        // Predicated region
        $region58: #{tpu_custom_call.1} parent=15 // pred_check
          %p284 = pneg %p77
        $region59: #{tpu_custom_call.1} parent=15 // pred_check_branch
          %286 = sbr.rel (%p284) target = $region61
        $region60: #{tpu_custom_call.1} parent=15 // pred_region
          %p287 = scmp.lt.s32.totalorder %s21, 2
          %s288 = scalar_select %p287, %s21, 2
          %s289 = scalar_lea.vmem %s2, %s288
        $region61: #{tpu_custom_call.1} parent=15 // pred_fallthru
          _
      $region16: #{tpu_custom_call.1} parent=5 // pred_fallthru
        _
      %p290 = scmp.le.s32.totalorder 1, %s12
      %p291 = scmp.lt.s32.totalorder %s12, 25
      %p292 = pnand %p290, %p291
      %p293 = pneg %p292
      // Predicated region
      $region62: #{tpu_custom_call.1} parent=5 // pred_check
        _
      $region63: #{tpu_custom_call.1} parent=5 // pred_check_branch
        %295 = sbr.rel (%p292) target = $region65
      $region64: #{tpu_custom_call.1} parent=5 // pred_region
        %s296 = ssub.s32 %s12, 1
        %s297 = sand.u32 %s44, 1
        %s298 = sand.u32 %s44, 1
        %s299 = smul.addr %s298, 108
        %s300 = scalar_lea.vmem [#allocation4], %s299
        // Predicated region
        $region66: #{tpu_custom_call.1} parent=64 // pred_check
          %p301 = pneg %p57
        $region67: #{tpu_custom_call.1} parent=64 // pred_check_branch
          %303 = sbr.rel (%p301) target = $region69
        $region68: #{tpu_custom_call.1} parent=64 // pred_region
          _
        $region69: #{tpu_custom_call.1} parent=64 // pred_fallthru
          _
        %s304 = sand.u32 %s44, 1
        %s305 = sand.u32 %s44, 1
        %s306 = smul.addr %s305, 108
        %s307 = scalar_lea.vmem [#allocation4], %s306
        %p308 = pneg %p57
        %p309 = pneg %p54
        %p310 = scmp.lt.s32.totalorder %s24, 2
        %s311 = scalar_select %p310, %s24, 2
        %s312 = scalar_lea.vmem %s2, %s311
        %p313 = pneg %p83
        %p314 = pneg %p80
        %p315 = pneg %p113
        %p316 = pneg %p110
        %s317 = sand.u32 %s100, 1
        %s318 = scalar_lea.sflag [#allocation6], %s317
        %s319 = sand.u32 %s100, 1
        %s320 = smul.addr %s319, 72
        %s321 = scalar_lea.vmem [#allocation5], %s320
        %p322 = scmp.lt.s32.totalorder %s24, 2
        %s323 = scalar_select %p322, %s24, 2
        %s324 = scalar_lea.vmem %s2, %s323
        %s325 = smul.u32 18, %s23
        %p327 = scmp.eq.s32.totalorder %s23, 0
        %p328 = scmp.eq.s32.totalorder %s23, 3
        %p329 = por %p327, %p328
        // Predicated region
        $region70: #{tpu_custom_call.1} parent=64 // pred_check
          %p330 = pneg %p329
        $region71: #{tpu_custom_call.1} parent=64 // pred_check_branch
          %332 = sbr.rel (%p330) target = $region73
        $region72: #{tpu_custom_call.1} parent=64 // pred_region
          %333 = vst [vmem:[%s321] sm:$0xf] 0
          %334 = vst [vmem:[%s321 + $0x4] sm:$0xf] 0
          %335 = vst [vmem:[%s321 + $0x8] sm:$0xf] 0
          %336 = vst [vmem:[%s321 + $0xc] sm:$0xf] 0
          %337 = vst [vmem:[%s321 + $0x10] sm:$0xf] 0
          %338 = vst [vmem:[%s321 + $0x14] sm:$0xf] 0
          %339 = vst [vmem:[%s321 + $0x18] sm:$0xf] 0
          %340 = vst [vmem:[%s321 + $0x1c] sm:$0xf] 0
          %341 = vst [vmem:[%s321 + $0x20] sm:$0xf] 0
          %342 = vst [vmem:[%s321 + $0x24] sm:$0xf] 0
          %343 = vst [vmem:[%s321 + $0x28] sm:$0xf] 0
          %344 = vst [vmem:[%s321 + $0x2c] sm:$0xf] 0
          %345 = vst [vmem:[%s321 + $0x30] sm:$0xf] 0
          %346 = vst [vmem:[%s321 + $0x34] sm:$0xf] 0
          %347 = vst [vmem:[%s321 + $0x38] sm:$0xf] 0
          %348 = vst [vmem:[%s321 + $0x3c] sm:$0xf] 0
          %349 = vst [vmem:[%s321 + $0x40] sm:$0xf] 0
          %350 = vst [vmem:[%s321 + $0x44] sm:$0xf] 0
        $region73: #{tpu_custom_call.1} parent=64 // pred_fallthru
          _
        %p351 = pneg %p329
        // Predicated region
        $region74: #{tpu_custom_call.1} parent=64 // pred_check
          _
        $region75: #{tpu_custom_call.1} parent=64 // pred_check_branch
          %353 = sbr.rel (%p329) target = $region77
        $region76: #{tpu_custom_call.1} parent=64 // pred_region
          %p354 = scmp.eq.s32.totalorder %s24, 0
          // Predicated region
          $region78: #{tpu_custom_call.1} parent=76 // pred_check
            %p355 = pneg %p354
          $region79: #{tpu_custom_call.1} parent=76 // pred_check_branch
            %357 = sbr.rel (%p355) target = $region81
          $region80: #{tpu_custom_call.1} parent=76 // pred_region
            %s358 = smul.u32 %s22, 4
            %s359 = sadd.s32 %s358, %s23
            %s360 = smul.u32 %s359, 144
            %s361 = ssub.s32 %s360, 32
            %s362 = sshra.s32 %s361, 3
            %s363 = sand.u32 %s361, 7
            %s364 = smul.addr %s362, 4
            %s365 = scalar_lea.vmem %s0, %s364
            %p367 = scmp.lt.u32.totalorder 104, 8
            %p368 = pneg %p367
            // Predicated region
            $region82: #{tpu_custom_call.1} parent=80 // pred_check
              _
            $region83: #{tpu_custom_call.1} parent=80 // pred_check_branch
              %370 = sbr.rel (%p367) target = $region85
            $region84: #{tpu_custom_call.1} parent=80 // pred_region
              %s385 = sand.u32 104, 7
              %p386 = scmp.eq.s32.totalorder %s385, 0
              // Predicated region
              $region97: #{tpu_custom_call.1} parent=84 // pred_check
                %p387 = pneg %p386
              $region98: #{tpu_custom_call.1} parent=84 // pred_check_branch
                %389 = sbr.rel (%p387) target = $region100
              $region99: #{tpu_custom_call.1} parent=84 // pred_region
                loop: start=0, step=1, limit=1
                $region101: #{tpu_custom_call.1} parent=99 // loop_pre_header
                  _
                $region102: #{tpu_custom_call.1} parent=99 // loop_header
                  %s391 = sphi 0, %s395
                  %p392 = scmp.ge.s32.totalorder %s391, 1
                  %s396 = sphi %s365, %s365
                  %s397 = sphi [#allocation2], [#allocation2]
                $region103: #{tpu_custom_call.1} parent=99 // loop_header_branch
                  %394 = sbr.rel (%p392) target = $region107
                $region104: #{tpu_custom_call.1} parent=99 // loop_body
                  %v398 = vld [vmem:[%s396] sm:$0xff]
                  %399 = vst [vmem:[%s397] sm:$0xff] %v398
                  %v400 = vld [vmem:[%s396 + $0x8] sm:$0xff]
                  %401 = vst [vmem:[%s397 + $0x8] sm:$0xff] %v400
                  %v402 = vld [vmem:[%s396 + $0x10] sm:$0xff]
                  %403 = vst [vmem:[%s397 + $0x10] sm:$0xff] %v402
                  %v404 = vld [vmem:[%s396 + $0x18] sm:$0xff]
                  %405 = vst [vmem:[%s397 + $0x18] sm:$0xff] %v404
                  %v406 = vld [vmem:[%s396 + $0x20] sm:$0xff]
                  %407 = vst [vmem:[%s397 + $0x20] sm:$0xff] %v406
                  %v408 = vld [vmem:[%s396 + $0x28] sm:$0xff]
                  %409 = vst [vmem:[%s397 + $0x28] sm:$0xff] %v408
                  %v410 = vld [vmem:[%s396 + $0x30] sm:$0xff]
                  %411 = vst [vmem:[%s397 + $0x30] sm:$0xff] %v410
                  %v412 = vld [vmem:[%s396 + $0x38] sm:$0xff]
                  %413 = vst [vmem:[%s397 + $0x38] sm:$0xff] %v412
                  %v414 = vld [vmem:[%s396 + $0x40] sm:$0xff]
                  %415 = vst [vmem:[%s397 + $0x40] sm:$0xff] %v414
                  %v416 = vld [vmem:[%s396 + $0x48] sm:$0xff]
                  %417 = vst [vmem:[%s397 + $0x48] sm:$0xff] %v416
                  %v418 = vld [vmem:[%s396 + $0x50] sm:$0xff]
                  %419 = vst [vmem:[%s397 + $0x50] sm:$0xff] %v418
                  %v420 = vld [vmem:[%s396 + $0x58] sm:$0xff]
                  %421 = vst [vmem:[%s397 + $0x58] sm:$0xff] %v420
                  %v422 = vld [vmem:[%s396 + $0x60] sm:$0xff]
                  %423 = vst [vmem:[%s397 + $0x60] sm:$0xff] %v422
                $region105: #{tpu_custom_call.1} parent=99 // loop_footer
                  %s395 = sadd.s32 1, %s391
                $region106: #{tpu_custom_call.1} parent=99 // loop_footer_branch
                  %390 = sbr.rel target = $region102
                $region107: #{tpu_custom_call.1} parent=99 // loop_exit
                  _
              $region100: #{tpu_custom_call.1} parent=84 // pred_fallthru
                _
              %p424 = pneg %p386
              // Predicated region
              $region108: #{tpu_custom_call.1} parent=84 // pred_check
                _
              $region109: #{tpu_custom_call.1} parent=84 // pred_check_branch
                %426 = sbr.rel (%p386) target = $region111
              $region110: #{tpu_custom_call.1} parent=84 // pred_region
                %s427 = sand.u32 104, 7
              $region111: #{tpu_custom_call.1} parent=84 // pred_fallthru
                _
            $region85: #{tpu_custom_call.1} parent=80 // pred_fallthru
              _
            // Predicated region
            $region86: #{tpu_custom_call.1} parent=80 // pred_check
              %p371 = pneg %p367
            $region87: #{tpu_custom_call.1} parent=80 // pred_check_branch
              %373 = sbr.rel (%p371) target = $region89
            $region88: #{tpu_custom_call.1} parent=80 // pred_region
              %s374 = sshllo.u32 0, 104
              loop: start=0, step=1, limit=1
              $region90: #{tpu_custom_call.1} parent=88 // loop_pre_header
                _
              $region91: #{tpu_custom_call.1} parent=88 // loop_header
                %s376 = sphi 0, %s380
                %p377 = scmp.ge.s32.totalorder %s376, 1
                %s381 = sphi %s365, %s365
                %s382 = sphi [#allocation2], [#allocation2]
              $region92: #{tpu_custom_call.1} parent=88 // loop_header_branch
                %379 = sbr.rel (%p377) target = $region96
              $region93: #{tpu_custom_call.1} parent=88 // loop_body
                %v383 = vld [vmem:[%s381] sm:%s374]
                %384 = vst [vmem:[%s382] sm:%s374] %v383
              $region94: #{tpu_custom_call.1} parent=88 // loop_footer
                %s380 = sadd.s32 1, %s376
              $region95: #{tpu_custom_call.1} parent=88 // loop_footer_branch
                %375 = sbr.rel target = $region91
              $region96: #{tpu_custom_call.1} parent=88 // loop_exit
                _
            $region89: #{tpu_custom_call.1} parent=80 // pred_fallthru
              _
            // Predicated region
            $region112: #{tpu_custom_call.1} parent=80 // pred_check
              _
            $region113: #{tpu_custom_call.1} parent=80 // pred_check_branch
              %430 = sbr.rel (0) target = $region115
            $region114: #{tpu_custom_call.1} parent=80 // pred_region
              %431 = vsyncadd [#allocation3], 1664
            $region115: #{tpu_custom_call.1} parent=80 // pred_fallthru
              _
            %s432 = smul.u32 4, 26
            %s433 = smul.u32 %s432, 1
            %s434 = sshll.u32 %s433, 4
            %435 = dma.done [#allocation3], %s434
          $region81: #{tpu_custom_call.1} parent=76 // pred_fallthru
            _
          %v436 = vld [vmem:[#allocation2] sm:$0xc0]
          %v437 = vld [vmem:[#allocation2 + $0x8] sm:$0xff]
          %v438 = vld [vmem:[#allocation2 + $0x10] sm:$0xff]
          %v439 = vld [vmem:[#allocation2 + $0x18] sm:$0xff]
          %v440 = vld [vmem:[#allocation2 + $0x20] sm:$0xff]
          %v441 = vld [vmem:[#allocation2 + $0x28] sm:$0xff]
          %v442 = vld [vmem:[#allocation2 + $0x30] sm:$0xff]
          %v443 = vld [vmem:[#allocation2 + $0x38] sm:$0xff]
          %v444 = vld [vmem:[#allocation2 + $0x40] sm:$0xff]
          %v445 = vld [vmem:[#allocation2 + $0x48] sm:$0x7f]
          %v446 = vld [vmem:[%s300] sm:$0xf]
          %v447 = vld [vmem:[%s300 + $0x4] sm:$0xf]
          %v448 = vld [vmem:[%s300 + $0x8] sm:$0x1]
          %v449 = vld [vmem:[#allocation2] sm:$0x80]
          %s450 = scalar_lea.vmem %s300, 12 [#allocation4]
          %v451 = vld [vmem:[%s450] sm:$0xf]
          %v452 = vld [vmem:[%s450 + $0x4] sm:$0xf]
          %v453 = vld [vmem:[%s450 + $0x8] sm:$0x1]
          %vm464 = vcmask 1040384
          %v465 = vrot.slane %v449, 7
          %v466 = vrot.slane %v437, 7
          %v467 = vsel %vm464, %v465, %v466
          %v468 = vrot.slane %v438, 7
          %v469 = vsel %vm464, %v466, %v468
          %v470 = vrot.slane %v439, 7
          %v471 = vsel %vm464, %v468, %v470
          %v472 = vrot.slane %v440, 7
          %v473 = vsel %vm464, %v470, %v472
          %v474 = vrot.slane %v441, 7
          %v475 = vsel %vm464, %v472, %v474
          %v476 = vrot.slane %v442, 7
          %v477 = vsel %vm464, %v474, %v476
          %v478 = vrot.slane %v443, 7
          %v479 = vsel %vm464, %v476, %v478
          %v480 = vrot.slane %v444, 7
          %v481 = vsel %vm464, %v478, %v480
          %v482 = vrot.slane %v445, 7
          %v483 = vsel %vm464, %v480, %v482
          %v487 = vunpack.c.l.b16 %v451
          %v488 = vunpack.c.l.b16 %v452
          %v489 = vunpack.c.l.b16 %v453
          %v490 = vpack.c.b16 %v488, %v487
          %v491 = vpack.c.b16 %v489, %v489
          %vm493 = vcmask 146432
          %v495 = vsel %vm493, %v467, 0
          %v498 = vsel %vm493, %v469, 0
          %v501 = vsel %vm493, %v471, 0
          %v504 = vsel %vm493, %v473, 0
          %v507 = vsel %vm493, %v475, 0
          %v510 = vsel %vm493, %v477, 0
          %v513 = vsel %vm493, %v479, 0
          %v516 = vsel %vm493, %v481, 0
          %v519 = vsel %vm493, %v483, 0
          %vm521 = vcmask 1040384
          %v523 = vsel %vm521, %v491, 0
          %525 = vmatprep.subr.bf16.mxu0 0
          %526 = vmatpush1.bf16.msra.mxu0 %v490
          %527 = vmatprep.subr.bf16.mxu0 0
          %528 = vmatpush1.bf16.msra.mxu0 %v523
          %529 = vmatprep.subr.bf16.mxu0 0
          %530 = vmatpush1.bf16.msra.mxu0 0
          %531 = vmatprep.subr.bf16.mxu0 0
          %532 = vmatpush1.bf16.msra.mxu0 0
          %533 = vmatprep.subr.bf16.mxu0 0
          %534 = vmatpush1.bf16.msra.mxu0 0
          %535 = vmatprep.subr.bf16.mxu0 0
          %536 = vmatpush1.bf16.msra.mxu0 0
          %537 = vmatprep.subr.bf16.mxu0 0
          %538 = vmatpush1.bf16.msra.mxu0 0
          %539 = vmatprep.subr.bf16.mxu0 0
          %540 = vmatpush1.bf16.msra.mxu0 0
          %541 = vmatprep.subr.bf16.mxu0 0
          %542 = vmatpush1.bf16.msra.mxu0 0
          %543 = vmatprep.subr.bf16.mxu0 0
          %544 = vmatpush1.bf16.msra.mxu0 0
          %545 = vmatprep.subr.bf16.mxu0 0
          %546 = vmatpush1.bf16.msra.mxu0 0
          %547 = vmatprep.subr.bf16.mxu0 0
          %548 = vmatpush1.bf16.msra.mxu0 0
          %549 = vmatprep.subr.bf16.mxu0 0
          %550 = vmatpush1.bf16.msra.mxu0 0
          %551 = vmatprep.subr.bf16.mxu0 0
          %552 = vmatpush1.bf16.msra.mxu0 0
          %553 = vmatprep.subr.bf16.mxu0 0
          %554 = vmatpush1.bf16.msra.mxu0 0
          %555 = vmatprep.subr.bf16.mxu0 0
          %556 = vmatpush1.bf16.msra.mxu0 0
          %557 = vmatprep.mubr.bf16.mxu0 0
          %558 = vmatmul.mubr.bf16.gmra.mrb[0].mxu0 %v495
          %v559 = vpop.f32.mrb[0].mxu0
          %v560 = vadd.f32 0.0, %v559
          %v561 = vpop.f32.mrb[0].mxu0
          %v562 = vpop.f32.mrb[0].mxu0
          %v563 = vadd.f32 0.0, %v562
          %v564 = vpop.f32.mrb[0].mxu0
          %565 = vmatprep.mubr.bf16.mxu0 0
          %566 = vmatmul.mubr.bf16.gmra.mrb[0].mxu0 %v498
          %v567 = vpop.f32.mrb[0].mxu0
          %v568 = vadd.f32 0.0, %v567
          %v569 = vpop.f32.mrb[0].mxu0
          %v570 = vpop.f32.mrb[0].mxu0
          %v571 = vadd.f32 0.0, %v570
          %v572 = vpop.f32.mrb[0].mxu0
          %573 = vmatprep.mubr.bf16.mxu0 0
          %574 = vmatmul.mubr.bf16.gmra.mrb[0].mxu0 %v501
          %v575 = vpop.f32.mrb[0].mxu0
          %v576 = vadd.f32 0.0, %v575
          %v577 = vpop.f32.mrb[0].mxu0
          %v578 = vpop.f32.mrb[0].mxu0
          %v579 = vadd.f32 0.0, %v578
          %v580 = vpop.f32.mrb[0].mxu0
          %581 = vmatprep.mubr.bf16.mxu0 0
          %582 = vmatmul.mubr.bf16.gmra.mrb[0].mxu0 %v504
          %v583 = vpop.f32.mrb[0].mxu0
          %v584 = vadd.f32 0.0, %v583
          %v585 = vpop.f32.mrb[0].mxu0
          %v586 = vpop.f32.mrb[0].mxu0
          %v587 = vadd.f32 0.0, %v586
          %v588 = vpop.f32.mrb[0].mxu0
          %589 = vmatprep.mubr.bf16.mxu0 0
          %590 = vmatmul.mubr.bf16.gmra.mrb[0].mxu0 %v507
          %v591 = vpop.f32.mrb[0].mxu0
          %v592 = vadd.f32 0.0, %v591
          %v593 = vpop.f32.mrb[0].mxu0
          %v594 = vpop.f32.mrb[0].mxu0
          %v595 = vadd.f32 0.0, %v594
          %v596 = vpop.f32.mrb[0].mxu0
          %597 = vmatprep.mubr.bf16.mxu0 0
          %598 = vmatmul.mubr.bf16.gmra.mrb[0].mxu0 %v510
          %v599 = vpop.f32.mrb[0].mxu0
          %v600 = vadd.f32 0.0, %v599
          %v601 = vpop.f32.mrb[0].mxu0
          %v602 = vpop.f32.mrb[0].mxu0
          %v603 = vadd.f32 0.0, %v602
          %v604 = vpop.f32.mrb[0].mxu0
          %605 = vmatprep.mubr.bf16.mxu0 0
          %606 = vmatmul.mubr.bf16.gmra.mrb[0].mxu0 %v513
          %v607 = vpop.f32.mrb[0].mxu0
          %v608 = vadd.f32 0.0, %v607
          %v609 = vpop.f32.mrb[0].mxu0
          %v610 = vpop.f32.mrb[0].mxu0
          %v611 = vadd.f32 0.0, %v610
          %v612 = vpop.f32.mrb[0].mxu0
          %613 = vmatprep.mubr.bf16.mxu0 0
          %614 = vmatmul.mubr.bf16.gmra.mrb[0].mxu0 %v516
          %v615 = vpop.f32.mrb[0].mxu0
          %v616 = vadd.f32 0.0, %v615
          %v617 = vpop.f32.mrb[0].mxu0
          %v618 = vpop.f32.mrb[0].mxu0
          %v619 = vadd.f32 0.0, %v618
          %v620 = vpop.f32.mrb[0].mxu0
          %621 = vmatprep.mubr.bf16.mxu0 0
          %622 = vmatmul.mubr.bf16.gmra.mrb[0].mxu0 %v519
          %v623 = vpop.f32.mrb[0].mxu0
          %v624 = vadd.f32 0.0, %v623
          %v625 = vpop.f32.mrb[0].mxu0
          %v626 = vpop.f32.mrb[0].mxu0
          %v627 = vadd.f32 0.0, %v626
          %v628 = vpop.f32.mrb[0].mxu0
          %629 = vdwg.mxu0
          %vm630 = vsmask.f32 1280
          %v632 = vshrl.u32 %v436, 16
          %v634 = vrot.slane %v632, 6
          %v635 = vshll.u32 %v436, 16
          %v637 = vrot.slane %v635, 7
          %v638 = vor.u32 %v634, %v637
          %v640 = vshrl.u32 %v437, 16
          %v642 = vrot.slane %v640, 6
          %v643 = vshll.u32 %v437, 16
          %v645 = vrot.slane %v643, 7
          %v646 = vor.u32 %v642, %v645
          %v647 = vsel %vm630, %v638, %v646
          %v649 = vshrl.u32 %v438, 16
          %v651 = vrot.slane %v649, 6
          %v652 = vshll.u32 %v438, 16
          %v654 = vrot.slane %v652, 7
          %v655 = vor.u32 %v651, %v654
          %v656 = vsel %vm630, %v646, %v655
          %v658 = vshrl.u32 %v439, 16
          %v660 = vrot.slane %v658, 6
          %v661 = vshll.u32 %v439, 16
          %v663 = vrot.slane %v661, 7
          %v664 = vor.u32 %v660, %v663
          %v665 = vsel %vm630, %v655, %v664
          %v667 = vshrl.u32 %v440, 16
          %v669 = vrot.slane %v667, 6
          %v670 = vshll.u32 %v440, 16
          %v672 = vrot.slane %v670, 7
          %v673 = vor.u32 %v669, %v672
          %v674 = vsel %vm630, %v664, %v673
          %v676 = vshrl.u32 %v441, 16
          %v678 = vrot.slane %v676, 6
          %v679 = vshll.u32 %v441, 16
          %v681 = vrot.slane %v679, 7
          %v682 = vor.u32 %v678, %v681
          %v683 = vsel %vm630, %v673, %v682
          %v685 = vshrl.u32 %v442, 16
          %v687 = vrot.slane %v685, 6
          %v688 = vshll.u32 %v442, 16
          %v690 = vrot.slane %v688, 7
          %v691 = vor.u32 %v687, %v690
          %v692 = vsel %vm630, %v682, %v691
          %v694 = vshrl.u32 %v443, 16
          %v696 = vrot.slane %v694, 6
          %v697 = vshll.u32 %v443, 16
          %v699 = vrot.slane %v697, 7
          %v700 = vor.u32 %v696, %v699
          %v701 = vsel %vm630, %v691, %v700
          %v703 = vshrl.u32 %v444, 16
          %v705 = vrot.slane %v703, 6
          %v706 = vshll.u32 %v444, 16
          %v708 = vrot.slane %v706, 7
          %v709 = vor.u32 %v705, %v708
          %v710 = vsel %vm630, %v700, %v709
          %v712 = vshrl.u32 %v445, 16
          %v714 = vrot.slane %v712, 6
          %v715 = vshll.u32 %v445, 16
          %v717 = vrot.slane %v715, 7
          %v718 = vor.u32 %v714, %v717
          %v719 = vsel %vm630, %v709, %v718
          %v723 = vunpack.c.l.b16 %v446
          %v724 = vunpack.c.l.b16 %v447
          %v725 = vunpack.c.l.b16 %v448
          %v726 = vpack.c.b16 %v724, %v723
          %v727 = vpack.c.b16 %v725, %v725
          %v730 = vsel %vm493, %v647, 0
          %v733 = vsel %vm493, %v656, 0
          %v736 = vsel %vm493, %v665, 0
          %v739 = vsel %vm493, %v674, 0
          %v742 = vsel %vm493, %v683, 0
          %v745 = vsel %vm493, %v692, 0
          %v748 = vsel %vm493, %v701, 0
          %v751 = vsel %vm493, %v710, 0
          %v754 = vsel %vm493, %v719, 0
          %v757 = vsel %vm521, %v727, 0
          %759 = vmatprep.subr.bf16.mxu0 0
          %760 = vmatpush1.bf16.msra.mxu0 %v726
          %761 = vmatprep.subr.bf16.mxu0 0
          %762 = vmatpush1.bf16.msra.mxu0 %v757
          %763 = vmatprep.subr.bf16.mxu0 0
          %764 = vmatpush1.bf16.msra.mxu0 0
          %765 = vmatprep.subr.bf16.mxu0 0
          %766 = vmatpush1.bf16.msra.mxu0 0
          %767 = vmatprep.subr.bf16.mxu0 0
          %768 = vmatpush1.bf16.msra.mxu0 0
          %769 = vmatprep.subr.bf16.mxu0 0
          %770 = vmatpush1.bf16.msra.mxu0 0
          %771 = vmatprep.subr.bf16.mxu0 0
          %772 = vmatpush1.bf16.msra.mxu0 0
          %773 = vmatprep.subr.bf16.mxu0 0
          %774 = vmatpush1.bf16.msra.mxu0 0
          %775 = vmatprep.subr.bf16.mxu0 0
          %776 = vmatpush1.bf16.msra.mxu0 0
          %777 = vmatprep.subr.bf16.mxu0 0
          %778 = vmatpush1.bf16.msra.mxu0 0
          %779 = vmatprep.subr.bf16.mxu0 0
          %780 = vmatpush1.bf16.msra.mxu0 0
          %781 = vmatprep.subr.bf16.mxu0 0
          %782 = vmatpush1.bf16.msra.mxu0 0
          %783 = vmatprep.subr.bf16.mxu0 0
          %784 = vmatpush1.bf16.msra.mxu0 0
          %785 = vmatprep.subr.bf16.mxu0 0
          %786 = vmatpush1.bf16.msra.mxu0 0
          %787 = vmatprep.subr.bf16.mxu0 0
          %788 = vmatpush1.bf16.msra.mxu0 0
          %789 = vmatprep.subr.bf16.mxu0 0
          %790 = vmatpush1.bf16.msra.mxu0 0
          %791 = vmatprep.mubr.bf16.mxu0 0
          %792 = vmatmul.mubr.bf16.gmra.mrb[0].mxu0 %v730
          %v793 = vpop.f32.mrb[0].mxu0
          %v794 = vadd.f32 %v560, %v793
          %v795 = vpop.f32.mrb[0].mxu0
          %v796 = vpop.f32.mrb[0].mxu0
          %v797 = vadd.f32 %v563, %v796
          %v798 = vpop.f32.mrb[0].mxu0
          %799 = vmatprep.mubr.bf16.mxu0 0
          %800 = vmatmul.mubr.bf16.gmra.mrb[0].mxu0 %v733
          %v801 = vpop.f32.mrb[0].mxu0
          %v802 = vadd.f32 %v568, %v801
          %v803 = vpop.f32.mrb[0].mxu0
          %v804 = vpop.f32.mrb[0].mxu0
          %v805 = vadd.f32 %v571, %v804
          %v806 = vpop.f32.mrb[0].mxu0
          %807 = vmatprep.mubr.bf16.mxu0 0
          %808 = vmatmul.mubr.bf16.gmra.mrb[0].mxu0 %v736
          %v809 = vpop.f32.mrb[0].mxu0
          %v810 = vadd.f32 %v576, %v809
          %v811 = vpop.f32.mrb[0].mxu0
          %v812 = vpop.f32.mrb[0].mxu0
          %v813 = vadd.f32 %v579, %v812
          %v814 = vpop.f32.mrb[0].mxu0
          %815 = vmatprep.mubr.bf16.mxu0 0
          %816 = vmatmul.mubr.bf16.gmra.mrb[0].mxu0 %v739
          %v817 = vpop.f32.mrb[0].mxu0
          %v818 = vadd.f32 %v584, %v817
          %v819 = vpop.f32.mrb[0].mxu0
          %v820 = vpop.f32.mrb[0].mxu0
          %v821 = vadd.f32 %v587, %v820
          %v822 = vpop.f32.mrb[0].mxu0
          %823 = vmatprep.mubr.bf16.mxu0 0
          %824 = vmatmul.mubr.bf16.gmra.mrb[0].mxu0 %v742
          %v825 = vpop.f32.mrb[0].mxu0
          %v826 = vadd.f32 %v592, %v825
          %v827 = vpop.f32.mrb[0].mxu0
          %v828 = vpop.f32.mrb[0].mxu0
          %v829 = vadd.f32 %v595, %v828
          %v830 = vpop.f32.mrb[0].mxu0
          %831 = vmatprep.mubr.bf16.mxu0 0
          %832 = vmatmul.mubr.bf16.gmra.mrb[0].mxu0 %v745
          %v833 = vpop.f32.mrb[0].mxu0
          %v834 = vadd.f32 %v600, %v833
          %v835 = vpop.f32.mrb[0].mxu0
          %v836 = vpop.f32.mrb[0].mxu0
          %v837 = vadd.f32 %v603, %v836
          %v838 = vpop.f32.mrb[0].mxu0
          %839 = vmatprep.mubr.bf16.mxu0 0
          %840 = vmatmul.mubr.bf16.gmra.mrb[0].mxu0 %v748
          %v841 = vpop.f32.mrb[0].mxu0
          %v842 = vadd.f32 %v608, %v841
          %v843 = vpop.f32.mrb[0].mxu0
          %v844 = vpop.f32.mrb[0].mxu0
          %v845 = vadd.f32 %v611, %v844
          %v846 = vpop.f32.mrb[0].mxu0
          %847 = vmatprep.mubr.bf16.mxu0 0
          %848 = vmatmul.mubr.bf16.gmra.mrb[0].mxu0 %v751
          %v849 = vpop.f32.mrb[0].mxu0
          %v850 = vadd.f32 %v616, %v849
          %v851 = vpop.f32.mrb[0].mxu0
          %v852 = vpop.f32.mrb[0].mxu0
          %v853 = vadd.f32 %v619, %v852
          %v854 = vpop.f32.mrb[0].mxu0
          %855 = vmatprep.mubr.bf16.mxu0 0
          %856 = vmatmul.mubr.bf16.gmra.mrb[0].mxu0 %v754
          %v857 = vpop.f32.mrb[0].mxu0
          %v858 = vadd.f32 %v624, %v857
          %v859 = vpop.f32.mrb[0].mxu0
          %v860 = vpop.f32.mrb[0].mxu0
          %v861 = vadd.f32 %v627, %v860
          %v862 = vpop.f32.mrb[0].mxu0
          %863 = vdwg.mxu0
          %v864 = vld [vmem:[#allocation2 + $0x48] sm:$0xff]
          %s865 = scalar_lea.vmem %s300, 24 [#allocation4]
          %v866 = vld [vmem:[%s865] sm:$0xf]
          %v867 = vld [vmem:[%s865 + $0x4] sm:$0xf]
          %v868 = vld [vmem:[%s865 + $0x8] sm:$0x1]
          %vm869 = vsmask.f32 256
          %v871 = vshrl.u32 %v449, 16
          %v873 = vrot.slane %v871, 7
          %v874 = vrot.slane %v640, 7
          %v875 = vor.u32 %v874, %v643
          %v876 = vsel %vm869, %v873, %v875
          %v877 = vrot.slane %v649, 7
          %v878 = vor.u32 %v877, %v652
          %v879 = vsel %vm869, %v874, %v878
          %v880 = vrot.slane %v658, 7
          %v881 = vor.u32 %v880, %v661
          %v882 = vsel %vm869, %v877, %v881
          %v883 = vrot.slane %v667, 7
          %v884 = vor.u32 %v883, %v670
          %v885 = vsel %vm869, %v880, %v884
          %v886 = vrot.slane %v676, 7
          %v887 = vor.u32 %v886, %v679
          %v888 = vsel %vm869, %v883, %v887
          %v889 = vrot.slane %v685, 7
          %v890 = vor.u32 %v889, %v688
          %v891 = vsel %vm869, %v886, %v890
          %v892 = vrot.slane %v694, 7
          %v893 = vor.u32 %v892, %v697
          %v894 = vsel %vm869, %v889, %v893
          %v895 = vrot.slane %v703, 7
          %v896 = vor.u32 %v895, %v706
          %v897 = vsel %vm869, %v892, %v896
          %v899 = vshrl.u32 %v864, 16
          %v901 = vrot.slane %v899, 7
          %v902 = vshll.u32 %v864, 16
          %v904 = vor.u32 %v901, %v902
          %v905 = vsel %vm869, %v895, %v904
          %v909 = vunpack.c.l.b16 %v866
          %v910 = vunpack.c.l.b16 %v867
          %v911 = vunpack.c.l.b16 %v868
          %v912 = vpack.c.b16 %v910, %v909
          %v913 = vpack.c.b16 %v911, %v911
          %v916 = vsel %vm493, %v876, 0
          %v919 = vsel %vm493, %v879, 0
          %v922 = vsel %vm493, %v882, 0
          %v925 = vsel %vm493, %v885, 0
          %v928 = vsel %vm493, %v888, 0
          %v931 = vsel %vm493, %v891, 0
          %v934 = vsel %vm493, %v894, 0
          %v937 = vsel %vm493, %v897, 0
          %v940 = vsel %vm493, %v905, 0
          %v943 = vsel %vm521, %v913, 0
          %945 = vmatprep.subr.bf16.mxu0 0
          %946 = vmatpush1.bf16.msra.mxu0 %v912
          %947 = vmatprep.subr.bf16.mxu0 0
          %948 = vmatpush1.bf16.msra.mxu0 %v943
          %949 = vmatprep.subr.bf16.mxu0 0
          %950 = vmatpush1.bf16.msra.mxu0 0
          %951 = vmatprep.subr.bf16.mxu0 0
          %952 = vmatpush1.bf16.msra.mxu0 0
          %953 = vmatprep.subr.bf16.mxu0 0
          %954 = vmatpush1.bf16.msra.mxu0 0
          %955 = vmatprep.subr.bf16.mxu0 0
          %956 = vmatpush1.bf16.msra.mxu0 0
          %957 = vmatprep.subr.bf16.mxu0 0
          %958 = vmatpush1.bf16.msra.mxu0 0
          %959 = vmatprep.subr.bf16.mxu0 0
          %960 = vmatpush1.bf16.msra.mxu0 0
          %961 = vmatprep.subr.bf16.mxu0 0
          %962 = vmatpush1.bf16.msra.mxu0 0
          %963 = vmatprep.subr.bf16.mxu0 0
          %964 = vmatpush1.bf16.msra.mxu0 0
          %965 = vmatprep.subr.bf16.mxu0 0
          %966 = vmatpush1.bf16.msra.mxu0 0
          %967 = vmatprep.subr.bf16.mxu0 0
          %968 = vmatpush1.bf16.msra.mxu0 0
          %969 = vmatprep.subr.bf16.mxu0 0
          %970 = vmatpush1.bf16.msra.mxu0 0
          %971 = vmatprep.subr.bf16.mxu0 0
          %972 = vmatpush1.bf16.msra.mxu0 0
          %973 = vmatprep.subr.bf16.mxu0 0
          %974 = vmatpush1.bf16.msra.mxu0 0
          %975 = vmatprep.subr.bf16.mxu0 0
          %976 = vmatpush1.bf16.msra.mxu0 0
          %977 = vmatprep.mubr.bf16.mxu0 0
          %978 = vmatmul.mubr.bf16.gmra.mrb[0].mxu0 %v916
          %v979 = vpop.f32.mrb[0].mxu0
          %v980 = vadd.f32 0.0, %v979
          %v981 = vpop.f32.mrb[0].mxu0
          %v982 = vpop.f32.mrb[0].mxu0
          %v983 = vadd.f32 0.0, %v982
          %v984 = vpop.f32.mrb[0].mxu0
          %985 = vmatprep.mubr.bf16.mxu0 0
          %986 = vmatmul.mubr.bf16.gmra.mrb[0].mxu0 %v919
          %v987 = vpop.f32.mrb[0].mxu0
          %v988 = vadd.f32 0.0, %v987
          %v989 = vpop.f32.mrb[0].mxu0
          %v990 = vpop.f32.mrb[0].mxu0
          %v991 = vadd.f32 0.0, %v990
          %v992 = vpop.f32.mrb[0].mxu0
          %993 = vmatprep.mubr.bf16.mxu0 0
          %994 = vmatmul.mubr.bf16.gmra.mrb[0].mxu0 %v922
          %v995 = vpop.f32.mrb[0].mxu0
          %v996 = vadd.f32 0.0, %v995
          %v997 = vpop.f32.mrb[0].mxu0
          %v998 = vpop.f32.mrb[0].mxu0
          %v999 = vadd.f32 0.0, %v998
          %v1000 = vpop.f32.mrb[0].mxu0
          %1001 = vmatprep.mubr.bf16.mxu0 0
          %1002 = vmatmul.mubr.bf16.gmra.mrb[0].mxu0 %v925
          %v1003 = vpop.f32.mrb[0].mxu0
          %v1004 = vadd.f32 0.0, %v1003
          %v1005 = vpop.f32.mrb[0].mxu0
          %v1006 = vpop.f32.mrb[0].mxu0
          %v1007 = vadd.f32 0.0, %v1006
          %v1008 = vpop.f32.mrb[0].mxu0
          %1009 = vmatprep.mubr.bf16.mxu0 0
          %1010 = vmatmul.mubr.bf16.gmra.mrb[0].mxu0 %v928
          %v1011 = vpop.f32.mrb[0].mxu0
          %v1012 = vadd.f32 0.0, %v1011
          %v1013 = vpop.f32.mrb[0].mxu0
          %v1014 = vpop.f32.mrb[0].mxu0
          %v1015 = vadd.f32 0.0, %v1014
          %v1016 = vpop.f32.mrb[0].mxu0
          %1017 = vmatprep.mubr.bf16.mxu0 0
          %1018 = vmatmul.mubr.bf16.gmra.mrb[0].mxu0 %v931
          %v1019 = vpop.f32.mrb[0].mxu0
          %v1020 = vadd.f32 0.0, %v1019
          %v1021 = vpop.f32.mrb[0].mxu0
          %v1022 = vpop.f32.mrb[0].mxu0
          %v1023 = vadd.f32 0.0, %v1022
          %v1024 = vpop.f32.mrb[0].mxu0
          %1025 = vmatprep.mubr.bf16.mxu0 0
          %1026 = vmatmul.mubr.bf16.gmra.mrb[0].mxu0 %v934
          %v1027 = vpop.f32.mrb[0].mxu0
          %v1028 = vadd.f32 0.0, %v1027
          %v1029 = vpop.f32.mrb[0].mxu0
          %v1030 = vpop.f32.mrb[0].mxu0
          %v1031 = vadd.f32 0.0, %v1030
          %v1032 = vpop.f32.mrb[0].mxu0
          %1033 = vmatprep.mubr.bf16.mxu0 0
          %1034 = vmatmul.mubr.bf16.gmra.mrb[0].mxu0 %v937
          %v1035 = vpop.f32.mrb[0].mxu0
          %v1036 = vadd.f32 0.0, %v1035
          %v1037 = vpop.f32.mrb[0].mxu0
          %v1038 = vpop.f32.mrb[0].mxu0
          %v1039 = vadd.f32 0.0, %v1038
          %v1040 = vpop.f32.mrb[0].mxu0
          %1041 = vmatprep.mubr.bf16.mxu0 0
          %1042 = vmatmul.mubr.bf16.gmra.mrb[0].mxu0 %v940
          %v1043 = vpop.f32.mrb[0].mxu0
          %v1044 = vadd.f32 0.0, %v1043
          %v1045 = vpop.f32.mrb[0].mxu0
          %v1046 = vpop.f32.mrb[0].mxu0
          %v1047 = vadd.f32 0.0, %v1046
          %v1048 = vpop.f32.mrb[0].mxu0
          %1049 = vdwg.mxu0
          %v1050 = vadd.f32 %v794, %v980
          %v1051 = vadd.f32 %v797, %v983
          %v1052 = vadd.f32 %v802, %v988
          %v1053 = vadd.f32 %v805, %v991
          %v1054 = vadd.f32 %v810, %v996
          %v1055 = vadd.f32 %v813, %v999
          %v1056 = vadd.f32 %v818, %v1004
          %v1057 = vadd.f32 %v821, %v1007
          %v1058 = vadd.f32 %v826, %v1012
          %v1059 = vadd.f32 %v829, %v1015
          %v1060 = vadd.f32 %v834, %v1020
          %v1061 = vadd.f32 %v837, %v1023
          %v1062 = vadd.f32 %v842, %v1028
          %v1063 = vadd.f32 %v845, %v1031
          %v1064 = vadd.f32 %v850, %v1036
          %v1065 = vadd.f32 %v853, %v1039
          %v1066 = vadd.f32 %v858, %v1044
          %v1067 = vadd.f32 %v861, %v1047
          %v1068 = vld [vmem:[#allocation2 + $0x8] sm:$0x80]
          %v1069 = vld [vmem:[#allocation2 + $0x10] sm:$0xff]
          %v1070 = vld [vmem:[#allocation2 + $0x18] sm:$0xff]
          %v1071 = vld [vmem:[#allocation2 + $0x20] sm:$0xff]
          %v1072 = vld [vmem:[#allocation2 + $0x28] sm:$0xff]
          %v1073 = vld [vmem:[#allocation2 + $0x30] sm:$0xff]
          %v1074 = vld [vmem:[#allocation2 + $0x38] sm:$0xff]
          %v1075 = vld [vmem:[#allocation2 + $0x40] sm:$0xff]
          %v1076 = vld [vmem:[#allocation2 + $0x48] sm:$0xff]
          %v1077 = vld [vmem:[#allocation2 + $0x50] sm:$0xff]
          %s1078 = scalar_lea.vmem %s300, 36 [#allocation4]
          %v1079 = vld [vmem:[%s1078] sm:$0xf]
          %v1080 = vld [vmem:[%s1078 + $0x4] sm:$0xf]
          %v1081 = vld [vmem:[%s1078 + $0x8] sm:$0x1]
          %v1083 = vshrl.u32 %v1068, 16
          %v1085 = vrot.slane %v1083, 7
          %v1087 = vshrl.u32 %v1069, 16
          %v1089 = vrot.slane %v1087, 7
          %v1090 = vshll.u32 %v1069, 16
          %v1092 = vor.u32 %v1089, %v1090
          %v1093 = vsel %vm869, %v1085, %v1092
          %v1095 = vshrl.u32 %v1070, 16
          %v1097 = vrot.slane %v1095, 7
          %v1098 = vshll.u32 %v1070, 16
          %v1100 = vor.u32 %v1097, %v1098
          %v1101 = vsel %vm869, %v1089, %v1100
          %v1103 = vshrl.u32 %v1071, 16
          %v1105 = vrot.slane %v1103, 7
          %v1106 = vshll.u32 %v1071, 16
          %v1108 = vor.u32 %v1105, %v1106
          %v1109 = vsel %vm869, %v1097, %v1108
          %v1111 = vshrl.u32 %v1072, 16
          %v1113 = vrot.slane %v1111, 7
          %v1114 = vshll.u32 %v1072, 16
          %v1116 = vor.u32 %v1113, %v1114
          %v1117 = vsel %vm869, %v1105, %v1116
          %v1119 = vshrl.u32 %v1073, 16
          %v1121 = vrot.slane %v1119, 7
          %v1122 = vshll.u32 %v1073, 16
          %v1124 = vor.u32 %v1121, %v1122
          %v1125 = vsel %vm869, %v1113, %v1124
          %v1127 = vshrl.u32 %v1074, 16
          %v1129 = vrot.slane %v1127, 7
          %v1130 = vshll.u32 %v1074, 16
          %v1132 = vor.u32 %v1129, %v1130
          %v1133 = vsel %vm869, %v1121, %v1132
          %v1135 = vshrl.u32 %v1075, 16
          %v1137 = vrot.slane %v1135, 7
          %v1138 = vshll.u32 %v1075, 16
          %v1140 = vor.u32 %v1137, %v1138
          %v1141 = vsel %vm869, %v1129, %v1140
          %v1143 = vshrl.u32 %v1076, 16
          %v1145 = vrot.slane %v1143, 7
          %v1146 = vshll.u32 %v1076, 16
          %v1148 = vor.u32 %v1145, %v1146
          %v1149 = vsel %vm869, %v1137, %v1148
          %v1151 = vshrl.u32 %v1077, 16
          %v1153 = vrot.slane %v1151, 7
          %v1154 = vshll.u32 %v1077, 16
          %v1156 = vor.u32 %v1153, %v1154
          %v1157 = vsel %vm869, %v1145, %v1156
          %v1161 = vunpack.c.l.b16 %v1079
          %v1162 = vunpack.c.l.b16 %v1080
          %v1163 = vunpack.c.l.b16 %v1081
          %v1164 = vpack.c.b16 %v1162, %v1161
          %v1165 = vpack.c.b16 %v1163, %v1163
          %v1168 = vsel %vm493, %v1093, 0
          %v1171 = vsel %vm493, %v1101, 0
          %v1174 = vsel %vm493, %v1109, 0
          %v1177 = vsel %vm493, %v1117, 0
          %v1180 = vsel %vm493, %v1125, 0
          %v1183 = vsel %vm493, %v1133, 0
          %v1186 = vsel %vm493, %v1141, 0
          %v1189 = vsel %vm493, %v1149, 0
          %v1192 = vsel %vm493, %v1157, 0
          %v1195 = vsel %vm521, %v1165, 0
          %1197 = vmatprep.subr.bf16.mxu0 0
          %1198 = vmatpush1.bf16.msra.mxu0 %v1164
          %1199 = vmatprep.subr.bf16.mxu0 0
          %1200 = vmatpush1.bf16.msra.mxu0 %v1195
          %1201 = vmatprep.subr.bf16.mxu0 0
          %1202 = vmatpush1.bf16.msra.mxu0 0
          %1203 = vmatprep.subr.bf16.mxu0 0
          %1204 = vmatpush1.bf16.msra.mxu0 0
          %1205 = vmatprep.subr.bf16.mxu0 0
          %1206 = vmatpush1.bf16.msra.mxu0 0
          %1207 = vmatprep.subr.bf16.mxu0 0
          %1208 = vmatpush1.bf16.msra.mxu0 0
          %1209 = vmatprep.subr.bf16.mxu0 0
          %1210 = vmatpush1.bf16.msra.mxu0 0
          %1211 = vmatprep.subr.bf16.mxu0 0
          %1212 = vmatpush1.bf16.msra.mxu0 0
          %1213 = vmatprep.subr.bf16.mxu0 0
          %1214 = vmatpush1.bf16.msra.mxu0 0
          %1215 = vmatprep.subr.bf16.mxu0 0
          %1216 = vmatpush1.bf16.msra.mxu0 0
          %1217 = vmatprep.subr.bf16.mxu0 0
          %1218 = vmatpush1.bf16.msra.mxu0 0
          %1219 = vmatprep.subr.bf16.mxu0 0
          %1220 = vmatpush1.bf16.msra.mxu0 0
          %1221 = vmatprep.subr.bf16.mxu0 0
          %1222 = vmatpush1.bf16.msra.mxu0 0
          %1223 = vmatprep.subr.bf16.mxu0 0
          %1224 = vmatpush1.bf16.msra.mxu0 0
          %1225 = vmatprep.subr.bf16.mxu0 0
          %1226 = vmatpush1.bf16.msra.mxu0 0
          %1227 = vmatprep.subr.bf16.mxu0 0
          %1228 = vmatpush1.bf16.msra.mxu0 0
          %1229 = vmatprep.mubr.bf16.mxu0 0
          %1230 = vmatmul.mubr.bf16.gmra.mrb[0].mxu0 %v1168
          %v1231 = vpop.f32.mrb[0].mxu0
          %v1232 = vadd.f32 0.0, %v1231
          %v1233 = vpop.f32.mrb[0].mxu0
          %v1234 = vpop.f32.mrb[0].mxu0
          %v1235 = vadd.f32 0.0, %v1234
          %v1236 = vpop.f32.mrb[0].mxu0
          %1237 = vmatprep.mubr.bf16.mxu0 0
          %1238 = vmatmul.mubr.bf16.gmra.mrb[0].mxu0 %v1171
          %v1239 = vpop.f32.mrb[0].mxu0
          %v1240 = vadd.f32 0.0, %v1239
          %v1241 = vpop.f32.mrb[0].mxu0
          %v1242 = vpop.f32.mrb[0].mxu0
          %v1243 = vadd.f32 0.0, %v1242
          %v1244 = vpop.f32.mrb[0].mxu0
          %1245 = vmatprep.mubr.bf16.mxu0 0
          %1246 = vmatmul.mubr.bf16.gmra.mrb[0].mxu0 %v1174
          %v1247 = vpop.f32.mrb[0].mxu0
          %v1248 = vadd.f32 0.0, %v1247
          %v1249 = vpop.f32.mrb[0].mxu0
          %v1250 = vpop.f32.mrb[0].mxu0
          %v1251 = vadd.f32 0.0, %v1250
          %v1252 = vpop.f32.mrb[0].mxu0
          %1253 = vmatprep.mubr.bf16.mxu0 0
          %1254 = vmatmul.mubr.bf16.gmra.mrb[0].mxu0 %v1177
          %v1255 = vpop.f32.mrb[0].mxu0
          %v1256 = vadd.f32 0.0, %v1255
          %v1257 = vpop.f32.mrb[0].mxu0
          %v1258 = vpop.f32.mrb[0].mxu0
          %v1259 = vadd.f32 0.0, %v1258
          %v1260 = vpop.f32.mrb[0].mxu0
          %1261 = vmatprep.mubr.bf16.mxu0 0
          %1262 = vmatmul.mubr.bf16.gmra.mrb[0].mxu0 %v1180
          %v1263 = vpop.f32.mrb[0].mxu0
          %v1264 = vadd.f32 0.0, %v1263
          %v1265 = vpop.f32.mrb[0].mxu0
          %v1266 = vpop.f32.mrb[0].mxu0
          %v1267 = vadd.f32 0.0, %v1266
          %v1268 = vpop.f32.mrb[0].mxu0
          %1269 = vmatprep.mubr.bf16.mxu0 0
          %1270 = vmatmul.mubr.bf16.gmra.mrb[0].mxu0 %v1183
          %v1271 = vpop.f32.mrb[0].mxu0
          %v1272 = vadd.f32 0.0, %v1271
          %v1273 = vpop.f32.mrb[0].mxu0
          %v1274 = vpop.f32.mrb[0].mxu0
          %v1275 = vadd.f32 0.0, %v1274
          %v1276 = vpop.f32.mrb[0].mxu0
          %1277 = vmatprep.mubr.bf16.mxu0 0
          %1278 = vmatmul.mubr.bf16.gmra.mrb[0].mxu0 %v1186
          %v1279 = vpop.f32.mrb[0].mxu0
          %v1280 = vadd.f32 0.0, %v1279
          %v1281 = vpop.f32.mrb[0].mxu0
          %v1282 = vpop.f32.mrb[0].mxu0
          %v1283 = vadd.f32 0.0, %v1282
          %v1284 = vpop.f32.mrb[0].mxu0
          %1285 = vmatprep.mubr.bf16.mxu0 0
          %1286 = vmatmul.mubr.bf16.gmra.mrb[0].mxu0 %v1189
          %v1287 = vpop.f32.mrb[0].mxu0
          %v1288 = vadd.f32 0.0, %v1287
          %v1289 = vpop.f32.mrb[0].mxu0
          %v1290 = vpop.f32.mrb[0].mxu0
          %v1291 = vadd.f32 0.0, %v1290
          %v1292 = vpop.f32.mrb[0].mxu0
          %1293 = vmatprep.mubr.bf16.mxu0 0
          %1294 = vmatmul.mubr.bf16.gmra.mrb[0].mxu0 %v1192
          %v1295 = vpop.f32.mrb[0].mxu0
          %v1296 = vadd.f32 0.0, %v1295
          %v1297 = vpop.f32.mrb[0].mxu0
          %v1298 = vpop.f32.mrb[0].mxu0
          %v1299 = vadd.f32 0.0, %v1298
          %v1300 = vpop.f32.mrb[0].mxu0
          %1301 = vdwg.mxu0
          %v1302 = vadd.f32 %v1050, %v1232
          %v1303 = vadd.f32 %v1051, %v1235
          %v1304 = vadd.f32 %v1052, %v1240
          %v1305 = vadd.f32 %v1053, %v1243
          %v1306 = vadd.f32 %v1054, %v1248
          %v1307 = vadd.f32 %v1055, %v1251
          %v1308 = vadd.f32 %v1056, %v1256
          %v1309 = vadd.f32 %v1057, %v1259
          %v1310 = vadd.f32 %v1058, %v1264
          %v1311 = vadd.f32 %v1059, %v1267
          %v1312 = vadd.f32 %v1060, %v1272
          %v1313 = vadd.f32 %v1061, %v1275
          %v1314 = vadd.f32 %v1062, %v1280
          %v1315 = vadd.f32 %v1063, %v1283
          %v1316 = vadd.f32 %v1064, %v1288
          %v1317 = vadd.f32 %v1065, %v1291
          %v1318 = vadd.f32 %v1066, %v1296
          %v1319 = vadd.f32 %v1067, %v1299
          %s1320 = scalar_lea.vmem %s300, 48 [#allocation4]
          %v1321 = vld [vmem:[%s1320] sm:$0xf]
          %v1322 = vld [vmem:[%s1320 + $0x4] sm:$0xf]
          %v1323 = vld [vmem:[%s1320 + $0x8] sm:$0x1]
          %v1327 = vunpack.c.l.b16 %v1321
          %v1328 = vunpack.c.l.b16 %v1322
          %v1329 = vunpack.c.l.b16 %v1323
          %v1330 = vpack.c.b16 %v1328, %v1327
          %v1331 = vpack.c.b16 %v1329, %v1329
          %v1333 = vsel %vm493, %v1069, 0
          %v1335 = vsel %vm493, %v1070, 0
          %v1337 = vsel %vm493, %v1071, 0
          %v1339 = vsel %vm493, %v1072, 0
          %v1341 = vsel %vm493, %v1073, 0
          %v1343 = vsel %vm493, %v1074, 0
          %v1345 = vsel %vm493, %v1075, 0
          %v1347 = vsel %vm493, %v1076, 0
          %v1349 = vsel %vm493, %v1077, 0
          %v1352 = vsel %vm521, %v1331, 0
          %1354 = vmatprep.subr.bf16.mxu0 0
          %1355 = vmatpush1.bf16.msra.mxu0 %v1330
          %1356 = vmatprep.subr.bf16.mxu0 0
          %1357 = vmatpush1.bf16.msra.mxu0 %v1352
          %1358 = vmatprep.subr.bf16.mxu0 0
          %1359 = vmatpush1.bf16.msra.mxu0 0
          %1360 = vmatprep.subr.bf16.mxu0 0
          %1361 = vmatpush1.bf16.msra.mxu0 0
          %1362 = vmatprep.subr.bf16.mxu0 0
          %1363 = vmatpush1.bf16.msra.mxu0 0
          %1364 = vmatprep.subr.bf16.mxu0 0
          %1365 = vmatpush1.bf16.msra.mxu0 0
          %1366 = vmatprep.subr.bf16.mxu0 0
          %1367 = vmatpush1.bf16.msra.mxu0 0
          %1368 = vmatprep.subr.bf16.mxu0 0
          %1369 = vmatpush1.bf16.msra.mxu0 0
          %1370 = vmatprep.subr.bf16.mxu0 0
          %1371 = vmatpush1.bf16.msra.mxu0 0
          %1372 = vmatprep.subr.bf16.mxu0 0
          %1373 = vmatpush1.bf16.msra.mxu0 0
          %1374 = vmatprep.subr.bf16.mxu0 0
          %1375 = vmatpush1.bf16.msra.mxu0 0
          %1376 = vmatprep.subr.bf16.mxu0 0
          %1377 = vmatpush1.bf16.msra.mxu0 0
          %1378 = vmatprep.subr.bf16.mxu0 0
          %1379 = vmatpush1.bf16.msra.mxu0 0
          %1380 = vmatprep.subr.bf16.mxu0 0
          %1381 = vmatpush1.bf16.msra.mxu0 0
          %1382 = vmatprep.subr.bf16.mxu0 0
          %1383 = vmatpush1.bf16.msra.mxu0 0
          %1384 = vmatprep.subr.bf16.mxu0 0
          %1385 = vmatpush1.bf16.msra.mxu0 0
          %1386 = vmatprep.mubr.bf16.mxu0 0
          %1387 = vmatmul.mubr.bf16.gmra.mrb[0].mxu0 %v1333
          %v1388 = vpop.f32.mrb[0].mxu0
          %v1389 = vadd.f32 0.0, %v1388
          %v1390 = vpop.f32.mrb[0].mxu0
          %v1391 = vpop.f32.mrb[0].mxu0
          %v1392 = vadd.f32 0.0, %v1391
          %v1393 = vpop.f32.mrb[0].mxu0
          %1394 = vmatprep.mubr.bf16.mxu0 0
          %1395 = vmatmul.mubr.bf16.gmra.mrb[0].mxu0 %v1335
          %v1396 = vpop.f32.mrb[0].mxu0
          %v1397 = vadd.f32 0.0, %v1396
          %v1398 = vpop.f32.mrb[0].mxu0
          %v1399 = vpop.f32.mrb[0].mxu0
          %v1400 = vadd.f32 0.0, %v1399
          %v1401 = vpop.f32.mrb[0].mxu0
          %1402 = vmatprep.mubr.bf16.mxu0 0
          %1403 = vmatmul.mubr.bf16.gmra.mrb[0].mxu0 %v1337
          %v1404 = vpop.f32.mrb[0].mxu0
          %v1405 = vadd.f32 0.0, %v1404
          %v1406 = vpop.f32.mrb[0].mxu0
          %v1407 = vpop.f32.mrb[0].mxu0
          %v1408 = vadd.f32 0.0, %v1407
          %v1409 = vpop.f32.mrb[0].mxu0
          %1410 = vmatprep.mubr.bf16.mxu0 0
          %1411 = vmatmul.mubr.bf16.gmra.mrb[0].mxu0 %v1339
          %v1412 = vpop.f32.mrb[0].mxu0
          %v1413 = vadd.f32 0.0, %v1412
          %v1414 = vpop.f32.mrb[0].mxu0
          %v1415 = vpop.f32.mrb[0].mxu0
          %v1416 = vadd.f32 0.0, %v1415
          %v1417 = vpop.f32.mrb[0].mxu0
          %1418 = vmatprep.mubr.bf16.mxu0 0
          %1419 = vmatmul.mubr.bf16.gmra.mrb[0].mxu0 %v1341
          %v1420 = vpop.f32.mrb[0].mxu0
          %v1421 = vadd.f32 0.0, %v1420
          %v1422 = vpop.f32.mrb[0].mxu0
          %v1423 = vpop.f32.mrb[0].mxu0
          %v1424 = vadd.f32 0.0, %v1423
          %v1425 = vpop.f32.mrb[0].mxu0
          %1426 = vmatprep.mubr.bf16.mxu0 0
          %1427 = vmatmul.mubr.bf16.gmra.mrb[0].mxu0 %v1343
          %v1428 = vpop.f32.mrb[0].mxu0
          %v1429 = vadd.f32 0.0, %v1428
          %v1430 = vpop.f32.mrb[0].mxu0
          %v1431 = vpop.f32.mrb[0].mxu0
          %v1432 = vadd.f32 0.0, %v1431
          %v1433 = vpop.f32.mrb[0].mxu0
          %1434 = vmatprep.mubr.bf16.mxu0 0
          %1435 = vmatmul.mubr.bf16.gmra.mrb[0].mxu0 %v1345
          %v1436 = vpop.f32.mrb[0].mxu0
          %v1437 = vadd.f32 0.0, %v1436
          %v1438 = vpop.f32.mrb[0].mxu0
          %v1439 = vpop.f32.mrb[0].mxu0
          %v1440 = vadd.f32 0.0, %v1439
          %v1441 = vpop.f32.mrb[0].mxu0
          %1442 = vmatprep.mubr.bf16.mxu0 0
          %1443 = vmatmul.mubr.bf16.gmra.mrb[0].mxu0 %v1347
          %v1444 = vpop.f32.mrb[0].mxu0
          %v1445 = vadd.f32 0.0, %v1444
          %v1446 = vpop.f32.mrb[0].mxu0
          %v1447 = vpop.f32.mrb[0].mxu0
          %v1448 = vadd.f32 0.0, %v1447
          %v1449 = vpop.f32.mrb[0].mxu0
          %1450 = vmatprep.mubr.bf16.mxu0 0
          %1451 = vmatmul.mubr.bf16.gmra.mrb[0].mxu0 %v1349
          %v1452 = vpop.f32.mrb[0].mxu0
          %v1453 = vadd.f32 0.0, %v1452
          %v1454 = vpop.f32.mrb[0].mxu0
          %v1455 = vpop.f32.mrb[0].mxu0
          %v1456 = vadd.f32 0.0, %v1455
          %v1457 = vpop.f32.mrb[0].mxu0
          %1458 = vdwg.mxu0
          %v1459 = vadd.f32 %v1302, %v1389
          %v1460 = vadd.f32 %v1303, %v1392
          %v1461 = vadd.f32 %v1304, %v1397
          %v1462 = vadd.f32 %v1305, %v1400
          %v1463 = vadd.f32 %v1306, %v1405
          %v1464 = vadd.f32 %v1307, %v1408
          %v1465 = vadd.f32 %v1308, %v1413
          %v1466 = vadd.f32 %v1309, %v1416
          %v1467 = vadd.f32 %v1310, %v1421
          %v1468 = vadd.f32 %v1311, %v1424
          %v1469 = vadd.f32 %v1312, %v1429
          %v1470 = vadd.f32 %v1313, %v1432
          %v1471 = vadd.f32 %v1314, %v1437
          %v1472 = vadd.f32 %v1315, %v1440
          %v1473 = vadd.f32 %v1316, %v1445
          %v1474 = vadd.f32 %v1317, %v1448
          %v1475 = vadd.f32 %v1318, %v1453
          %v1476 = vadd.f32 %v1319, %v1456
          %v1477 = vld [vmem:[#allocation2 + $0x10] sm:$0xff]
          %v1478 = vld [vmem:[#allocation2 + $0x18] sm:$0xff]
          %v1479 = vld [vmem:[#allocation2 + $0x20] sm:$0xff]
          %v1480 = vld [vmem:[#allocation2 + $0x28] sm:$0xff]
          %v1481 = vld [vmem:[#allocation2 + $0x30] sm:$0xff]
          %v1482 = vld [vmem:[#allocation2 + $0x38] sm:$0xff]
          %v1483 = vld [vmem:[#allocation2 + $0x40] sm:$0xff]
          %v1484 = vld [vmem:[#allocation2 + $0x48] sm:$0xff]
          %v1485 = vld [vmem:[#allocation2 + $0x50] sm:$0xff]
          %v1486 = vld [vmem:[#allocation2 + $0x58] sm:$0x1]
          %s1487 = scalar_lea.vmem %s300, 60 [#allocation4]
          %v1488 = vld [vmem:[%s1487] sm:$0xf]
          %v1489 = vld [vmem:[%s1487 + $0x4] sm:$0xf]
          %v1490 = vld [vmem:[%s1487 + $0x8] sm:$0x1]
          %vm1491 = vsmask.f32 7424
          %v1493 = vshrl.u32 %v1477, 16
          %v1495 = vshll.u32 %v1477, 16
          %v1497 = vrot.slane %v1495, 1
          %v1498 = vor.u32 %v1493, %v1497
          %v1500 = vshll.u32 %v1478, 16
          %v1502 = vrot.slane %v1500, 1
          %v1503 = vsel %vm1491, %v1498, %v1502
          %v1504 = vshrl.u32 %v1478, 16
          %v1506 = vor.u32 %v1504, %v1502
          %v1508 = vshll.u32 %v1479, 16
          %v1510 = vrot.slane %v1508, 1
          %v1511 = vsel %vm1491, %v1506, %v1510
          %v1512 = vshrl.u32 %v1479, 16
          %v1514 = vor.u32 %v1512, %v1510
          %v1516 = vshll.u32 %v1480, 16
          %v1518 = vrot.slane %v1516, 1
          %v1519 = vsel %vm1491, %v1514, %v1518
          %v1520 = vshrl.u32 %v1480, 16
          %v1522 = vor.u32 %v1520, %v1518
          %v1524 = vshll.u32 %v1481, 16
          %v1526 = vrot.slane %v1524, 1
          %v1527 = vsel %vm1491, %v1522, %v1526
          %v1528 = vshrl.u32 %v1481, 16
          %v1530 = vor.u32 %v1528, %v1526
          %v1532 = vshll.u32 %v1482, 16
          %v1534 = vrot.slane %v1532, 1
          %v1535 = vsel %vm1491, %v1530, %v1534
          %v1536 = vshrl.u32 %v1482, 16
          %v1538 = vor.u32 %v1536, %v1534
          %v1540 = vshll.u32 %v1483, 16
          %v1542 = vrot.slane %v1540, 1
          %v1543 = vsel %vm1491, %v1538, %v1542
          %v1544 = vshrl.u32 %v1483, 16
          %v1546 = vor.u32 %v1544, %v1542
          %v1548 = vshll.u32 %v1484, 16
          %v1550 = vrot.slane %v1548, 1
          %v1551 = vsel %vm1491, %v1546, %v1550
          %v1552 = vshrl.u32 %v1484, 16
          %v1554 = vor.u32 %v1552, %v1550
          %v1556 = vshll.u32 %v1485, 16
          %v1558 = vrot.slane %v1556, 1
          %v1559 = vsel %vm1491, %v1554, %v1558
          %v1560 = vshrl.u32 %v1485, 16
          %v1562 = vor.u32 %v1560, %v1558
          %v1564 = vshll.u32 %v1486, 16
          %v1566 = vrot.slane %v1564, 1
          %v1567 = vsel %vm1491, %v1562, %v1566
          %v1571 = vunpack.c.l.b16 %v1488
          %v1572 = vunpack.c.l.b16 %v1489
          %v1573 = vunpack.c.l.b16 %v1490
          %v1574 = vpack.c.b16 %v1572, %v1571
          %v1575 = vpack.c.b16 %v1573, %v1573
          %v1578 = vsel %vm493, %v1503, 0
          %v1581 = vsel %vm493, %v1511, 0
          %v1584 = vsel %vm493, %v1519, 0
          %v1587 = vsel %vm493, %v1527, 0
          %v1590 = vsel %vm493, %v1535, 0
          %v1593 = vsel %vm493, %v1543, 0
          %v1596 = vsel %vm493, %v1551, 0
          %v1599 = vsel %vm493, %v1559, 0
          %v1602 = vsel %vm493, %v1567, 0
          %v1605 = vsel %vm521, %v1575, 0
          %1607 = vmatprep.subr.bf16.mxu0 0
          %1608 = vmatpush1.bf16.msra.mxu0 %v1574
          %1609 = vmatprep.subr.bf16.mxu0 0
          %1610 = vmatpush1.bf16.msra.mxu0 %v1605
          %1611 = vmatprep.subr.bf16.mxu0 0
          %1612 = vmatpush1.bf16.msra.mxu0 0
          %1613 = vmatprep.subr.bf16.mxu0 0
          %1614 = vmatpush1.bf16.msra.mxu0 0
          %1615 = vmatprep.subr.bf16.mxu0 0
          %1616 = vmatpush1.bf16.msra.mxu0 0
          %1617 = vmatprep.subr.bf16.mxu0 0
          %1618 = vmatpush1.bf16.msra.mxu0 0
          %1619 = vmatprep.subr.bf16.mxu0 0
          %1620 = vmatpush1.bf16.msra.mxu0 0
          %1621 = vmatprep.subr.bf16.mxu0 0
          %1622 = vmatpush1.bf16.msra.mxu0 0
          %1623 = vmatprep.subr.bf16.mxu0 0
          %1624 = vmatpush1.bf16.msra.mxu0 0
          %1625 = vmatprep.subr.bf16.mxu0 0
          %1626 = vmatpush1.bf16.msra.mxu0 0
          %1627 = vmatprep.subr.bf16.mxu0 0
          %1628 = vmatpush1.bf16.msra.mxu0 0
          %1629 = vmatprep.subr.bf16.mxu0 0
          %1630 = vmatpush1.bf16.msra.mxu0 0
          %1631 = vmatprep.subr.bf16.mxu0 0
          %1632 = vmatpush1.bf16.msra.mxu0 0
          %1633 = vmatprep.subr.bf16.mxu0 0
          %1634 = vmatpush1.bf16.msra.mxu0 0
          %1635 = vmatprep.subr.bf16.mxu0 0
          %1636 = vmatpush1.bf16.msra.mxu0 0
          %1637 = vmatprep.subr.bf16.mxu0 0
          %1638 = vmatpush1.bf16.msra.mxu0 0
          %1639 = vmatprep.mubr.bf16.mxu0 0
          %1640 = vmatmul.mubr.bf16.gmra.mrb[0].mxu0 %v1578
          %v1641 = vpop.f32.mrb[0].mxu0
          %v1642 = vadd.f32 0.0, %v1641
          %v1643 = vpop.f32.mrb[0].mxu0
          %v1644 = vpop.f32.mrb[0].mxu0
          %v1645 = vadd.f32 0.0, %v1644
          %v1646 = vpop.f32.mrb[0].mxu0
          %1647 = vmatprep.mubr.bf16.mxu0 0
          %1648 = vmatmul.mubr.bf16.gmra.mrb[0].mxu0 %v1581
          %v1649 = vpop.f32.mrb[0].mxu0
          %v1650 = vadd.f32 0.0, %v1649
          %v1651 = vpop.f32.mrb[0].mxu0
          %v1652 = vpop.f32.mrb[0].mxu0
          %v1653 = vadd.f32 0.0, %v1652
          %v1654 = vpop.f32.mrb[0].mxu0
          %1655 = vmatprep.mubr.bf16.mxu0 0
          %1656 = vmatmul.mubr.bf16.gmra.mrb[0].mxu0 %v1584
          %v1657 = vpop.f32.mrb[0].mxu0
          %v1658 = vadd.f32 0.0, %v1657
          %v1659 = vpop.f32.mrb[0].mxu0
          %v1660 = vpop.f32.mrb[0].mxu0
          %v1661 = vadd.f32 0.0, %v1660
          %v1662 = vpop.f32.mrb[0].mxu0
          %1663 = vmatprep.mubr.bf16.mxu0 0
          %1664 = vmatmul.mubr.bf16.gmra.mrb[0].mxu0 %v1587
          %v1665 = vpop.f32.mrb[0].mxu0
          %v1666 = vadd.f32 0.0, %v1665
          %v1667 = vpop.f32.mrb[0].mxu0
          %v1668 = vpop.f32.mrb[0].mxu0
          %v1669 = vadd.f32 0.0, %v1668
          %v1670 = vpop.f32.mrb[0].mxu0
          %1671 = vmatprep.mubr.bf16.mxu0 0
          %1672 = vmatmul.mubr.bf16.gmra.mrb[0].mxu0 %v1590
          %v1673 = vpop.f32.mrb[0].mxu0
          %v1674 = vadd.f32 0.0, %v1673
          %v1675 = vpop.f32.mrb[0].mxu0
          %v1676 = vpop.f32.mrb[0].mxu0
          %v1677 = vadd.f32 0.0, %v1676
          %v1678 = vpop.f32.mrb[0].mxu0
          %1679 = vmatprep.mubr.bf16.mxu0 0
          %1680 = vmatmul.mubr.bf16.gmra.mrb[0].mxu0 %v1593
          %v1681 = vpop.f32.mrb[0].mxu0
          %v1682 = vadd.f32 0.0, %v1681
          %v1683 = vpop.f32.mrb[0].mxu0
          %v1684 = vpop.f32.mrb[0].mxu0
          %v1685 = vadd.f32 0.0, %v1684
          %v1686 = vpop.f32.mrb[0].mxu0
          %1687 = vmatprep.mubr.bf16.mxu0 0
          %1688 = vmatmul.mubr.bf16.gmra.mrb[0].mxu0 %v1596
          %v1689 = vpop.f32.mrb[0].mxu0
          %v1690 = vadd.f32 0.0, %v1689
          %v1691 = vpop.f32.mrb[0].mxu0
          %v1692 = vpop.f32.mrb[0].mxu0
          %v1693 = vadd.f32 0.0, %v1692
          %v1694 = vpop.f32.mrb[0].mxu0
          %1695 = vmatprep.mubr.bf16.mxu0 0
          %1696 = vmatmul.mubr.bf16.gmra.mrb[0].mxu0 %v1599
          %v1697 = vpop.f32.mrb[0].mxu0
          %v1698 = vadd.f32 0.0, %v1697
          %v1699 = vpop.f32.mrb[0].mxu0
          %v1700 = vpop.f32.mrb[0].mxu0
          %v1701 = vadd.f32 0.0, %v1700
          %v1702 = vpop.f32.mrb[0].mxu0
          %1703 = vmatprep.mubr.bf16.mxu0 0
          %1704 = vmatmul.mubr.bf16.gmra.mrb[0].mxu0 %v1602
          %v1705 = vpop.f32.mrb[0].mxu0
          %v1706 = vadd.f32 0.0, %v1705
          %v1707 = vpop.f32.mrb[0].mxu0
          %v1708 = vpop.f32.mrb[0].mxu0
          %v1709 = vadd.f32 0.0, %v1708
          %v1710 = vpop.f32.mrb[0].mxu0
          %1711 = vdwg.mxu0
          %v1712 = vadd.f32 %v1459, %v1642
          %v1713 = vadd.f32 %v1460, %v1645
          %v1714 = vadd.f32 %v1461, %v1650
          %v1715 = vadd.f32 %v1462, %v1653
          %v1716 = vadd.f32 %v1463, %v1658
          %v1717 = vadd.f32 %v1464, %v1661
          %v1718 = vadd.f32 %v1465, %v1666
          %v1719 = vadd.f32 %v1466, %v1669
          %v1720 = vadd.f32 %v1467, %v1674
          %v1721 = vadd.f32 %v1468, %v1677
          %v1722 = vadd.f32 %v1469, %v1682
          %v1723 = vadd.f32 %v1470, %v1685
          %v1724 = vadd.f32 %v1471, %v1690
          %v1725 = vadd.f32 %v1472, %v1693
          %v1726 = vadd.f32 %v1473, %v1698
          %v1727 = vadd.f32 %v1474, %v1701
          %v1728 = vadd.f32 %v1475, %v1706
          %v1729 = vadd.f32 %v1476, %v1709
          %v1730 = vld [vmem:[#allocation2 + $0x18] sm:$0xff]
          %v1731 = vld [vmem:[#allocation2 + $0x20] sm:$0xff]
          %v1732 = vld [vmem:[#allocation2 + $0x28] sm:$0xff]
          %v1733 = vld [vmem:[#allocation2 + $0x30] sm:$0xff]
          %v1734 = vld [vmem:[#allocation2 + $0x38] sm:$0xff]
          %v1735 = vld [vmem:[#allocation2 + $0x40] sm:$0xff]
          %v1736 = vld [vmem:[#allocation2 + $0x48] sm:$0xff]
          %v1737 = vld [vmem:[#allocation2 + $0x50] sm:$0xff]
          %v1738 = vld [vmem:[#allocation2 + $0x58] sm:$0xff]
          %v1739 = vld [vmem:[#allocation2 + $0x60] sm:$0x1]
          %s1740 = scalar_lea.vmem %s300, 72 [#allocation4]
          %v1741 = vld [vmem:[%s1740] sm:$0xf]
          %v1742 = vld [vmem:[%s1740 + $0x4] sm:$0xf]
          %v1743 = vld [vmem:[%s1740 + $0x8] sm:$0x1]
          %v1745 = vshrl.u32 %v1730, 16
          %v1747 = vshll.u32 %v1730, 16
          %v1749 = vrot.slane %v1747, 1
          %v1750 = vor.u32 %v1745, %v1749
          %v1752 = vshll.u32 %v1731, 16
          %v1754 = vrot.slane %v1752, 1
          %v1755 = vsel %vm1491, %v1750, %v1754
          %v1756 = vshrl.u32 %v1731, 16
          %v1758 = vor.u32 %v1756, %v1754
          %v1760 = vshll.u32 %v1732, 16
          %v1762 = vrot.slane %v1760, 1
          %v1763 = vsel %vm1491, %v1758, %v1762
          %v1764 = vshrl.u32 %v1732, 16
          %v1766 = vor.u32 %v1764, %v1762
          %v1768 = vshll.u32 %v1733, 16
          %v1770 = vrot.slane %v1768, 1
          %v1771 = vsel %vm1491, %v1766, %v1770
          %v1772 = vshrl.u32 %v1733, 16
          %v1774 = vor.u32 %v1772, %v1770
          %v1776 = vshll.u32 %v1734, 16
          %v1778 = vrot.slane %v1776, 1
          %v1779 = vsel %vm1491, %v1774, %v1778
          %v1780 = vshrl.u32 %v1734, 16
          %v1782 = vor.u32 %v1780, %v1778
          %v1784 = vshll.u32 %v1735, 16
          %v1786 = vrot.slane %v1784, 1
          %v1787 = vsel %vm1491, %v1782, %v1786
          %v1788 = vshrl.u32 %v1735, 16
          %v1790 = vor.u32 %v1788, %v1786
          %v1792 = vshll.u32 %v1736, 16
          %v1794 = vrot.slane %v1792, 1
          %v1795 = vsel %vm1491, %v1790, %v1794
          %v1796 = vshrl.u32 %v1736, 16
          %v1798 = vor.u32 %v1796, %v1794
          %v1800 = vshll.u32 %v1737, 16
          %v1802 = vrot.slane %v1800, 1
          %v1803 = vsel %vm1491, %v1798, %v1802
          %v1804 = vshrl.u32 %v1737, 16
          %v1806 = vor.u32 %v1804, %v1802
          %v1808 = vshll.u32 %v1738, 16
          %v1810 = vrot.slane %v1808, 1
          %v1811 = vsel %vm1491, %v1806, %v1810
          %v1812 = vshrl.u32 %v1738, 16
          %v1814 = vor.u32 %v1812, %v1810
          %v1816 = vshll.u32 %v1739, 16
          %v1818 = vrot.slane %v1816, 1
          %v1819 = vsel %vm1491, %v1814, %v1818
          %v1823 = vunpack.c.l.b16 %v1741
          %v1824 = vunpack.c.l.b16 %v1742
          %v1825 = vunpack.c.l.b16 %v1743
          %v1826 = vpack.c.b16 %v1824, %v1823
          %v1827 = vpack.c.b16 %v1825, %v1825
          %v1830 = vsel %vm493, %v1755, 0
          %v1833 = vsel %vm493, %v1763, 0
          %v1836 = vsel %vm493, %v1771, 0
          %v1839 = vsel %vm493, %v1779, 0
          %v1842 = vsel %vm493, %v1787, 0
          %v1845 = vsel %vm493, %v1795, 0
          %v1848 = vsel %vm493, %v1803, 0
          %v1851 = vsel %vm493, %v1811, 0
          %v1854 = vsel %vm493, %v1819, 0
          %v1857 = vsel %vm521, %v1827, 0
          %1859 = vmatprep.subr.bf16.mxu0 0
          %1860 = vmatpush1.bf16.msra.mxu0 %v1826
          %1861 = vmatprep.subr.bf16.mxu0 0
          %1862 = vmatpush1.bf16.msra.mxu0 %v1857
          %1863 = vmatprep.subr.bf16.mxu0 0
          %1864 = vmatpush1.bf16.msra.mxu0 0
          %1865 = vmatprep.subr.bf16.mxu0 0
          %1866 = vmatpush1.bf16.msra.mxu0 0
          %1867 = vmatprep.subr.bf16.mxu0 0
          %1868 = vmatpush1.bf16.msra.mxu0 0
          %1869 = vmatprep.subr.bf16.mxu0 0
          %1870 = vmatpush1.bf16.msra.mxu0 0
          %1871 = vmatprep.subr.bf16.mxu0 0
          %1872 = vmatpush1.bf16.msra.mxu0 0
          %1873 = vmatprep.subr.bf16.mxu0 0
          %1874 = vmatpush1.bf16.msra.mxu0 0
          %1875 = vmatprep.subr.bf16.mxu0 0
          %1876 = vmatpush1.bf16.msra.mxu0 0
          %1877 = vmatprep.subr.bf16.mxu0 0
          %1878 = vmatpush1.bf16.msra.mxu0 0
          %1879 = vmatprep.subr.bf16.mxu0 0
          %1880 = vmatpush1.bf16.msra.mxu0 0
          %1881 = vmatprep.subr.bf16.mxu0 0
          %1882 = vmatpush1.bf16.msra.mxu0 0
          %1883 = vmatprep.subr.bf16.mxu0 0
          %1884 = vmatpush1.bf16.msra.mxu0 0
          %1885 = vmatprep.subr.bf16.mxu0 0
          %1886 = vmatpush1.bf16.msra.mxu0 0
          %1887 = vmatprep.subr.bf16.mxu0 0
          %1888 = vmatpush1.bf16.msra.mxu0 0
          %1889 = vmatprep.subr.bf16.mxu0 0
          %1890 = vmatpush1.bf16.msra.mxu0 0
          %1891 = vmatprep.mubr.bf16.mxu0 0
          %1892 = vmatmul.mubr.bf16.gmra.mrb[0].mxu0 %v1830
          %v1893 = vpop.f32.mrb[0].mxu0
          %v1894 = vadd.f32 0.0, %v1893
          %v1895 = vpop.f32.mrb[0].mxu0
          %v1896 = vpop.f32.mrb[0].mxu0
          %v1897 = vadd.f32 0.0, %v1896
          %v1898 = vpop.f32.mrb[0].mxu0
          %1899 = vmatprep.mubr.bf16.mxu0 0
          %1900 = vmatmul.mubr.bf16.gmra.mrb[0].mxu0 %v1833
          %v1901 = vpop.f32.mrb[0].mxu0
          %v1902 = vadd.f32 0.0, %v1901
          %v1903 = vpop.f32.mrb[0].mxu0
          %v1904 = vpop.f32.mrb[0].mxu0
          %v1905 = vadd.f32 0.0, %v1904
          %v1906 = vpop.f32.mrb[0].mxu0
          %1907 = vmatprep.mubr.bf16.mxu0 0
          %1908 = vmatmul.mubr.bf16.gmra.mrb[0].mxu0 %v1836
          %v1909 = vpop.f32.mrb[0].mxu0
          %v1910 = vadd.f32 0.0, %v1909
          %v1911 = vpop.f32.mrb[0].mxu0
          %v1912 = vpop.f32.mrb[0].mxu0
          %v1913 = vadd.f32 0.0, %v1912
          %v1914 = vpop.f32.mrb[0].mxu0
          %1915 = vmatprep.mubr.bf16.mxu0 0
          %1916 = vmatmul.mubr.bf16.gmra.mrb[0].mxu0 %v1839
          %v1917 = vpop.f32.mrb[0].mxu0
          %v1918 = vadd.f32 0.0, %v1917
          %v1919 = vpop.f32.mrb[0].mxu0
          %v1920 = vpop.f32.mrb[0].mxu0
          %v1921 = vadd.f32 0.0, %v1920
          %v1922 = vpop.f32.mrb[0].mxu0
          %1923 = vmatprep.mubr.bf16.mxu0 0
          %1924 = vmatmul.mubr.bf16.gmra.mrb[0].mxu0 %v1842
          %v1925 = vpop.f32.mrb[0].mxu0
          %v1926 = vadd.f32 0.0, %v1925
          %v1927 = vpop.f32.mrb[0].mxu0
          %v1928 = vpop.f32.mrb[0].mxu0
          %v1929 = vadd.f32 0.0, %v1928
          %v1930 = vpop.f32.mrb[0].mxu0
          %1931 = vmatprep.mubr.bf16.mxu0 0
          %1932 = vmatmul.mubr.bf16.gmra.mrb[0].mxu0 %v1845
          %v1933 = vpop.f32.mrb[0].mxu0
          %v1934 = vadd.f32 0.0, %v1933
          %v1935 = vpop.f32.mrb[0].mxu0
          %v1936 = vpop.f32.mrb[0].mxu0
          %v1937 = vadd.f32 0.0, %v1936
          %v1938 = vpop.f32.mrb[0].mxu0
          %1939 = vmatprep.mubr.bf16.mxu0 0
          %1940 = vmatmul.mubr.bf16.gmra.mrb[0].mxu0 %v1848
          %v1941 = vpop.f32.mrb[0].mxu0
          %v1942 = vadd.f32 0.0, %v1941
          %v1943 = vpop.f32.mrb[0].mxu0
          %v1944 = vpop.f32.mrb[0].mxu0
          %v1945 = vadd.f32 0.0, %v1944
          %v1946 = vpop.f32.mrb[0].mxu0
          %1947 = vmatprep.mubr.bf16.mxu0 0
          %1948 = vmatmul.mubr.bf16.gmra.mrb[0].mxu0 %v1851
          %v1949 = vpop.f32.mrb[0].mxu0
          %v1950 = vadd.f32 0.0, %v1949
          %v1951 = vpop.f32.mrb[0].mxu0
          %v1952 = vpop.f32.mrb[0].mxu0
          %v1953 = vadd.f32 0.0, %v1952
          %v1954 = vpop.f32.mrb[0].mxu0
          %1955 = vmatprep.mubr.bf16.mxu0 0
          %1956 = vmatmul.mubr.bf16.gmra.mrb[0].mxu0 %v1854
          %v1957 = vpop.f32.mrb[0].mxu0
          %v1958 = vadd.f32 0.0, %v1957
          %v1959 = vpop.f32.mrb[0].mxu0
          %v1960 = vpop.f32.mrb[0].mxu0
          %v1961 = vadd.f32 0.0, %v1960
          %v1962 = vpop.f32.mrb[0].mxu0
          %1963 = vdwg.mxu0
          %v1964 = vadd.f32 %v1712, %v1894
          %v1965 = vadd.f32 %v1713, %v1897
          %v1966 = vadd.f32 %v1714, %v1902
          %v1967 = vadd.f32 %v1715, %v1905
          %v1968 = vadd.f32 %v1716, %v1910
          %v1969 = vadd.f32 %v1717, %v1913
          %v1970 = vadd.f32 %v1718, %v1918
          %v1971 = vadd.f32 %v1719, %v1921
          %v1972 = vadd.f32 %v1720, %v1926
          %v1973 = vadd.f32 %v1721, %v1929
          %v1974 = vadd.f32 %v1722, %v1934
          %v1975 = vadd.f32 %v1723, %v1937
          %v1976 = vadd.f32 %v1724, %v1942
          %v1977 = vadd.f32 %v1725, %v1945
          %v1978 = vadd.f32 %v1726, %v1950
          %v1979 = vadd.f32 %v1727, %v1953
          %v1980 = vadd.f32 %v1728, %v1958
          %v1981 = vadd.f32 %v1729, %v1961
          %v1982 = vld [vmem:[#allocation2 + $0x18] sm:$0xfe]
          %s1983 = scalar_lea.vmem %s300, 84 [#allocation4]
          %v1984 = vld [vmem:[%s1983] sm:$0xf]
          %v1985 = vld [vmem:[%s1983 + $0x4] sm:$0xf]
          %v1986 = vld [vmem:[%s1983 + $0x8] sm:$0x1]
          %vm1997 = vcmask 1046528
          %v1998 = vrot.slane %v1982, 1
          %v1999 = vrot.slane %v1731, 1
          %v2000 = vsel %vm1997, %v1998, %v1999
          %v2001 = vrot.slane %v1732, 1
          %v2002 = vsel %vm1997, %v1999, %v2001
          %v2003 = vrot.slane %v1733, 1
          %v2004 = vsel %vm1997, %v2001, %v2003
          %v2005 = vrot.slane %v1734, 1
          %v2006 = vsel %vm1997, %v2003, %v2005
          %v2007 = vrot.slane %v1735, 1
          %v2008 = vsel %vm1997, %v2005, %v2007
          %v2009 = vrot.slane %v1736, 1
          %v2010 = vsel %vm1997, %v2007, %v2009
          %v2011 = vrot.slane %v1737, 1
          %v2012 = vsel %vm1997, %v2009, %v2011
          %v2013 = vrot.slane %v1738, 1
          %v2014 = vsel %vm1997, %v2011, %v2013
          %v2015 = vrot.slane %v1739, 1
          %v2016 = vsel %vm1997, %v2013, %v2015
          %v2020 = vunpack.c.l.b16 %v1984
          %v2021 = vunpack.c.l.b16 %v1985
          %v2022 = vunpack.c.l.b16 %v1986
          %v2023 = vpack.c.b16 %v2021, %v2020
          %v2024 = vpack.c.b16 %v2022, %v2022
          %v2027 = vsel %vm493, %v2000, 0
          %v2030 = vsel %vm493, %v2002, 0
          %v2033 = vsel %vm493, %v2004, 0
          %v2036 = vsel %vm493, %v2006, 0
          %v2039 = vsel %vm493, %v2008, 0
          %v2042 = vsel %vm493, %v2010, 0
          %v2045 = vsel %vm493, %v2012, 0
          %v2048 = vsel %vm493, %v2014, 0
          %v2051 = vsel %vm493, %v2016, 0
          %v2054 = vsel %vm521, %v2024, 0
          %2056 = vmatprep.subr.bf16.mxu0 0
          %2057 = vmatpush1.bf16.msra.mxu0 %v2023
          %2058 = vmatprep.subr.bf16.mxu0 0
          %2059 = vmatpush1.bf16.msra.mxu0 %v2054
          %2060 = vmatprep.subr.bf16.mxu0 0
          %2061 = vmatpush1.bf16.msra.mxu0 0
          %2062 = vmatprep.subr.bf16.mxu0 0
          %2063 = vmatpush1.bf16.msra.mxu0 0
          %2064 = vmatprep.subr.bf16.mxu0 0
          %2065 = vmatpush1.bf16.msra.mxu0 0
          %2066 = vmatprep.subr.bf16.mxu0 0
          %2067 = vmatpush1.bf16.msra.mxu0 0
          %2068 = vmatprep.subr.bf16.mxu0 0
          %2069 = vmatpush1.bf16.msra.mxu0 0
          %2070 = vmatprep.subr.bf16.mxu0 0
          %2071 = vmatpush1.bf16.msra.mxu0 0
          %2072 = vmatprep.subr.bf16.mxu0 0
          %2073 = vmatpush1.bf16.msra.mxu0 0
          %2074 = vmatprep.subr.bf16.mxu0 0
          %2075 = vmatpush1.bf16.msra.mxu0 0
          %2076 = vmatprep.subr.bf16.mxu0 0
          %2077 = vmatpush1.bf16.msra.mxu0 0
          %2078 = vmatprep.subr.bf16.mxu0 0
          %2079 = vmatpush1.bf16.msra.mxu0 0
          %2080 = vmatprep.subr.bf16.mxu0 0
          %2081 = vmatpush1.bf16.msra.mxu0 0
          %2082 = vmatprep.subr.bf16.mxu0 0
          %2083 = vmatpush1.bf16.msra.mxu0 0
          %2084 = vmatprep.subr.bf16.mxu0 0
          %2085 = vmatpush1.bf16.msra.mxu0 0
          %2086 = vmatprep.subr.bf16.mxu0 0
          %2087 = vmatpush1.bf16.msra.mxu0 0
          %2088 = vmatprep.mubr.bf16.mxu0 0
          %2089 = vmatmul.mubr.bf16.gmra.mrb[0].mxu0 %v2027
          %v2090 = vpop.f32.mrb[0].mxu0
          %v2091 = vadd.f32 0.0, %v2090
          %v2092 = vpop.f32.mrb[0].mxu0
          %v2093 = vpop.f32.mrb[0].mxu0
          %v2094 = vadd.f32 0.0, %v2093
          %v2095 = vpop.f32.mrb[0].mxu0
          %2096 = vmatprep.mubr.bf16.mxu0 0
          %2097 = vmatmul.mubr.bf16.gmra.mrb[0].mxu0 %v2030
          %v2098 = vpop.f32.mrb[0].mxu0
          %v2099 = vadd.f32 0.0, %v2098
          %v2100 = vpop.f32.mrb[0].mxu0
          %v2101 = vpop.f32.mrb[0].mxu0
          %v2102 = vadd.f32 0.0, %v2101
          %v2103 = vpop.f32.mrb[0].mxu0
          %2104 = vmatprep.mubr.bf16.mxu0 0
          %2105 = vmatmul.mubr.bf16.gmra.mrb[0].mxu0 %v2033
          %v2106 = vpop.f32.mrb[0].mxu0
          %v2107 = vadd.f32 0.0, %v2106
          %v2108 = vpop.f32.mrb[0].mxu0
          %v2109 = vpop.f32.mrb[0].mxu0
          %v2110 = vadd.f32 0.0, %v2109
          %v2111 = vpop.f32.mrb[0].mxu0
          %2112 = vmatprep.mubr.bf16.mxu0 0
          %2113 = vmatmul.mubr.bf16.gmra.mrb[0].mxu0 %v2036
          %v2114 = vpop.f32.mrb[0].mxu0
          %v2115 = vadd.f32 0.0, %v2114
          %v2116 = vpop.f32.mrb[0].mxu0
          %v2117 = vpop.f32.mrb[0].mxu0
          %v2118 = vadd.f32 0.0, %v2117
          %v2119 = vpop.f32.mrb[0].mxu0
          %2120 = vmatprep.mubr.bf16.mxu0 0
          %2121 = vmatmul.mubr.bf16.gmra.mrb[0].mxu0 %v2039
          %v2122 = vpop.f32.mrb[0].mxu0
          %v2123 = vadd.f32 0.0, %v2122
          %v2124 = vpop.f32.mrb[0].mxu0
          %v2125 = vpop.f32.mrb[0].mxu0
          %v2126 = vadd.f32 0.0, %v2125
          %v2127 = vpop.f32.mrb[0].mxu0
          %2128 = vmatprep.mubr.bf16.mxu0 0
          %2129 = vmatmul.mubr.bf16.gmra.mrb[0].mxu0 %v2042
          %v2130 = vpop.f32.mrb[0].mxu0
          %v2131 = vadd.f32 0.0, %v2130
          %v2132 = vpop.f32.mrb[0].mxu0
          %v2133 = vpop.f32.mrb[0].mxu0
          %v2134 = vadd.f32 0.0, %v2133
          %v2135 = vpop.f32.mrb[0].mxu0
          %2136 = vmatprep.mubr.bf16.mxu0 0
          %2137 = vmatmul.mubr.bf16.gmra.mrb[0].mxu0 %v2045
          %v2138 = vpop.f32.mrb[0].mxu0
          %v2139 = vadd.f32 0.0, %v2138
          %v2140 = vpop.f32.mrb[0].mxu0
          %v2141 = vpop.f32.mrb[0].mxu0
          %v2142 = vadd.f32 0.0, %v2141
          %v2143 = vpop.f32.mrb[0].mxu0
          %2144 = vmatprep.mubr.bf16.mxu0 0
          %2145 = vmatmul.mubr.bf16.gmra.mrb[0].mxu0 %v2048
          %v2146 = vpop.f32.mrb[0].mxu0
          %v2147 = vadd.f32 0.0, %v2146
          %v2148 = vpop.f32.mrb[0].mxu0
          %v2149 = vpop.f32.mrb[0].mxu0
          %v2150 = vadd.f32 0.0, %v2149
          %v2151 = vpop.f32.mrb[0].mxu0
          %2152 = vmatprep.mubr.bf16.mxu0 0
          %2153 = vmatmul.mubr.bf16.gmra.mrb[0].mxu0 %v2051
          %v2154 = vpop.f32.mrb[0].mxu0
          %v2155 = vadd.f32 0.0, %v2154
          %v2156 = vpop.f32.mrb[0].mxu0
          %v2157 = vpop.f32.mrb[0].mxu0
          %v2158 = vadd.f32 0.0, %v2157
          %v2159 = vpop.f32.mrb[0].mxu0
          %2160 = vdwg.mxu0
          %v2161 = vadd.f32 %v1964, %v2091
          %v2162 = vadd.f32 %v1965, %v2094
          %v2163 = vadd.f32 %v1966, %v2099
          %v2164 = vadd.f32 %v1967, %v2102
          %v2165 = vadd.f32 %v1968, %v2107
          %v2166 = vadd.f32 %v1969, %v2110
          %v2167 = vadd.f32 %v1970, %v2115
          %v2168 = vadd.f32 %v1971, %v2118
          %v2169 = vadd.f32 %v1972, %v2123
          %v2170 = vadd.f32 %v1973, %v2126
          %v2171 = vadd.f32 %v1974, %v2131
          %v2172 = vadd.f32 %v1975, %v2134
          %v2173 = vadd.f32 %v1976, %v2139
          %v2174 = vadd.f32 %v1977, %v2142
          %v2175 = vadd.f32 %v1978, %v2147
          %v2176 = vadd.f32 %v1979, %v2150
          %v2177 = vadd.f32 %v1980, %v2155
          %v2178 = vadd.f32 %v1981, %v2158
          %v2179 = vld [vmem:[#allocation2 + $0x60] sm:$0x3]
          %s2180 = scalar_lea.vmem %s300, 96 [#allocation4]
          %v2181 = vld [vmem:[%s2180] sm:$0xf]
          %v2182 = vld [vmem:[%s2180 + $0x4] sm:$0xf]
          %v2183 = vld [vmem:[%s2180 + $0x8] sm:$0x1]
          %vm2184 = vsmask.f32 6400
          %v2186 = vshrl.u32 %v1982, 16
          %v2188 = vrot.slane %v2186, 1
          %v2189 = vshll.u32 %v1982, 16
          %v2191 = vrot.slane %v2189, 2
          %v2192 = vor.u32 %v2188, %v2191
          %v2193 = vrot.slane %v1756, 1
          %v2194 = vrot.slane %v1752, 2
          %v2195 = vor.u32 %v2193, %v2194
          %v2196 = vsel %vm2184, %v2192, %v2195
          %v2197 = vrot.slane %v1764, 1
          %v2198 = vrot.slane %v1760, 2
          %v2199 = vor.u32 %v2197, %v2198
          %v2200 = vsel %vm2184, %v2195, %v2199
          %v2201 = vrot.slane %v1772, 1
          %v2202 = vrot.slane %v1768, 2
          %v2203 = vor.u32 %v2201, %v2202
          %v2204 = vsel %vm2184, %v2199, %v2203
          %v2205 = vrot.slane %v1780, 1
          %v2206 = vrot.slane %v1776, 2
          %v2207 = vor.u32 %v2205, %v2206
          %v2208 = vsel %vm2184, %v2203, %v2207
          %v2209 = vrot.slane %v1788, 1
          %v2210 = vrot.slane %v1784, 2
          %v2211 = vor.u32 %v2209, %v2210
          %v2212 = vsel %vm2184, %v2207, %v2211
          %v2213 = vrot.slane %v1796, 1
          %v2214 = vrot.slane %v1792, 2
          %v2215 = vor.u32 %v2213, %v2214
          %v2216 = vsel %vm2184, %v2211, %v2215
          %v2217 = vrot.slane %v1804, 1
          %v2218 = vrot.slane %v1800, 2
          %v2219 = vor.u32 %v2217, %v2218
          %v2220 = vsel %vm2184, %v2215, %v2219
          %v2221 = vrot.slane %v1812, 1
          %v2222 = vrot.slane %v1808, 2
          %v2223 = vor.u32 %v2221, %v2222
          %v2224 = vsel %vm2184, %v2219, %v2223
          %v2226 = vshrl.u32 %v2179, 16
          %v2228 = vrot.slane %v2226, 1
          %v2229 = vshll.u32 %v2179, 16
          %v2231 = vrot.slane %v2229, 2
          %v2232 = vor.u32 %v2228, %v2231
          %v2233 = vsel %vm2184, %v2223, %v2232
          %v2237 = vunpack.c.l.b16 %v2181
          %v2238 = vunpack.c.l.b16 %v2182
          %v2239 = vunpack.c.l.b16 %v2183
          %v2240 = vpack.c.b16 %v2238, %v2237
          %v2241 = vpack.c.b16 %v2239, %v2239
          %v2244 = vsel %vm493, %v2196, 0
          %v2247 = vsel %vm493, %v2200, 0
          %v2250 = vsel %vm493, %v2204, 0
          %v2253 = vsel %vm493, %v2208, 0
          %v2256 = vsel %vm493, %v2212, 0
          %v2259 = vsel %vm493, %v2216, 0
          %v2262 = vsel %vm493, %v2220, 0
          %v2265 = vsel %vm493, %v2224, 0
          %v2268 = vsel %vm493, %v2233, 0
          %v2271 = vsel %vm521, %v2241, 0
          %2273 = vmatprep.subr.bf16.mxu0 0
          %2274 = vmatpush1.bf16.msra.mxu0 %v2240
          %2275 = vmatprep.subr.bf16.mxu0 0
          %2276 = vmatpush1.bf16.msra.mxu0 %v2271
          %2277 = vmatprep.subr.bf16.mxu0 0
          %2278 = vmatpush1.bf16.msra.mxu0 0
          %2279 = vmatprep.subr.bf16.mxu0 0
          %2280 = vmatpush1.bf16.msra.mxu0 0
          %2281 = vmatprep.subr.bf16.mxu0 0
          %2282 = vmatpush1.bf16.msra.mxu0 0
          %2283 = vmatprep.subr.bf16.mxu0 0
          %2284 = vmatpush1.bf16.msra.mxu0 0
          %2285 = vmatprep.subr.bf16.mxu0 0
          %2286 = vmatpush1.bf16.msra.mxu0 0
          %2287 = vmatprep.subr.bf16.mxu0 0
          %2288 = vmatpush1.bf16.msra.mxu0 0
          %2289 = vmatprep.subr.bf16.mxu0 0
          %2290 = vmatpush1.bf16.msra.mxu0 0
          %2291 = vmatprep.subr.bf16.mxu0 0
          %2292 = vmatpush1.bf16.msra.mxu0 0
          %2293 = vmatprep.subr.bf16.mxu0 0
          %2294 = vmatpush1.bf16.msra.mxu0 0
          %2295 = vmatprep.subr.bf16.mxu0 0
          %2296 = vmatpush1.bf16.msra.mxu0 0
          %2297 = vmatprep.subr.bf16.mxu0 0
          %2298 = vmatpush1.bf16.msra.mxu0 0
          %2299 = vmatprep.subr.bf16.mxu0 0
          %2300 = vmatpush1.bf16.msra.mxu0 0
          %2301 = vmatprep.subr.bf16.mxu0 0
          %2302 = vmatpush1.bf16.msra.mxu0 0
          %2303 = vmatprep.subr.bf16.mxu0 0
          %2304 = vmatpush1.bf16.msra.mxu0 0
          %2305 = vmatprep.mubr.bf16.mxu0 0
          %2306 = vmatmul.mubr.bf16.gmra.mrb[0].mxu0 %v2244
          %v2307 = vpop.f32.mrb[0].mxu0
          %v2308 = vadd.f32 0.0, %v2307
          %v2309 = vpop.f32.mrb[0].mxu0
          %v2310 = vpop.f32.mrb[0].mxu0
          %v2311 = vadd.f32 0.0, %v2310
          %v2312 = vpop.f32.mrb[0].mxu0
          %2313 = vmatprep.mubr.bf16.mxu0 0
          %2314 = vmatmul.mubr.bf16.gmra.mrb[0].mxu0 %v2247
          %v2315 = vpop.f32.mrb[0].mxu0
          %v2316 = vadd.f32 0.0, %v2315
          %v2317 = vpop.f32.mrb[0].mxu0
          %v2318 = vpop.f32.mrb[0].mxu0
          %v2319 = vadd.f32 0.0, %v2318
          %v2320 = vpop.f32.mrb[0].mxu0
          %2321 = vmatprep.mubr.bf16.mxu0 0
          %2322 = vmatmul.mubr.bf16.gmra.mrb[0].mxu0 %v2250
          %v2323 = vpop.f32.mrb[0].mxu0
          %v2324 = vadd.f32 0.0, %v2323
          %v2325 = vpop.f32.mrb[0].mxu0
          %v2326 = vpop.f32.mrb[0].mxu0
          %v2327 = vadd.f32 0.0, %v2326
          %v2328 = vpop.f32.mrb[0].mxu0
          %2329 = vmatprep.mubr.bf16.mxu0 0
          %2330 = vmatmul.mubr.bf16.gmra.mrb[0].mxu0 %v2253
          %v2331 = vpop.f32.mrb[0].mxu0
          %v2332 = vadd.f32 0.0, %v2331
          %v2333 = vpop.f32.mrb[0].mxu0
          %v2334 = vpop.f32.mrb[0].mxu0
          %v2335 = vadd.f32 0.0, %v2334
          %v2336 = vpop.f32.mrb[0].mxu0
          %2337 = vmatprep.mubr.bf16.mxu0 0
          %2338 = vmatmul.mubr.bf16.gmra.mrb[0].mxu0 %v2256
          %v2339 = vpop.f32.mrb[0].mxu0
          %v2340 = vadd.f32 0.0, %v2339
          %v2341 = vpop.f32.mrb[0].mxu0
          %v2342 = vpop.f32.mrb[0].mxu0
          %v2343 = vadd.f32 0.0, %v2342
          %v2344 = vpop.f32.mrb[0].mxu0
          %2345 = vmatprep.mubr.bf16.mxu0 0
          %2346 = vmatmul.mubr.bf16.gmra.mrb[0].mxu0 %v2259
          %v2347 = vpop.f32.mrb[0].mxu0
          %v2348 = vadd.f32 0.0, %v2347
          %v2349 = vpop.f32.mrb[0].mxu0
          %v2350 = vpop.f32.mrb[0].mxu0
          %v2351 = vadd.f32 0.0, %v2350
          %v2352 = vpop.f32.mrb[0].mxu0
          %2353 = vmatprep.mubr.bf16.mxu0 0
          %2354 = vmatmul.mubr.bf16.gmra.mrb[0].mxu0 %v2262
          %v2355 = vpop.f32.mrb[0].mxu0
          %v2356 = vadd.f32 0.0, %v2355
          %v2357 = vpop.f32.mrb[0].mxu0
          %v2358 = vpop.f32.mrb[0].mxu0
          %v2359 = vadd.f32 0.0, %v2358
          %v2360 = vpop.f32.mrb[0].mxu0
          %2361 = vmatprep.mubr.bf16.mxu0 0
          %2362 = vmatmul.mubr.bf16.gmra.mrb[0].mxu0 %v2265
          %v2363 = vpop.f32.mrb[0].mxu0
          %v2364 = vadd.f32 0.0, %v2363
          %v2365 = vpop.f32.mrb[0].mxu0
          %v2366 = vpop.f32.mrb[0].mxu0
          %v2367 = vadd.f32 0.0, %v2366
          %v2368 = vpop.f32.mrb[0].mxu0
          %2369 = vmatprep.mubr.bf16.mxu0 0
          %2370 = vmatmul.mubr.bf16.gmra.mrb[0].mxu0 %v2268
          %v2371 = vpop.f32.mrb[0].mxu0
          %v2372 = vadd.f32 0.0, %v2371
          %v2373 = vpop.f32.mrb[0].mxu0
          %v2374 = vpop.f32.mrb[0].mxu0
          %v2375 = vadd.f32 0.0, %v2374
          %v2376 = vpop.f32.mrb[0].mxu0
          %2377 = vdwg.mxu0
          %v2378 = vadd.f32 %v2161, %v2308
          %v2379 = vadd.f32 %v2162, %v2311
          %v2380 = vadd.f32 %v2163, %v2316
          %v2381 = vadd.f32 %v2164, %v2319
          %v2382 = vadd.f32 %v2165, %v2324
          %v2383 = vadd.f32 %v2166, %v2327
          %v2384 = vadd.f32 %v2167, %v2332
          %v2385 = vadd.f32 %v2168, %v2335
          %v2386 = vadd.f32 %v2169, %v2340
          %v2387 = vadd.f32 %v2170, %v2343
          %v2388 = vadd.f32 %v2171, %v2348
          %v2389 = vadd.f32 %v2172, %v2351
          %v2390 = vadd.f32 %v2173, %v2356
          %v2391 = vadd.f32 %v2174, %v2359
          %v2392 = vadd.f32 %v2175, %v2364
          %v2393 = vadd.f32 %v2176, %v2367
          %v2394 = vadd.f32 %v2177, %v2372
          %v2395 = vadd.f32 %v2178, %v2375
          %v2396 = vld [vmem:[%s324] sm:$0x1]
          %v2398 = vlaneseq
          %v2399 = vshrl.u32 %v2398, 7
          %v2400 = vsub.s32 0, %v2399
          %v2401 = vrot.slane %v2396, %v2400
          %v2403 = vadd.f32 %v2378, %v2401
          %v2404 = vadd.f32 %v2379, %v2401
          %v2405 = vadd.f32 %v2380, %v2401
          %v2406 = vadd.f32 %v2381, %v2401
          %v2407 = vadd.f32 %v2382, %v2401
          %v2408 = vadd.f32 %v2383, %v2401
          %v2409 = vadd.f32 %v2384, %v2401
          %v2410 = vadd.f32 %v2385, %v2401
          %v2411 = vadd.f32 %v2386, %v2401
          %v2412 = vadd.f32 %v2387, %v2401
          %v2413 = vadd.f32 %v2388, %v2401
          %v2414 = vadd.f32 %v2389, %v2401
          %v2415 = vadd.f32 %v2390, %v2401
          %v2416 = vadd.f32 %v2391, %v2401
          %v2417 = vadd.f32 %v2392, %v2401
          %v2418 = vadd.f32 %v2393, %v2401
          %v2419 = vadd.f32 %v2394, %v2401
          %v2420 = vadd.f32 %v2395, %v2401
          %v2421 = vmax.f32 %v2403, 0.0
          %v2422 = vmax.f32 %v2404, 0.0
          %v2423 = vmax.f32 %v2405, 0.0
          %v2424 = vmax.f32 %v2406, 0.0
          %v2425 = vmax.f32 %v2407, 0.0
          %v2426 = vmax.f32 %v2408, 0.0
          %v2427 = vmax.f32 %v2409, 0.0
          %v2428 = vmax.f32 %v2410, 0.0
          %v2429 = vmax.f32 %v2411, 0.0
          %v2430 = vmax.f32 %v2412, 0.0
          %v2431 = vmax.f32 %v2413, 0.0
          %v2432 = vmax.f32 %v2414, 0.0
          %v2433 = vmax.f32 %v2415, 0.0
          %v2434 = vmax.f32 %v2416, 0.0
          %v2435 = vmax.f32 %v2417, 0.0
          %v2436 = vmax.f32 %v2418, 0.0
          %v2437 = vmax.f32 %v2419, 0.0
          %v2438 = vmax.f32 %v2420, 0.0
          %v2439 = vlaneseq
          %v2440 = vshrl.u32 %v2439, 7
          %v2441 = vadd.s32 %v2440, 8
          %v2442 = vadd.s32 %v2440, 16
          %v2443 = vadd.s32 %v2440, 24
          %v2444 = vadd.s32 %v2440, 32
          %v2445 = vadd.s32 %v2440, 40
          %v2446 = vadd.s32 %v2440, 48
          %v2447 = vadd.s32 %v2440, 56
          %v2448 = vadd.s32 %v2440, 64
          %v2449 = vadd.s32 %v2440, 72
          %v2450 = vadd.s32 %v2440, 80
          %v2451 = vadd.s32 %v2440, 88
          %v2452 = vadd.s32 %v2440, 96
          %v2453 = vadd.s32 %v2440, 104
          %v2454 = vadd.s32 %v2440, 112
          %v2455 = vadd.s32 %v2440, 120
          %v2456 = vadd.s32 %v2440, 128
          %v2457 = vadd.s32 %v2440, 136
          %vm2458 = vcmp.lt.s32.totalorder %v2440, 0
          %v2459 = vsub.s32 0, %v2440
          %v2460 = vsel %vm2458, %v2459, %v2440
          %v2461 = vmul.u32.u64.compose %v2460, 3817748708
          %v2462 = vextract.low.u32 %v2461
          %v2463 = vextract.high.u32 %v2461
          %v2464 = vshrl.u32 %v2463, 4
          %v2465 = vmul.u32 %v2464, 18
          %v2466 = vsub.s32 %v2460, %v2465
          %v2467 = vsub.s32 0, %v2466
          %v2468 = vsel %vm2458, %v2467, %v2466
          %vm2469 = vcmp.lt.s32.totalorder %v2441, 0
          %v2470 = vsub.s32 0, %v2441
          %v2471 = vsel %vm2469, %v2470, %v2441
          %v2472 = vmul.u32.u64.compose %v2471, 3817748708
          %v2473 = vextract.low.u32 %v2472
          %v2474 = vextract.high.u32 %v2472
          %v2475 = vshrl.u32 %v2474, 4
          %v2476 = vmul.u32 %v2475, 18
          %v2477 = vsub.s32 %v2471, %v2476
          %v2478 = vsub.s32 0, %v2477
          %v2479 = vsel %vm2469, %v2478, %v2477
          %vm2480 = vcmp.lt.s32.totalorder %v2442, 0
          %v2481 = vsub.s32 0, %v2442
          %v2482 = vsel %vm2480, %v2481, %v2442
          %v2483 = vmul.u32.u64.compose %v2482, 3817748708
          %v2484 = vextract.low.u32 %v2483
          %v2485 = vextract.high.u32 %v2483
          %v2486 = vshrl.u32 %v2485, 4
          %v2487 = vmul.u32 %v2486, 18
          %v2488 = vsub.s32 %v2482, %v2487
          %v2489 = vsub.s32 0, %v2488
          %v2490 = vsel %vm2480, %v2489, %v2488
          %vm2491 = vcmp.lt.s32.totalorder %v2443, 0
          %v2492 = vsub.s32 0, %v2443
          %v2493 = vsel %vm2491, %v2492, %v2443
          %v2494 = vmul.u32.u64.compose %v2493, 3817748708
          %v2495 = vextract.low.u32 %v2494
          %v2496 = vextract.high.u32 %v2494
          %v2497 = vshrl.u32 %v2496, 4
          %v2498 = vmul.u32 %v2497, 18
          %v2499 = vsub.s32 %v2493, %v2498
          %v2500 = vsub.s32 0, %v2499
          %v2501 = vsel %vm2491, %v2500, %v2499
          %vm2502 = vcmp.lt.s32.totalorder %v2444, 0
          %v2503 = vsub.s32 0, %v2444
          %v2504 = vsel %vm2502, %v2503, %v2444
          %v2505 = vmul.u32.u64.compose %v2504, 3817748708
          %v2506 = vextract.low.u32 %v2505
          %v2507 = vextract.high.u32 %v2505
          %v2508 = vshrl.u32 %v2507, 4
          %v2509 = vmul.u32 %v2508, 18
          %v2510 = vsub.s32 %v2504, %v2509
          %v2511 = vsub.s32 0, %v2510
          %v2512 = vsel %vm2502, %v2511, %v2510
          %vm2513 = vcmp.lt.s32.totalorder %v2445, 0
          %v2514 = vsub.s32 0, %v2445
          %v2515 = vsel %vm2513, %v2514, %v2445
          %v2516 = vmul.u32.u64.compose %v2515, 3817748708
          %v2517 = vextract.low.u32 %v2516
          %v2518 = vextract.high.u32 %v2516
          %v2519 = vshrl.u32 %v2518, 4
          %v2520 = vmul.u32 %v2519, 18
          %v2521 = vsub.s32 %v2515, %v2520
          %v2522 = vsub.s32 0, %v2521
          %v2523 = vsel %vm2513, %v2522, %v2521
          %vm2524 = vcmp.lt.s32.totalorder %v2446, 0
          %v2525 = vsub.s32 0, %v2446
          %v2526 = vsel %vm2524, %v2525, %v2446
          %v2527 = vmul.u32.u64.compose %v2526, 3817748708
          %v2528 = vextract.low.u32 %v2527
          %v2529 = vextract.high.u32 %v2527
          %v2530 = vshrl.u32 %v2529, 4
          %v2531 = vmul.u32 %v2530, 18
          %v2532 = vsub.s32 %v2526, %v2531
          %v2533 = vsub.s32 0, %v2532
          %v2534 = vsel %vm2524, %v2533, %v2532
          %vm2535 = vcmp.lt.s32.totalorder %v2447, 0
          %v2536 = vsub.s32 0, %v2447
          %v2537 = vsel %vm2535, %v2536, %v2447
          %v2538 = vmul.u32.u64.compose %v2537, 3817748708
          %v2539 = vextract.low.u32 %v2538
          %v2540 = vextract.high.u32 %v2538
          %v2541 = vshrl.u32 %v2540, 4
          %v2542 = vmul.u32 %v2541, 18
          %v2543 = vsub.s32 %v2537, %v2542
          %v2544 = vsub.s32 0, %v2543
          %v2545 = vsel %vm2535, %v2544, %v2543
          %vm2546 = vcmp.lt.s32.totalorder %v2448, 0
          %v2547 = vsub.s32 0, %v2448
          %v2548 = vsel %vm2546, %v2547, %v2448
          %v2549 = vmul.u32.u64.compose %v2548, 3817748708
          %v2550 = vextract.low.u32 %v2549
          %v2551 = vextract.high.u32 %v2549
          %v2552 = vshrl.u32 %v2551, 4
          %v2553 = vmul.u32 %v2552, 18
          %v2554 = vsub.s32 %v2548, %v2553
          %v2555 = vsub.s32 0, %v2554
          %v2556 = vsel %vm2546, %v2555, %v2554
          %vm2557 = vcmp.lt.s32.totalorder %v2449, 0
          %v2558 = vsub.s32 0, %v2449
          %v2559 = vsel %vm2557, %v2558, %v2449
          %v2560 = vmul.u32.u64.compose %v2559, 3817748708
          %v2561 = vextract.low.u32 %v2560
          %v2562 = vextract.high.u32 %v2560
          %v2563 = vshrl.u32 %v2562, 4
          %v2564 = vmul.u32 %v2563, 18
          %v2565 = vsub.s32 %v2559, %v2564
          %v2566 = vsub.s32 0, %v2565
          %v2567 = vsel %vm2557, %v2566, %v2565
          %vm2568 = vcmp.lt.s32.totalorder %v2450, 0
          %v2569 = vsub.s32 0, %v2450
          %v2570 = vsel %vm2568, %v2569, %v2450
          %v2571 = vmul.u32.u64.compose %v2570, 3817748708
          %v2572 = vextract.low.u32 %v2571
          %v2573 = vextract.high.u32 %v2571
          %v2574 = vshrl.u32 %v2573, 4
          %v2575 = vmul.u32 %v2574, 18
          %v2576 = vsub.s32 %v2570, %v2575
          %v2577 = vsub.s32 0, %v2576
          %v2578 = vsel %vm2568, %v2577, %v2576
          %vm2579 = vcmp.lt.s32.totalorder %v2451, 0
          %v2580 = vsub.s32 0, %v2451
          %v2581 = vsel %vm2579, %v2580, %v2451
          %v2582 = vmul.u32.u64.compose %v2581, 3817748708
          %v2583 = vextract.low.u32 %v2582
          %v2584 = vextract.high.u32 %v2582
          %v2585 = vshrl.u32 %v2584, 4
          %v2586 = vmul.u32 %v2585, 18
          %v2587 = vsub.s32 %v2581, %v2586
          %v2588 = vsub.s32 0, %v2587
          %v2589 = vsel %vm2579, %v2588, %v2587
          %vm2590 = vcmp.lt.s32.totalorder %v2452, 0
          %v2591 = vsub.s32 0, %v2452
          %v2592 = vsel %vm2590, %v2591, %v2452
          %v2593 = vmul.u32.u64.compose %v2592, 3817748708
          %v2594 = vextract.low.u32 %v2593
          %v2595 = vextract.high.u32 %v2593
          %v2596 = vshrl.u32 %v2595, 4
          %v2597 = vmul.u32 %v2596, 18
          %v2598 = vsub.s32 %v2592, %v2597
          %v2599 = vsub.s32 0, %v2598
          %v2600 = vsel %vm2590, %v2599, %v2598
          %vm2601 = vcmp.lt.s32.totalorder %v2453, 0
          %v2602 = vsub.s32 0, %v2453
          %v2603 = vsel %vm2601, %v2602, %v2453
          %v2604 = vmul.u32.u64.compose %v2603, 3817748708
          %v2605 = vextract.low.u32 %v2604
          %v2606 = vextract.high.u32 %v2604
          %v2607 = vshrl.u32 %v2606, 4
          %v2608 = vmul.u32 %v2607, 18
          %v2609 = vsub.s32 %v2603, %v2608
          %v2610 = vsub.s32 0, %v2609
          %v2611 = vsel %vm2601, %v2610, %v2609
          %vm2612 = vcmp.lt.s32.totalorder %v2454, 0
          %v2613 = vsub.s32 0, %v2454
          %v2614 = vsel %vm2612, %v2613, %v2454
          %v2615 = vmul.u32.u64.compose %v2614, 3817748708
          %v2616 = vextract.low.u32 %v2615
          %v2617 = vextract.high.u32 %v2615
          %v2618 = vshrl.u32 %v2617, 4
          %v2619 = vmul.u32 %v2618, 18
          %v2620 = vsub.s32 %v2614, %v2619
          %v2621 = vsub.s32 0, %v2620
          %v2622 = vsel %vm2612, %v2621, %v2620
          %vm2623 = vcmp.lt.s32.totalorder %v2455, 0
          %v2624 = vsub.s32 0, %v2455
          %v2625 = vsel %vm2623, %v2624, %v2455
          %v2626 = vmul.u32.u64.compose %v2625, 3817748708
          %v2627 = vextract.low.u32 %v2626
          %v2628 = vextract.high.u32 %v2626
          %v2629 = vshrl.u32 %v2628, 4
          %v2630 = vmul.u32 %v2629, 18
          %v2631 = vsub.s32 %v2625, %v2630
          %v2632 = vsub.s32 0, %v2631
          %v2633 = vsel %vm2623, %v2632, %v2631
          %vm2634 = vcmp.lt.s32.totalorder %v2456, 0
          %v2635 = vsub.s32 0, %v2456
          %v2636 = vsel %vm2634, %v2635, %v2456
          %v2637 = vmul.u32.u64.compose %v2636, 3817748708
          %v2638 = vextract.low.u32 %v2637
          %v2639 = vextract.high.u32 %v2637
          %v2640 = vshrl.u32 %v2639, 4
          %v2641 = vmul.u32 %v2640, 18
          %v2642 = vsub.s32 %v2636, %v2641
          %v2643 = vsub.s32 0, %v2642
          %v2644 = vsel %vm2634, %v2643, %v2642
          %vm2645 = vcmp.lt.s32.totalorder %v2457, 0
          %v2646 = vsub.s32 0, %v2457
          %v2647 = vsel %vm2645, %v2646, %v2457
          %v2648 = vmul.u32.u64.compose %v2647, 3817748708
          %v2649 = vextract.low.u32 %v2648
          %v2650 = vextract.high.u32 %v2648
          %v2651 = vshrl.u32 %v2650, 4
          %v2652 = vmul.u32 %v2651, 18
          %v2653 = vsub.s32 %v2647, %v2652
          %v2654 = vsub.s32 0, %v2653
          %v2655 = vsel %vm2645, %v2654, %v2653
          %vm2656 = vcmp.ne.s32.totalorder %v2468, 0
          %vm2657 = vcmp.ne.s32.totalorder %v2479, 0
          %vm2658 = vcmp.ne.s32.totalorder %v2490, 0
          %vm2659 = vcmp.ne.s32.totalorder %v2501, 0
          %vm2660 = vcmp.ne.s32.totalorder %v2512, 0
          %vm2661 = vcmp.ne.s32.totalorder %v2523, 0
          %vm2662 = vcmp.ne.s32.totalorder %v2534, 0
          %vm2663 = vcmp.ne.s32.totalorder %v2545, 0
          %vm2664 = vcmp.ne.s32.totalorder %v2556, 0
          %vm2665 = vcmp.ne.s32.totalorder %v2567, 0
          %vm2666 = vcmp.ne.s32.totalorder %v2578, 0
          %vm2667 = vcmp.ne.s32.totalorder %v2589, 0
          %vm2668 = vcmp.ne.s32.totalorder %v2600, 0
          %vm2669 = vcmp.ne.s32.totalorder %v2611, 0
          %vm2670 = vcmp.ne.s32.totalorder %v2622, 0
          %vm2671 = vcmp.ne.s32.totalorder %v2633, 0
          %vm2672 = vcmp.ne.s32.totalorder %v2644, 0
          %vm2673 = vcmp.ne.s32.totalorder %v2655, 0
          %vm2674 = vcmp.lt.s32.totalorder %v2468, 0
          %vm2675 = vcmp.lt.s32.totalorder %v2479, 0
          %vm2676 = vcmp.lt.s32.totalorder %v2490, 0
          %vm2677 = vcmp.lt.s32.totalorder %v2501, 0
          %vm2678 = vcmp.lt.s32.totalorder %v2512, 0
          %vm2679 = vcmp.lt.s32.totalorder %v2523, 0
          %vm2680 = vcmp.lt.s32.totalorder %v2534, 0
          %vm2681 = vcmp.lt.s32.totalorder %v2545, 0
          %vm2682 = vcmp.lt.s32.totalorder %v2556, 0
          %vm2683 = vcmp.lt.s32.totalorder %v2567, 0
          %vm2684 = vcmp.lt.s32.totalorder %v2578, 0
          %vm2685 = vcmp.lt.s32.totalorder %v2589, 0
          %vm2686 = vcmp.lt.s32.totalorder %v2600, 0
          %vm2687 = vcmp.lt.s32.totalorder %v2611, 0
          %vm2688 = vcmp.lt.s32.totalorder %v2622, 0
          %vm2689 = vcmp.lt.s32.totalorder %v2633, 0
          %vm2690 = vcmp.lt.s32.totalorder %v2644, 0
          %vm2691 = vcmp.lt.s32.totalorder %v2655, 0
          %vm2692 = vmand %vm2674, %vm2656
          %vm2693 = vmand %vm2675, %vm2657
          %vm2694 = vmand %vm2676, %vm2658
          %vm2695 = vmand %vm2677, %vm2659
          %vm2696 = vmand %vm2678, %vm2660
          %vm2697 = vmand %vm2679, %vm2661
          %vm2698 = vmand %vm2680, %vm2662
          %vm2699 = vmand %vm2681, %vm2663
          %vm2700 = vmand %vm2682, %vm2664
          %vm2701 = vmand %vm2683, %vm2665
          %vm2702 = vmand %vm2684, %vm2666
          %vm2703 = vmand %vm2685, %vm2667
          %vm2704 = vmand %vm2686, %vm2668
          %vm2705 = vmand %vm2687, %vm2669
          %vm2706 = vmand %vm2688, %vm2670
          %vm2707 = vmand %vm2689, %vm2671
          %vm2708 = vmand %vm2690, %vm2672
          %vm2709 = vmand %vm2691, %vm2673
          %v2710 = vadd.s32 %v2468, 18
          %v2711 = vadd.s32 %v2479, 18
          %v2712 = vadd.s32 %v2490, 18
          %v2713 = vadd.s32 %v2501, 18
          %v2714 = vadd.s32 %v2512, 18
          %v2715 = vadd.s32 %v2523, 18
          %v2716 = vadd.s32 %v2534, 18
          %v2717 = vadd.s32 %v2545, 18
          %v2718 = vadd.s32 %v2556, 18
          %v2719 = vadd.s32 %v2567, 18
          %v2720 = vadd.s32 %v2578, 18
          %v2721 = vadd.s32 %v2589, 18
          %v2722 = vadd.s32 %v2600, 18
          %v2723 = vadd.s32 %v2611, 18
          %v2724 = vadd.s32 %v2622, 18
          %v2725 = vadd.s32 %v2633, 18
          %v2726 = vadd.s32 %v2644, 18
          %v2727 = vadd.s32 %v2655, 18
          %v2728 = vsel %vm2692, %v2710, %v2468
          %v2729 = vsel %vm2693, %v2711, %v2479
          %v2730 = vsel %vm2694, %v2712, %v2490
          %v2731 = vsel %vm2695, %v2713, %v2501
          %v2732 = vsel %vm2696, %v2714, %v2512
          %v2733 = vsel %vm2697, %v2715, %v2523
          %v2734 = vsel %vm2698, %v2716, %v2534
          %v2735 = vsel %vm2699, %v2717, %v2545
          %v2736 = vsel %vm2700, %v2718, %v2556
          %v2737 = vsel %vm2701, %v2719, %v2567
          %v2738 = vsel %vm2702, %v2720, %v2578
          %v2739 = vsel %vm2703, %v2721, %v2589
          %v2740 = vsel %vm2704, %v2722, %v2600
          %v2741 = vsel %vm2705, %v2723, %v2611
          %v2742 = vsel %vm2706, %v2724, %v2622
          %v2743 = vsel %vm2707, %v2725, %v2633
          %v2744 = vsel %vm2708, %v2726, %v2644
          %v2745 = vsel %vm2709, %v2727, %v2655
          %vm2746 = vcmp.gt.s32.totalorder %v2728, 0
          %vm2747 = vcmp.gt.s32.totalorder %v2729, 0
          %vm2748 = vcmp.gt.s32.totalorder %v2730, 0
          %vm2749 = vcmp.gt.s32.totalorder %v2731, 0
          %vm2750 = vcmp.gt.s32.totalorder %v2732, 0
          %vm2751 = vcmp.gt.s32.totalorder %v2733, 0
          %vm2752 = vcmp.gt.s32.totalorder %v2734, 0
          %vm2753 = vcmp.gt.s32.totalorder %v2735, 0
          %vm2754 = vcmp.gt.s32.totalorder %v2736, 0
          %vm2755 = vcmp.gt.s32.totalorder %v2737, 0
          %vm2756 = vcmp.gt.s32.totalorder %v2738, 0
          %vm2757 = vcmp.gt.s32.totalorder %v2739, 0
          %vm2758 = vcmp.gt.s32.totalorder %v2740, 0
          %vm2759 = vcmp.gt.s32.totalorder %v2741, 0
          %vm2760 = vcmp.gt.s32.totalorder %v2742, 0
          %vm2761 = vcmp.gt.s32.totalorder %v2743, 0
          %vm2762 = vcmp.gt.s32.totalorder %v2744, 0
          %vm2763 = vcmp.gt.s32.totalorder %v2745, 0
          %vm2764 = vcmp.lt.s32.totalorder %v2728, 17
          %vm2765 = vcmp.lt.s32.totalorder %v2729, 17
          %vm2766 = vcmp.lt.s32.totalorder %v2730, 17
          %vm2767 = vcmp.lt.s32.totalorder %v2731, 17
          %vm2768 = vcmp.lt.s32.totalorder %v2732, 17
          %vm2769 = vcmp.lt.s32.totalorder %v2733, 17
          %vm2770 = vcmp.lt.s32.totalorder %v2734, 17
          %vm2771 = vcmp.lt.s32.totalorder %v2735, 17
          %vm2772 = vcmp.lt.s32.totalorder %v2736, 17
          %vm2773 = vcmp.lt.s32.totalorder %v2737, 17
          %vm2774 = vcmp.lt.s32.totalorder %v2738, 17
          %vm2775 = vcmp.lt.s32.totalorder %v2739, 17
          %vm2776 = vcmp.lt.s32.totalorder %v2740, 17
          %vm2777 = vcmp.lt.s32.totalorder %v2741, 17
          %vm2778 = vcmp.lt.s32.totalorder %v2742, 17
          %vm2779 = vcmp.lt.s32.totalorder %v2743, 17
          %vm2780 = vcmp.lt.s32.totalorder %v2744, 17
          %vm2781 = vcmp.lt.s32.totalorder %v2745, 17
          %vm2782 = vmand %vm2746, %vm2764
          %vm2783 = vmand %vm2747, %vm2765
          %vm2784 = vmand %vm2748, %vm2766
          %vm2785 = vmand %vm2749, %vm2767
          %vm2786 = vmand %vm2750, %vm2768
          %vm2787 = vmand %vm2751, %vm2769
          %vm2788 = vmand %vm2752, %vm2770
          %vm2789 = vmand %vm2753, %vm2771
          %vm2790 = vmand %vm2754, %vm2772
          %vm2791 = vmand %vm2755, %vm2773
          %vm2792 = vmand %vm2756, %vm2774
          %vm2793 = vmand %vm2757, %vm2775
          %vm2794 = vmand %vm2758, %vm2776
          %vm2795 = vmand %vm2759, %vm2777
          %vm2796 = vmand %vm2760, %vm2778
          %vm2797 = vmand %vm2761, %vm2779
          %vm2798 = vmand %vm2762, %vm2780
          %vm2799 = vmand %vm2763, %vm2781
          %v2800 = vsel %vm2782, 1, 0
          %v2801 = vsel %vm2783, 1, 0
          %v2802 = vsel %vm2784, 1, 0
          %v2803 = vsel %vm2785, 1, 0
          %v2804 = vsel %vm2786, 1, 0
          %v2805 = vsel %vm2787, 1, 0
          %v2806 = vsel %vm2788, 1, 0
          %v2807 = vsel %vm2789, 1, 0
          %v2808 = vsel %vm2790, 1, 0
          %v2809 = vsel %vm2791, 1, 0
          %v2810 = vsel %vm2792, 1, 0
          %v2811 = vsel %vm2793, 1, 0
          %v2812 = vsel %vm2794, 1, 0
          %v2813 = vsel %vm2795, 1, 0
          %v2814 = vsel %vm2796, 1, 0
          %v2815 = vsel %vm2797, 1, 0
          %v2816 = vsel %vm2798, 1, 0
          %v2817 = vsel %vm2799, 1, 0
          %vm2818 = vcmp.eq.s32.totalorder %v2800, 1
          %vm2819 = vcmp.eq.s32.totalorder %v2801, 1
          %vm2820 = vcmp.eq.s32.totalorder %v2802, 1
          %vm2821 = vcmp.eq.s32.totalorder %v2803, 1
          %vm2822 = vcmp.eq.s32.totalorder %v2804, 1
          %vm2823 = vcmp.eq.s32.totalorder %v2805, 1
          %vm2824 = vcmp.eq.s32.totalorder %v2806, 1
          %vm2825 = vcmp.eq.s32.totalorder %v2807, 1
          %vm2826 = vcmp.eq.s32.totalorder %v2808, 1
          %vm2827 = vcmp.eq.s32.totalorder %v2809, 1
          %vm2828 = vcmp.eq.s32.totalorder %v2810, 1
          %vm2829 = vcmp.eq.s32.totalorder %v2811, 1
          %vm2830 = vcmp.eq.s32.totalorder %v2812, 1
          %vm2831 = vcmp.eq.s32.totalorder %v2813, 1
          %vm2832 = vcmp.eq.s32.totalorder %v2814, 1
          %vm2833 = vcmp.eq.s32.totalorder %v2815, 1
          %vm2834 = vcmp.eq.s32.totalorder %v2816, 1
          %vm2835 = vcmp.eq.s32.totalorder %v2817, 1
          %v2836 = vsel %vm2818, %v2421, 0.0
          %v2837 = vsel %vm2819, %v2422, 0.0
          %v2838 = vsel %vm2820, %v2423, 0.0
          %v2839 = vsel %vm2821, %v2424, 0.0
          %v2840 = vsel %vm2822, %v2425, 0.0
          %v2841 = vsel %vm2823, %v2426, 0.0
          %v2842 = vsel %vm2824, %v2427, 0.0
          %v2843 = vsel %vm2825, %v2428, 0.0
          %v2844 = vsel %vm2826, %v2429, 0.0
          %v2845 = vsel %vm2827, %v2430, 0.0
          %v2846 = vsel %vm2828, %v2431, 0.0
          %v2847 = vsel %vm2829, %v2432, 0.0
          %v2848 = vsel %vm2830, %v2433, 0.0
          %v2849 = vsel %vm2831, %v2434, 0.0
          %v2850 = vsel %vm2832, %v2435, 0.0
          %v2851 = vsel %vm2833, %v2436, 0.0
          %v2852 = vsel %vm2834, %v2437, 0.0
          %v2853 = vsel %vm2835, %v2438, 0.0
          %v2854 = vpack.c.bf16 %v2837, %v2836
          %v2855 = vpack.c.bf16 %v2839, %v2838
          %v2856 = vpack.c.bf16 %v2841, %v2840
          %v2857 = vpack.c.bf16 %v2843, %v2842
          %v2858 = vpack.c.bf16 %v2845, %v2844
          %v2859 = vpack.c.bf16 %v2847, %v2846
          %v2860 = vpack.c.bf16 %v2849, %v2848
          %v2861 = vpack.c.bf16 %v2851, %v2850
          %v2862 = vpack.c.bf16 %v2853, %v2852
          %v2872 = vunpack.c.l.b16 %v2854
          %v2873 = vunpack.c.h.b16 %v2854
          %v2874 = vunpack.c.l.b16 %v2855
          %v2875 = vunpack.c.h.b16 %v2855
          %v2876 = vunpack.c.l.b16 %v2856
          %v2877 = vunpack.c.h.b16 %v2856
          %v2878 = vunpack.c.l.b16 %v2857
          %v2879 = vunpack.c.h.b16 %v2857
          %v2880 = vunpack.c.l.b16 %v2858
          %v2881 = vunpack.c.h.b16 %v2858
          %v2882 = vunpack.c.l.b16 %v2859
          %v2883 = vunpack.c.h.b16 %v2859
          %v2884 = vunpack.c.l.b16 %v2860
          %v2885 = vunpack.c.h.b16 %v2860
          %v2886 = vunpack.c.l.b16 %v2861
          %v2887 = vunpack.c.h.b16 %v2861
          %v2888 = vunpack.c.l.b16 %v2862
          %v2889 = vunpack.c.h.b16 %v2862
          %v2890 = vpack.c.b16 %v2872, %v2872
          %v2891 = vpack.c.b16 %v2873, %v2873
          %v2892 = vpack.c.b16 %v2874, %v2874
          %v2893 = vpack.c.b16 %v2875, %v2875
          %v2894 = vpack.c.b16 %v2876, %v2876
          %v2895 = vpack.c.b16 %v2877, %v2877
          %v2896 = vpack.c.b16 %v2878, %v2878
          %v2897 = vpack.c.b16 %v2879, %v2879
          %v2898 = vpack.c.b16 %v2880, %v2880
          %v2899 = vpack.c.b16 %v2881, %v2881
          %v2900 = vpack.c.b16 %v2882, %v2882
          %v2901 = vpack.c.b16 %v2883, %v2883
          %v2902 = vpack.c.b16 %v2884, %v2884
          %v2903 = vpack.c.b16 %v2885, %v2885
          %v2904 = vpack.c.b16 %v2886, %v2886
          %v2905 = vpack.c.b16 %v2887, %v2887
          %v2906 = vpack.c.b16 %v2888, %v2888
          %v2907 = vpack.c.b16 %v2889, %v2889
          %2926 = vst [vmem:[%s321] sm:$0xf] %v2890
          %2927 = vst [vmem:[%s321 + $0x4] sm:$0xf] %v2891
          %2928 = vst [vmem:[%s321 + $0x8] sm:$0xf] %v2892
          %2929 = vst [vmem:[%s321 + $0xc] sm:$0xf] %v2893
          %2930 = vst [vmem:[%s321 + $0x10] sm:$0xf] %v2894
          %2931 = vst [vmem:[%s321 + $0x14] sm:$0xf] %v2895
          %2932 = vst [vmem:[%s321 + $0x18] sm:$0xf] %v2896
          %2933 = vst [vmem:[%s321 + $0x1c] sm:$0xf] %v2897
          %2934 = vst [vmem:[%s321 + $0x20] sm:$0xf] %v2898
          %2935 = vst [vmem:[%s321 + $0x24] sm:$0xf] %v2899
          %2936 = vst [vmem:[%s321 + $0x28] sm:$0xf] %v2900
          %2937 = vst [vmem:[%s321 + $0x2c] sm:$0xf] %v2901
          %2938 = vst [vmem:[%s321 + $0x30] sm:$0xf] %v2902
          %2939 = vst [vmem:[%s321 + $0x34] sm:$0xf] %v2903
          %2940 = vst [vmem:[%s321 + $0x38] sm:$0xf] %v2904
          %2941 = vst [vmem:[%s321 + $0x3c] sm:$0xf] %v2905
          %2942 = vst [vmem:[%s321 + $0x40] sm:$0xf] %v2906
          %2943 = vst [vmem:[%s321 + $0x44] sm:$0xf] %v2907
        $region77: #{tpu_custom_call.1} parent=64 // pred_fallthru
          _
        %s2944 = sand.u32 %s100, 1
        %s2945 = scalar_lea.sflag [#allocation6], %s2944
        %s2946 = sand.u32 %s100, 1
        %s2947 = smul.addr %s2946, 72
        %s2948 = scalar_lea.vmem [#allocation5], %s2947
        // Predicated region
        $region116: #{tpu_custom_call.1} parent=64 // pred_check
          %p2949 = pneg %p110
        $region117: #{tpu_custom_call.1} parent=64 // pred_check_branch
          %2951 = sbr.rel (%p2949) target = $region119
        $region118: #{tpu_custom_call.1} parent=64 // pred_region
          %s2952 = smul.u32 18, %s23
          %s2954 = ssub.s32 1152, 1152
          %2955 = vsyncadd %s2945, %s2954
          %s2956 = smul.addr %s2952, 3
          %s2957 = sadd.s32 %s24, %s2956
          %s2958 = smul.addr %s22, 216
          %s2959 = sadd.s32 %s2957, %s2958
          %s2960 = smul.addr %s2959, 64
          %s2961 = scalar_lea.hbm %s3, %s2960
          %s2962 = sshll.u32 %s2948, 4
          %s2963 = int_to_ptr.vmem [resolvable:$true] %s2962
          %2968 = dma.vmem_to_hbm [thread:$0]  %s2963, 1152, %s2961, %s2945, 64, 192, 4
        $region119: #{tpu_custom_call.1} parent=64 // pred_fallthru
          _
      $region65: #{tpu_custom_call.1} parent=5 // pred_fallthru
        _
      %p2969 = scmp.le.s32.totalorder 2, %s12
      // Predicated region
      $region120: #{tpu_custom_call.1} parent=5 // pred_check
        %p2970 = pneg %p2969
      $region121: #{tpu_custom_call.1} parent=5 // pred_check_branch
        %2972 = sbr.rel (%p2970) target = $region123
      $region122: #{tpu_custom_call.1} parent=5 // pred_region
        %s2973 = ssub.s32 %s12, 2
        // Predicated region
        $region124: #{tpu_custom_call.1} parent=122 // pred_check
          %p2974 = pneg %p116
        $region125: #{tpu_custom_call.1} parent=122 // pred_check_branch
          %2976 = sbr.rel (%p2974) target = $region127
        $region126: #{tpu_custom_call.1} parent=122 // pred_region
          %s2977 = sand.u32 %s101, 1
          %s2978 = scalar_lea.sflag [#allocation6], %s2977
          %s2979 = sand.u32 %s101, 1
          %s2980 = smul.addr %s2979, 72
          %s2981 = scalar_lea.vmem [#allocation5], %s2980
          %2982 = dma.done %s2978, 1152
        $region127: #{tpu_custom_call.1} parent=122 // pred_fallthru
          _
      $region123: #{tpu_custom_call.1} parent=5 // pred_fallthru
        _
    $region6: #{tpu_custom_call.1} parent=1 // loop_footer
      %s16 = sadd.s32 1, %s12
    $region7: #{tpu_custom_call.1} parent=1 // loop_footer_branch
      %11 = sbr.rel target = $region3
    $region8: #{tpu_custom_call.1} parent=1 // loop_exit
      _
    %2983 = vsyncpa [#allocation6], 1
    %s2984 = scalar_lea.sflag [#allocation6], 1
    %2985 = vsyncpa %s2984, 1
  %2986 = vsyncmov [#allocation3]
  %s2987 = vpop.sfrf %2986
  %p2988 = scmp.eq.s32.totalorder %s2987, 0
  %p2989 = pneg %p2988
  %2991 = shalt.err (%p2989)

</llo_original>
